<compile_context>
chip_gen: v7x
topology: tpu7x:2x2x1
jax: 0.10.0
libtpu: 0.0.40
codegen_flags: <defaults>
</compile_context>

<pallas_src>
import numpy as np
import jax
import jax.numpy as jnp
from jax.experimental import pallas as pl
from jax.experimental.pallas import tpu as pltpu


# ----------------------------- Pallas kernel --------------------------------
def make_lstm_kernel(T, N, H):
    """Build the fused 2-layer LSTM + fc kernel for fixed (T, N, H)."""
    f32 = jnp.float32

    def kernel(
        x_ref,                       # (T*N, F)   time-major input, rows t*N..t*N+N-1 = step t
        wih0_ref, whh0_ref, b0_ref,  # layer 0: (F, 4H), (H, 4H), (1, 4H)   [b = b_ih + b_hh]
        w1_ref, b1_ref,              # layer 1: (2H, 4H) = [wih1; whh1], (1, 4H)
        fcw_ref,                     # (H, 1)
        fcb_ref,                     # SMEM (1,)
        out_ref,                     # (N, 1)
    ):
        whh0 = whh0_ref[...]
        w1 = w1_ref[...]
        b1 = b1_ref[...]

        # Hoisted layer-0 input projection: one (T*N, F) x (F, 4H) matmul,
        # done once outside the serial recurrence; bias folded in here.
        gi0_all = (jnp.dot(x_ref[...], wih0_ref[...], preferred_element_type=f32)
                   + b0_ref[...])                                   # (T*N, 4H)

        def lstm_gates(pre, c):
            # PyTorch gate order: i, f, g, o
            i = jax.nn.sigmoid(pre[:, 0 * H:1 * H])
            f = jax.nn.sigmoid(pre[:, 1 * H:2 * H])
            g = jnp.tanh(pre[:, 2 * H:3 * H])
            o = jax.nn.sigmoid(pre[:, 3 * H:4 * H])
            c_new = f * c + i * g
            h_new = o * jnp.tanh(c_new)
            return h_new, c_new

        h0 = jnp.zeros((N, H), f32)
        c0 = jnp.zeros((N, H), f32)
        h1 = jnp.zeros((N, H), f32)
        c1 = jnp.zeros((N, H), f32)

        # Statically unrolled time loop (T fixed and small).
        for t in range(T):
            # Layer 0: recurrent projection only (input part precomputed).
            pre0 = (gi0_all[t * N:(t + 1) * N, :]                    # (N, 4H), aligned rows
                    + jnp.dot(h0, whh0, preferred_element_type=f32))
            h0, c0 = lstm_gates(pre0, c0)

            # Layer 1: fused input + recurrent projection in one matmul.
            hcat = jnp.concatenate([h0, h1], axis=-1)                # (N, 2H)
            pre1 = jnp.dot(hcat, w1, preferred_element_type=f32) + b1
            h1, c1 = lstm_gates(pre1, c1)

        # fc on the last top-layer hidden state.
        out_ref[...] = (jnp.dot(h1, fcw_ref[...], preferred_element_type=f32)
                        + fcb_ref[0])

    return kernel


# ------------------------------- wrapper -------------------------------------
def lstm_forward(x, params, d_feat):
    N = x.shape[0]
    T = x.shape[1] // d_feat
    H = params["whh0"].shape[0]
    F = d_feat

    # (N, F*T) -> (N, F, T) -> (T, N, F) -> (T*N, F)
    x_tnf = jnp.transpose(x.reshape(N, F, T), (2, 0, 1)).astype(jnp.float32)
    x_2d = x_tnf.reshape(T * N, F)

    # Pre-sum the two bias vectors per layer (they only ever appear added).
    b0 = params["bih0"] + params["bhh0"]
    b1 = params["bih1"] + params["bhh1"]
    # Stack layer-1 input + recurrent weights: one dot per step in the kernel.
    w1 = jnp.concatenate([params["wih1"], params["whh1"]], axis=0)   # (2H, 4H)

    # Advisory cost estimate so XLA can schedule around the tiny custom call.
    flops = int(2 * T * N * F * 4 * H            # hoisted input projection
                + 2 * T * N * H * 4 * H          # recurrent hh0
                + 2 * T * N * 2 * H * 4 * H      # fused layer-1 projection
                + 2 * N * H)                     # fc
    transcendentals = int(T * 2 * N * 5 * H)     # 3 sigmoid + 2 tanh per layer/step
    operands = (x_2d, params["wih0"], params["whh0"], b0,
                w1, b1, params["fcw"], params["fcb"])
    bytes_accessed = int(sum(int(np.prod(a.shape)) * 4 for a in operands) + N * 4)

    vmem = pl.BlockSpec(memory_space=pltpu.MemorySpace.VMEM)
    smem = pl.BlockSpec(memory_space=pltpu.MemorySpace.SMEM)

    out = pl.pallas_call(
        make_lstm_kernel(T, N, H),
        out_shape=jax.ShapeDtypeStruct((N, 1), jnp.float32),
        in_specs=[vmem,               # x
                  vmem, vmem, vmem,   # layer 0
                  vmem, vmem,         # layer 1 (stacked)
                  vmem,               # fc weight
                  smem],              # fc bias
        out_specs=vmem,
        cost_estimate=pl.CostEstimate(flops=flops,
                                      transcendentals=transcendentals,
                                      bytes_accessed=bytes_accessed),
    )(x_2d,
      params["wih0"], params["whh0"], b0,
      w1, b1,
      params["fcw"], params["fcb"])
    return out[:, 0]                  # matches .squeeze() -> (N,)


# --------------------------- pure-JAX reference -------------------------------
def reference_forward(x, params, d_feat):
    hi = jax.lax.Precision.HIGHEST
    N = x.shape[0]
    H = params["whh0"].shape[0]
    T = x.shape[1] // d_feat
    xs = jnp.transpose(x.reshape(N, d_feat, T), (0, 2, 1))   # (N, T, F)

    def cell(x_t, h, c, wih, whh, bih, bhh):
        pre = (jnp.dot(x_t, wih, precision=hi) + bih
               + jnp.dot(h, whh, precision=hi) + bhh)
        i = jax.nn.sigmoid(pre[:, 0 * H:1 * H])
        f = jax.nn.sigmoid(pre[:, 1 * H:2 * H])
        g = jnp.tanh(pre[:, 2 * H:3 * H])
        o = jax.nn.sigmoid(pre[:, 3 * H:4 * H])
        c_new = f * c + i * g
        h_new = o * jnp.tanh(c_new)
        return h_new, c_new

    h0 = jnp.zeros((N, H), jnp.float32); c0 = jnp.zeros((N, H), jnp.float32)
    h1 = jnp.zeros((N, H), jnp.float32); c1 = jnp.zeros((N, H), jnp.float32)
    for t in range(T):
        h0, c0 = cell(xs[:, t, :], h0, c0, params["wih0"], params["whh0"],
                      params["bih0"], params["bhh0"])
        h1, c1 = cell(h0, h1, c1, params["wih1"], params["whh1"],
                      params["bih1"], params["bhh1"])
    pred = jnp.dot(h1, params["fcw"], precision=hi) + params["fcb"][0]
    return pred[:, 0]


# ------------------------------ param init ------------------------------------
def init_params(key, d_feat, H):
    ks = jax.random.split(key, 10)

    def u(k, shape, lim):
        return jax.random.uniform(k, shape, jnp.float32, -lim, lim)

    stdv = 1.0 / float(np.sqrt(H))             # PyTorch LSTM default init range
    params = dict(
        # fused gate layout: columns are [i | f | g | o], each H wide
        wih0=u(ks[0], (d_feat, 4 * H), stdv),
        whh0=u(ks[1], (H, 4 * H), stdv),
        bih0=u(ks[2], (1, 4 * H), stdv),
        bhh0=u(ks[3], (1, 4 * H), stdv),
        wih1=u(ks[4], (H, 4 * H), stdv),
        whh1=u(ks[5], (H, 4 * H), stdv),
        bih1=u(ks[6], (1, 4 * H), stdv),
        bhh1=u(ks[7], (1, 4 * H), stdv),
    )
    fc_lim = 1.0 / float(np.sqrt(H))           # nn.Linear(H, 1) default init range
    params["fcw"] = u(ks[8], (H, 1), fc_lim)
    params["fcb"] = u(ks[9], (1,), fc_lim)
    return params


# --------------------------------- main ---------------------------------------
if __name__ == "__main__":
    d_feat, H, T, N = 6, 64, 10, 8             # hidden_size=64, num_layers=2 per spec

    key = jax.random.PRNGKey(0)
    k_params, k_x = jax.random.split(key)

    params = init_params(k_params, d_feat, H)
    x = jax.random.normal(k_x, (N, d_feat * T), jnp.float32)

    pred = lstm_forward(x, params, d_feat)
    pred = jax.block_until_ready(pred)

    ref = reference_forward(x, params, d_feat)
    ref = jax.block_until_ready(ref)

    np.testing.assert_allclose(np.asarray(pred), np.asarray(ref), rtol=2e-2, atol=2e-2)
    print("KERNEL_OK")
</pallas_src>

<mosaic_0001>
module attributes {stable_mosaic.version = 11 : i64} {
  func.func @kernel(%arg0: memref<80x6xf32, #tpu.memory_space<vmem>>, %arg1: memref<6x256xf32, #tpu.memory_space<vmem>>, %arg2: memref<64x256xf32, #tpu.memory_space<vmem>>, %arg3: memref<1x256xf32, #tpu.memory_space<vmem>>, %arg4: memref<128x256xf32, #tpu.memory_space<vmem>>, %arg5: memref<1x256xf32, #tpu.memory_space<vmem>>, %arg6: memref<64x1xf32, #tpu.memory_space<vmem>>, %arg7: memref<1xf32, #tpu.memory_space<smem>>, %arg8: memref<8x1xf32, #tpu.memory_space<vmem>>) attributes {dimension_semantics = [], scalar_prefetch = 0 : i64, scratch_operands = 0 : i64, tpu.core_type = #tpu.core_type<tc>} {
    %c0 = arith.constant 0 : index
    %c0_0 = arith.constant 0 : index
    %0 = vector.load %arg2[%c0, %c0_0] : memref<64x256xf32, #tpu.memory_space<vmem>>, vector<64x256xf32>
    %c0_1 = arith.constant 0 : index
    %c0_2 = arith.constant 0 : index
    %1 = vector.load %arg4[%c0_1, %c0_2] : memref<128x256xf32, #tpu.memory_space<vmem>>, vector<128x256xf32>
    %c0_3 = arith.constant 0 : index
    %c0_4 = arith.constant 0 : index
    %2 = vector.load %arg5[%c0_3, %c0_4] : memref<1x256xf32, #tpu.memory_space<vmem>>, vector<1x256xf32>
    %c0_5 = arith.constant 0 : index
    %c0_6 = arith.constant 0 : index
    %3 = vector.load %arg0[%c0_5, %c0_6] : memref<80x6xf32, #tpu.memory_space<vmem>>, vector<80x6xf32>
    %c0_7 = arith.constant 0 : index
    %c0_8 = arith.constant 0 : index
    %4 = vector.load %arg1[%c0_7, %c0_8] : memref<6x256xf32, #tpu.memory_space<vmem>>, vector<6x256xf32>
    %cst = arith.constant dense<0.000000e+00> : vector<80x256xf32>
    %5 = tpu.matmul %3, %4, %cst {dimension_numbers = #tpu.dot_dimension_numbers<[1], [0], [0], [1], [0, 0, 1, 1], [], []>} : vector<80x6xf32>, vector<6x256xf32>, vector<80x256xf32> -> vector<80x256xf32>
    %c0_9 = arith.constant 0 : index
    %c0_10 = arith.constant 0 : index
    %6 = vector.load %arg3[%c0_9, %c0_10] : memref<1x256xf32, #tpu.memory_space<vmem>>, vector<1x256xf32>
    %7 = vector.broadcast %6 : vector<1x256xf32> to vector<80x256xf32>
    %8 = arith.addf %5, %7 : vector<80x256xf32>
    %cst_11 = arith.constant 0.000000e+00 : f32
    %9 = vector.broadcast %cst_11 : f32 to vector<8x64xf32>
    %cst_12 = arith.constant 0.000000e+00 : f32
    %10 = vector.broadcast %cst_12 : f32 to vector<8x64xf32>
    %cst_13 = arith.constant 0.000000e+00 : f32
    %11 = vector.broadcast %cst_13 : f32 to vector<8x64xf32>
    %cst_14 = arith.constant 0.000000e+00 : f32
    %12 = vector.broadcast %cst_14 : f32 to vector<8x64xf32>
    %13 = vector.extract_strided_slice %8 {offsets = [0, 0], sizes = [8, 256], strides = [1, 1]} : vector<80x256xf32> to vector<8x256xf32>
    %cst_15 = arith.constant dense<0.000000e+00> : vector<8x256xf32>
    %14 = tpu.matmul %9, %0, %cst_15 {dimension_numbers = #tpu.dot_dimension_numbers<[1], [0], [0], [1], [0, 0, 1, 1], [], []>} : vector<8x64xf32>, vector<64x256xf32>, vector<8x256xf32> -> vector<8x256xf32>
    %15 = arith.addf %13, %14 : vector<8x256xf32>
    %16 = vector.extract_strided_slice %15 {offsets = [0, 0], sizes = [8, 64], strides = [1, 1]} : vector<8x256xf32> to vector<8x64xf32>
    %17 = arith.negf %16 : vector<8x64xf32>
    %18 = math.exp %17 : vector<8x64xf32>
    %cst_16 = arith.constant 1.000000e+00 : f32
    %19 = vector.broadcast %cst_16 : f32 to vector<8x64xf32>
    %20 = arith.addf %19, %18 : vector<8x64xf32>
    %21 = arith.divf %19, %20 : vector<8x64xf32>
    %22 = vector.extract_strided_slice %15 {offsets = [0, 64], sizes = [8, 64], strides = [1, 1]} : vector<8x256xf32> to vector<8x64xf32>
    %23 = arith.negf %22 : vector<8x64xf32>
    %24 = math.exp %23 : vector<8x64xf32>
    %cst_17 = arith.constant 1.000000e+00 : f32
    %25 = vector.broadcast %cst_17 : f32 to vector<8x64xf32>
    %26 = arith.addf %25, %24 : vector<8x64xf32>
    %27 = arith.divf %25, %26 : vector<8x64xf32>
    %28 = vector.extract_strided_slice %15 {offsets = [0, 128], sizes = [8, 64], strides = [1, 1]} : vector<8x256xf32> to vector<8x64xf32>
    %29 = math.tanh %28 : vector<8x64xf32>
    %30 = vector.extract_strided_slice %15 {offsets = [0, 192], sizes = [8, 64], strides = [1, 1]} : vector<8x256xf32> to vector<8x64xf32>
    %31 = arith.negf %30 : vector<8x64xf32>
    %32 = math.exp %31 : vector<8x64xf32>
    %cst_18 = arith.constant 1.000000e+00 : f32
    %33 = vector.broadcast %cst_18 : f32 to vector<8x64xf32>
    %34 = arith.addf %33, %32 : vector<8x64xf32>
    %35 = arith.divf %33, %34 : vector<8x64xf32>
    %36 = arith.mulf %27, %10 : vector<8x64xf32>
    %37 = arith.mulf %21, %29 : vector<8x64xf32>
    %38 = arith.addf %36, %37 : vector<8x64xf32>
    %39 = math.tanh %38 : vector<8x64xf32>
    %40 = arith.mulf %35, %39 : vector<8x64xf32>
    %41 = tpu.concatenate %40, %11 in 1 : vector<8x64xf32>, vector<8x64xf32> -> vector<8x128xf32>
    %cst_19 = arith.constant dense<0.000000e+00> : vector<8x256xf32>
    %42 = tpu.matmul %41, %1, %cst_19 {dimension_numbers = #tpu.dot_dimension_numbers<[1], [0], [0], [1], [0, 0, 1, 1], [], []>} : vector<8x128xf32>, vector<128x256xf32>, vector<8x256xf32> -> vector<8x256xf32>
    %43 = vector.broadcast %2 : vector<1x256xf32> to vector<8x256xf32>
    %44 = arith.addf %42, %43 : vector<8x256xf32>
    %45 = vector.extract_strided_slice %44 {offsets = [0, 0], sizes = [8, 64], strides = [1, 1]} : vector<8x256xf32> to vector<8x64xf32>
    %46 = arith.negf %45 : vector<8x64xf32>
    %47 = math.exp %46 : vector<8x64xf32>
    %cst_20 = arith.constant 1.000000e+00 : f32
    %48 = vector.broadcast %cst_20 : f32 to vector<8x64xf32>
    %49 = arith.addf %48, %47 : vector<8x64xf32>
    %50 = arith.divf %48, %49 : vector<8x64xf32>
    %51 = vector.extract_strided_slice %44 {offsets = [0, 64], sizes = [8, 64], strides = [1, 1]} : vector<8x256xf32> to vector<8x64xf32>
    %52 = arith.negf %51 : vector<8x64xf32>
    %53 = math.exp %52 : vector<8x64xf32>
    %cst_21 = arith.constant 1.000000e+00 : f32
    %54 = vector.broadcast %cst_21 : f32 to vector<8x64xf32>
    %55 = arith.addf %54, %53 : vector<8x64xf32>
    %56 = arith.divf %54, %55 : vector<8x64xf32>
    %57 = vector.extract_strided_slice %44 {offsets = [0, 128], sizes = [8, 64], strides = [1, 1]} : vector<8x256xf32> to vector<8x64xf32>
    %58 = math.tanh %57 : vector<8x64xf32>
    %59 = vector.extract_strided_slice %44 {offsets = [0, 192], sizes = [8, 64], strides = [1, 1]} : vector<8x256xf32> to vector<8x64xf32>
    %60 = arith.negf %59 : vector<8x64xf32>
    %61 = math.exp %60 : vector<8x64xf32>
    %cst_22 = arith.constant 1.000000e+00 : f32
    %62 = vector.broadcast %cst_22 : f32 to vector<8x64xf32>
    %63 = arith.addf %62, %61 : vector<8x64xf32>
    %64 = arith.divf %62, %63 : vector<8x64xf32>
    %65 = arith.mulf %56, %12 : vector<8x64xf32>
    %66 = arith.mulf %50, %58 : vector<8x64xf32>
    %67 = arith.addf %65, %66 : vector<8x64xf32>
    %68 = math.tanh %67 : vector<8x64xf32>
    %69 = arith.mulf %64, %68 : vector<8x64xf32>
    %70 = vector.extract_strided_slice %8 {offsets = [8, 0], sizes = [8, 256], strides = [1, 1]} : vector<80x256xf32> to vector<8x256xf32>
    %cst_23 = arith.constant dense<0.000000e+00> : vector<8x256xf32>
    %71 = tpu.matmul %40, %0, %cst_23 {dimension_numbers = #tpu.dot_dimension_numbers<[1], [0], [0], [1], [0, 0, 1, 1], [], []>} : vector<8x64xf32>, vector<64x256xf32>, vector<8x256xf32> -> vector<8x256xf32>
    %72 = arith.addf %70, %71 : vector<8x256xf32>
    %73 = vector.extract_strided_slice %72 {offsets = [0, 0], sizes = [8, 64], strides = [1, 1]} : vector<8x256xf32> to vector<8x64xf32>
    %74 = arith.negf %73 : vector<8x64xf32>
    %75 = math.exp %74 : vector<8x64xf32>
    %cst_24 = arith.constant 1.000000e+00 : f32
    %76 = vector.broadcast %cst_24 : f32 to vector<8x64xf32>
    %77 = arith.addf %76, %75 : vector<8x64xf32>
    %78 = arith.divf %76, %77 : vector<8x64xf32>
    %79 = vector.extract_strided_slice %72 {offsets = [0, 64], sizes = [8, 64], strides = [1, 1]} : vector<8x256xf32> to vector<8x64xf32>
    %80 = arith.negf %79 : vector<8x64xf32>
    %81 = math.exp %80 : vector<8x64xf32>
    %cst_25 = arith.constant 1.000000e+00 : f32
    %82 = vector.broadcast %cst_25 : f32 to vector<8x64xf32>
    %83 = arith.addf %82, %81 : vector<8x64xf32>
    %84 = arith.divf %82, %83 : vector<8x64xf32>
    %85 = vector.extract_strided_slice %72 {offsets = [0, 128], sizes = [8, 64], strides = [1, 1]} : vector<8x256xf32> to vector<8x64xf32>
    %86 = math.tanh %85 : vector<8x64xf32>
    %87 = vector.extract_strided_slice %72 {offsets = [0, 192], sizes = [8, 64], strides = [1, 1]} : vector<8x256xf32> to vector<8x64xf32>
    %88 = arith.negf %87 : vector<8x64xf32>
    %89 = math.exp %88 : vector<8x64xf32>
    %cst_26 = arith.constant 1.000000e+00 : f32
    %90 = vector.broadcast %cst_26 : f32 to vector<8x64xf32>
    %91 = arith.addf %90, %89 : vector<8x64xf32>
    %92 = arith.divf %90, %91 : vector<8x64xf32>
    %93 = arith.mulf %84, %38 : vector<8x64xf32>
    %94 = arith.mulf %78, %86 : vector<8x64xf32>
    %95 = arith.addf %93, %94 : vector<8x64xf32>
    %96 = math.tanh %95 : vector<8x64xf32>
    %97 = arith.mulf %92, %96 : vector<8x64xf32>
    %98 = tpu.concatenate %97, %69 in 1 : vector<8x64xf32>, vector<8x64xf32> -> vector<8x128xf32>
    %cst_27 = arith.constant dense<0.000000e+00> : vector<8x256xf32>
    %99 = tpu.matmul %98, %1, %cst_27 {dimension_numbers = #tpu.dot_dimension_numbers<[1], [0], [0], [1], [0, 0, 1, 1], [], []>} : vector<8x128xf32>, vector<128x256xf32>, vector<8x256xf32> -> vector<8x256xf32>
    %100 = vector.broadcast %2 : vector<1x256xf32> to vector<8x256xf32>
    %101 = arith.addf %99, %100 : vector<8x256xf32>
    %102 = vector.extract_strided_slice %101 {offsets = [0, 0], sizes = [8, 64], strides = [1, 1]} : vector<8x256xf32> to vector<8x64xf32>
    %103 = arith.negf %102 : vector<8x64xf32>
    %104 = math.exp %103 : vector<8x64xf32>
    %cst_28 = arith.constant 1.000000e+00 : f32
    %105 = vector.broadcast %cst_28 : f32 to vector<8x64xf32>
    %106 = arith.addf %105, %104 : vector<8x64xf32>
    %107 = arith.divf %105, %106 : vector<8x64xf32>
    %108 = vector.extract_strided_slice %101 {offsets = [0, 64], sizes = [8, 64], strides = [1, 1]} : vector<8x256xf32> to vector<8x64xf32>
    %109 = arith.negf %108 : vector<8x64xf32>
    %110 = math.exp %109 : vector<8x64xf32>
    %cst_29 = arith.constant 1.000000e+00 : f32
    %111 = vector.broadcast %cst_29 : f32 to vector<8x64xf32>
    %112 = arith.addf %111, %110 : vector<8x64xf32>
    %113 = arith.divf %111, %112 : vector<8x64xf32>
    %114 = vector.extract_strided_slice %101 {offsets = [0, 128], sizes = [8, 64], strides = [1, 1]} : vector<8x256xf32> to vector<8x64xf32>
    %115 = math.tanh %114 : vector<8x64xf32>
    %116 = vector.extract_strided_slice %101 {offsets = [0, 192], sizes = [8, 64], strides = [1, 1]} : vector<8x256xf32> to vector<8x64xf32>
    %117 = arith.negf %116 : vector<8x64xf32>
    %118 = math.exp %117 : vector<8x64xf32>
    %cst_30 = arith.constant 1.000000e+00 : f32
    %119 = vector.broadcast %cst_30 : f32 to vector<8x64xf32>
    %120 = arith.addf %119, %118 : vector<8x64xf32>
    %121 = arith.divf %119, %120 : vector<8x64xf32>
    %122 = arith.mulf %113, %67 : vector<8x64xf32>
    %123 = arith.mulf %107, %115 : vector<8x64xf32>
    %124 = arith.addf %122, %123 : vector<8x64xf32>
    %125 = math.tanh %124 : vector<8x64xf32>
    %126 = arith.mulf %121, %125 : vector<8x64xf32>
    %127 = vector.extract_strided_slice %8 {offsets = [16, 0], sizes = [8, 256], strides = [1, 1]} : vector<80x256xf32> to vector<8x256xf32>
    %cst_31 = arith.constant dense<0.000000e+00> : vector<8x256xf32>
    %128 = tpu.matmul %97, %0, %cst_31 {dimension_numbers = #tpu.dot_dimension_numbers<[1], [0], [0], [1], [0, 0, 1, 1], [], []>} : vector<8x64xf32>, vector<64x256xf32>, vector<8x256xf32> -> vector<8x256xf32>
    %129 = arith.addf %127, %128 : vector<8x256xf32>
    %130 = vector.extract_strided_slice %129 {offsets = [0, 0], sizes = [8, 64], strides = [1, 1]} : vector<8x256xf32> to vector<8x64xf32>
    %131 = arith.negf %130 : vector<8x64xf32>
    %132 = math.exp %131 : vector<8x64xf32>
    %cst_32 = arith.constant 1.000000e+00 : f32
    %133 = vector.broadcast %cst_32 : f32 to vector<8x64xf32>
    %134 = arith.addf %133, %132 : vector<8x64xf32>
    %135 = arith.divf %133, %134 : vector<8x64xf32>
    %136 = vector.extract_strided_slice %129 {offsets = [0, 64], sizes = [8, 64], strides = [1, 1]} : vector<8x256xf32> to vector<8x64xf32>
    %137 = arith.negf %136 : vector<8x64xf32>
    %138 = math.exp %137 : vector<8x64xf32>
    %cst_33 = arith.constant 1.000000e+00 : f32
    %139 = vector.broadcast %cst_33 : f32 to vector<8x64xf32>
    %140 = arith.addf %139, %138 : vector<8x64xf32>
    %141 = arith.divf %139, %140 : vector<8x64xf32>
    %142 = vector.extract_strided_slice %129 {offsets = [0, 128], sizes = [8, 64], strides = [1, 1]} : vector<8x256xf32> to vector<8x64xf32>
    %143 = math.tanh %142 : vector<8x64xf32>
    %144 = vector.extract_strided_slice %129 {offsets = [0, 192], sizes = [8, 64], strides = [1, 1]} : vector<8x256xf32> to vector<8x64xf32>
    %145 = arith.negf %144 : vector<8x64xf32>
    %146 = math.exp %145 : vector<8x64xf32>
    %cst_34 = arith.constant 1.000000e+00 : f32
    %147 = vector.broadcast %cst_34 : f32 to vector<8x64xf32>
    %148 = arith.addf %147, %146 : vector<8x64xf32>
    %149 = arith.divf %147, %148 : vector<8x64xf32>
    %150 = arith.mulf %141, %95 : vector<8x64xf32>
    %151 = arith.mulf %135, %143 : vector<8x64xf32>
    %152 = arith.addf %150, %151 : vector<8x64xf32>
    %153 = math.tanh %152 : vector<8x64xf32>
    %154 = arith.mulf %149, %153 : vector<8x64xf32>
    %155 = tpu.concatenate %154, %126 in 1 : vector<8x64xf32>, vector<8x64xf32> -> vector<8x128xf32>
    %cst_35 = arith.constant dense<0.000000e+00> : vector<8x256xf32>
    %156 = tpu.matmul %155, %1, %cst_35 {dimension_numbers = #tpu.dot_dimension_numbers<[1], [0], [0], [1], [0, 0, 1, 1], [], []>} : vector<8x128xf32>, vector<128x256xf32>, vector<8x256xf32> -> vector<8x256xf32>
    %157 = vector.broadcast %2 : vector<1x256xf32> to vector<8x256xf32>
    %158 = arith.addf %156, %157 : vector<8x256xf32>
    %159 = vector.extract_strided_slice %158 {offsets = [0, 0], sizes = [8, 64], strides = [1, 1]} : vector<8x256xf32> to vector<8x64xf32>
    %160 = arith.negf %159 : vector<8x64xf32>
    %161 = math.exp %160 : vector<8x64xf32>
    %cst_36 = arith.constant 1.000000e+00 : f32
    %162 = vector.broadcast %cst_36 : f32 to vector<8x64xf32>
    %163 = arith.addf %162, %161 : vector<8x64xf32>
    %164 = arith.divf %162, %163 : vector<8x64xf32>
    %165 = vector.extract_strided_slice %158 {offsets = [0, 64], sizes = [8, 64], strides = [1, 1]} : vector<8x256xf32> to vector<8x64xf32>
    %166 = arith.negf %165 : vector<8x64xf32>
    %167 = math.exp %166 : vector<8x64xf32>
    %cst_37 = arith.constant 1.000000e+00 : f32
    %168 = vector.broadcast %cst_37 : f32 to vector<8x64xf32>
    %169 = arith.addf %168, %167 : vector<8x64xf32>
    %170 = arith.divf %168, %169 : vector<8x64xf32>
    %171 = vector.extract_strided_slice %158 {offsets = [0, 128], sizes = [8, 64], strides = [1, 1]} : vector<8x256xf32> to vector<8x64xf32>
    %172 = math.tanh %171 : vector<8x64xf32>
    %173 = vector.extract_strided_slice %158 {offsets = [0, 192], sizes = [8, 64], strides = [1, 1]} : vector<8x256xf32> to vector<8x64xf32>
    %174 = arith.negf %173 : vector<8x64xf32>
    %175 = math.exp %174 : vector<8x64xf32>
    %cst_38 = arith.constant 1.000000e+00 : f32
    %176 = vector.broadcast %cst_38 : f32 to vector<8x64xf32>
    %177 = arith.addf %176, %175 : vector<8x64xf32>
    %178 = arith.divf %176, %177 : vector<8x64xf32>
    %179 = arith.mulf %170, %124 : vector<8x64xf32>
    %180 = arith.mulf %164, %172 : vector<8x64xf32>
    %181 = arith.addf %179, %180 : vector<8x64xf32>
    %182 = math.tanh %181 : vector<8x64xf32>
    %183 = arith.mulf %178, %182 : vector<8x64xf32>
    %184 = vector.extract_strided_slice %8 {offsets = [24, 0], sizes = [8, 256], strides = [1, 1]} : vector<80x256xf32> to vector<8x256xf32>
    %cst_39 = arith.constant dense<0.000000e+00> : vector<8x256xf32>
    %185 = tpu.matmul %154, %0, %cst_39 {dimension_numbers = #tpu.dot_dimension_numbers<[1], [0], [0], [1], [0, 0, 1, 1], [], []>} : vector<8x64xf32>, vector<64x256xf32>, vector<8x256xf32> -> vector<8x256xf32>
    %186 = arith.addf %184, %185 : vector<8x256xf32>
    %187 = vector.extract_strided_slice %186 {offsets = [0, 0], sizes = [8, 64], strides = [1, 1]} : vector<8x256xf32> to vector<8x64xf32>
    %188 = arith.negf %187 : vector<8x64xf32>
    %189 = math.exp %188 : vector<8x64xf32>
    %cst_40 = arith.constant 1.000000e+00 : f32
    %190 = vector.broadcast %cst_40 : f32 to vector<8x64xf32>
    %191 = arith.addf %190, %189 : vector<8x64xf32>
    %192 = arith.divf %190, %191 : vector<8x64xf32>
    %193 = vector.extract_strided_slice %186 {offsets = [0, 64], sizes = [8, 64], strides = [1, 1]} : vector<8x256xf32> to vector<8x64xf32>
    %194 = arith.negf %193 : vector<8x64xf32>
    %195 = math.exp %194 : vector<8x64xf32>
    %cst_41 = arith.constant 1.000000e+00 : f32
    %196 = vector.broadcast %cst_41 : f32 to vector<8x64xf32>
    %197 = arith.addf %196, %195 : vector<8x64xf32>
    %198 = arith.divf %196, %197 : vector<8x64xf32>
    %199 = vector.extract_strided_slice %186 {offsets = [0, 128], sizes = [8, 64], strides = [1, 1]} : vector<8x256xf32> to vector<8x64xf32>
    %200 = math.tanh %199 : vector<8x64xf32>
    %201 = vector.extract_strided_slice %186 {offsets = [0, 192], sizes = [8, 64], strides = [1, 1]} : vector<8x256xf32> to vector<8x64xf32>
    %202 = arith.negf %201 : vector<8x64xf32>
    %203 = math.exp %202 : vector<8x64xf32>
    %cst_42 = arith.constant 1.000000e+00 : f32
    %204 = vector.broadcast %cst_42 : f32 to vector<8x64xf32>
    %205 = arith.addf %204, %203 : vector<8x64xf32>
    %206 = arith.divf %204, %205 : vector<8x64xf32>
    %207 = arith.mulf %198, %152 : vector<8x64xf32>
    %208 = arith.mulf %192, %200 : vector<8x64xf32>
    %209 = arith.addf %207, %208 : vector<8x64xf32>
    %210 = math.tanh %209 : vector<8x64xf32>
    %211 = arith.mulf %206, %210 : vector<8x64xf32>
    %212 = tpu.concatenate %211, %183 in 1 : vector<8x64xf32>, vector<8x64xf32> -> vector<8x128xf32>
    %cst_43 = arith.constant dense<0.000000e+00> : vector<8x256xf32>
    %213 = tpu.matmul %212, %1, %cst_43 {dimension_numbers = #tpu.dot_dimension_numbers<[1], [0], [0], [1], [0, 0, 1, 1], [], []>} : vector<8x128xf32>, vector<128x256xf32>, vector<8x256xf32> -> vector<8x256xf32>
    %214 = vector.broadcast %2 : vector<1x256xf32> to vector<8x256xf32>
    %215 = arith.addf %213, %214 : vector<8x256xf32>
    %216 = vector.extract_strided_slice %215 {offsets = [0, 0], sizes = [8, 64], strides = [1, 1]} : vector<8x256xf32> to vector<8x64xf32>
    %217 = arith.negf %216 : vector<8x64xf32>
    %218 = math.exp %217 : vector<8x64xf32>
    %cst_44 = arith.constant 1.000000e+00 : f32
    %219 = vector.broadcast %cst_44 : f32 to vector<8x64xf32>
    %220 = arith.addf %219, %218 : vector<8x64xf32>
    %221 = arith.divf %219, %220 : vector<8x64xf32>
    %222 = vector.extract_strided_slice %215 {offsets = [0, 64], sizes = [8, 64], strides = [1, 1]} : vector<8x256xf32> to vector<8x64xf32>
    %223 = arith.negf %222 : vector<8x64xf32>
    %224 = math.exp %223 : vector<8x64xf32>
    %cst_45 = arith.constant 1.000000e+00 : f32
    %225 = vector.broadcast %cst_45 : f32 to vector<8x64xf32>
    %226 = arith.addf %225, %224 : vector<8x64xf32>
    %227 = arith.divf %225, %226 : vector<8x64xf32>
    %228 = vector.extract_strided_slice %215 {offsets = [0, 128], sizes = [8, 64], strides = [1, 1]} : vector<8x256xf32> to vector<8x64xf32>
    %229 = math.tanh %228 : vector<8x64xf32>
    %230 = vector.extract_strided_slice %215 {offsets = [0, 192], sizes = [8, 64], strides = [1, 1]} : vector<8x256xf32> to vector<8x64xf32>
    %231 = arith.negf %230 : vector<8x64xf32>
    %232 = math.exp %231 : vector<8x64xf32>
    %cst_46 = arith.constant 1.000000e+00 : f32
    %233 = vector.broadcast %cst_46 : f32 to vector<8x64xf32>
    %234 = arith.addf %233, %232 : vector<8x64xf32>
    %235 = arith.divf %233, %234 : vector<8x64xf32>
    %236 = arith.mulf %227, %181 : vector<8x64xf32>
    %237 = arith.mulf %221, %229 : vector<8x64xf32>
    %238 = arith.addf %236, %237 : vector<8x64xf32>
    %239 = math.tanh %238 : vector<8x64xf32>
    %240 = arith.mulf %235, %239 : vector<8x64xf32>
    %241 = vector.extract_strided_slice %8 {offsets = [32, 0], sizes = [8, 256], strides = [1, 1]} : vector<80x256xf32> to vector<8x256xf32>
    %cst_47 = arith.constant dense<0.000000e+00> : vector<8x256xf32>
    %242 = tpu.matmul %211, %0, %cst_47 {dimension_numbers = #tpu.dot_dimension_numbers<[1], [0], [0], [1], [0, 0, 1, 1], [], []>} : vector<8x64xf32>, vector<64x256xf32>, vector<8x256xf32> -> vector<8x256xf32>
    %243 = arith.addf %241, %242 : vector<8x256xf32>
    %244 = vector.extract_strided_slice %243 {offsets = [0, 0], sizes = [8, 64], strides = [1, 1]} : vector<8x256xf32> to vector<8x64xf32>
    %245 = arith.negf %244 : vector<8x64xf32>
    %246 = math.exp %245 : vector<8x64xf32>
    %cst_48 = arith.constant 1.000000e+00 : f32
    %247 = vector.broadcast %cst_48 : f32 to vector<8x64xf32>
    %248 = arith.addf %247, %246 : vector<8x64xf32>
    %249 = arith.divf %247, %248 : vector<8x64xf32>
    %250 = vector.extract_strided_slice %243 {offsets = [0, 64], sizes = [8, 64], strides = [1, 1]} : vector<8x256xf32> to vector<8x64xf32>
    %251 = arith.negf %250 : vector<8x64xf32>
    %252 = math.exp %251 : vector<8x64xf32>
    %cst_49 = arith.constant 1.000000e+00 : f32
    %253 = vector.broadcast %cst_49 : f32 to vector<8x64xf32>
    %254 = arith.addf %253, %252 : vector<8x64xf32>
    %255 = arith.divf %253, %254 : vector<8x64xf32>
    %256 = vector.extract_strided_slice %243 {offsets = [0, 128], sizes = [8, 64], strides = [1, 1]} : vector<8x256xf32> to vector<8x64xf32>
    %257 = math.tanh %256 : vector<8x64xf32>
    %258 = vector.extract_strided_slice %243 {offsets = [0, 192], sizes = [8, 64], strides = [1, 1]} : vector<8x256xf32> to vector<8x64xf32>
    %259 = arith.negf %258 : vector<8x64xf32>
    %260 = math.exp %259 : vector<8x64xf32>
    %cst_50 = arith.constant 1.000000e+00 : f32
    %261 = vector.broadcast %cst_50 : f32 to vector<8x64xf32>
    %262 = arith.addf %261, %260 : vector<8x64xf32>
    %263 = arith.divf %261, %262 : vector<8x64xf32>
    %264 = arith.mulf %255, %209 : vector<8x64xf32>
    %265 = arith.mulf %249, %257 : vector<8x64xf32>
    %266 = arith.addf %264, %265 : vector<8x64xf32>
    %267 = math.tanh %266 : vector<8x64xf32>
    %268 = arith.mulf %263, %267 : vector<8x64xf32>
    %269 = tpu.concatenate %268, %240 in 1 : vector<8x64xf32>, vector<8x64xf32> -> vector<8x128xf32>
    %cst_51 = arith.constant dense<0.000000e+00> : vector<8x256xf32>
    %270 = tpu.matmul %269, %1, %cst_51 {dimension_numbers = #tpu.dot_dimension_numbers<[1], [0], [0], [1], [0, 0, 1, 1], [], []>} : vector<8x128xf32>, vector<128x256xf32>, vector<8x256xf32> -> vector<8x256xf32>
    %271 = vector.broadcast %2 : vector<1x256xf32> to vector<8x256xf32>
    %272 = arith.addf %270, %271 : vector<8x256xf32>
    %273 = vector.extract_strided_slice %272 {offsets = [0, 0], sizes = [8, 64], strides = [1, 1]} : vector<8x256xf32> to vector<8x64xf32>
    %274 = arith.negf %273 : vector<8x64xf32>
    %275 = math.exp %274 : vector<8x64xf32>
    %cst_52 = arith.constant 1.000000e+00 : f32
    %276 = vector.broadcast %cst_52 : f32 to vector<8x64xf32>
    %277 = arith.addf %276, %275 : vector<8x64xf32>
    %278 = arith.divf %276, %277 : vector<8x64xf32>
    %279 = vector.extract_strided_slice %272 {offsets = [0, 64], sizes = [8, 64], strides = [1, 1]} : vector<8x256xf32> to vector<8x64xf32>
    %280 = arith.negf %279 : vector<8x64xf32>
    %281 = math.exp %280 : vector<8x64xf32>
    %cst_53 = arith.constant 1.000000e+00 : f32
    %282 = vector.broadcast %cst_53 : f32 to vector<8x64xf32>
    %283 = arith.addf %282, %281 : vector<8x64xf32>
    %284 = arith.divf %282, %283 : vector<8x64xf32>
    %285 = vector.extract_strided_slice %272 {offsets = [0, 128], sizes = [8, 64], strides = [1, 1]} : vector<8x256xf32> to vector<8x64xf32>
    %286 = math.tanh %285 : vector<8x64xf32>
    %287 = vector.extract_strided_slice %272 {offsets = [0, 192], sizes = [8, 64], strides = [1, 1]} : vector<8x256xf32> to vector<8x64xf32>
    %288 = arith.negf %287 : vector<8x64xf32>
    %289 = math.exp %288 : vector<8x64xf32>
    %cst_54 = arith.constant 1.000000e+00 : f32
    %290 = vector.broadcast %cst_54 : f32 to vector<8x64xf32>
    %291 = arith.addf %290, %289 : vector<8x64xf32>
    %292 = arith.divf %290, %291 : vector<8x64xf32>
    %293 = arith.mulf %284, %238 : vector<8x64xf32>
    %294 = arith.mulf %278, %286 : vector<8x64xf32>
    %295 = arith.addf %293, %294 : vector<8x64xf32>
    %296 = math.tanh %295 : vector<8x64xf32>
    %297 = arith.mulf %292, %296 : vector<8x64xf32>
    %298 = vector.extract_strided_slice %8 {offsets = [40, 0], sizes = [8, 256], strides = [1, 1]} : vector<80x256xf32> to vector<8x256xf32>
    %cst_55 = arith.constant dense<0.000000e+00> : vector<8x256xf32>
    %299 = tpu.matmul %268, %0, %cst_55 {dimension_numbers = #tpu.dot_dimension_numbers<[1], [0], [0], [1], [0, 0, 1, 1], [], []>} : vector<8x64xf32>, vector<64x256xf32>, vector<8x256xf32> -> vector<8x256xf32>
    %300 = arith.addf %298, %299 : vector<8x256xf32>
    %301 = vector.extract_strided_slice %300 {offsets = [0, 0], sizes = [8, 64], strides = [1, 1]} : vector<8x256xf32> to vector<8x64xf32>
    %302 = arith.negf %301 : vector<8x64xf32>
    %303 = math.exp %302 : vector<8x64xf32>
    %cst_56 = arith.constant 1.000000e+00 : f32
    %304 = vector.broadcast %cst_56 : f32 to vector<8x64xf32>
    %305 = arith.addf %304, %303 : vector<8x64xf32>
    %306 = arith.divf %304, %305 : vector<8x64xf32>
    %307 = vector.extract_strided_slice %300 {offsets = [0, 64], sizes = [8, 64], strides = [1, 1]} : vector<8x256xf32> to vector<8x64xf32>
    %308 = arith.negf %307 : vector<8x64xf32>
    %309 = math.exp %308 : vector<8x64xf32>
    %cst_57 = arith.constant 1.000000e+00 : f32
    %310 = vector.broadcast %cst_57 : f32 to vector<8x64xf32>
    %311 = arith.addf %310, %309 : vector<8x64xf32>
    %312 = arith.divf %310, %311 : vector<8x64xf32>
    %313 = vector.extract_strided_slice %300 {offsets = [0, 128], sizes = [8, 64], strides = [1, 1]} : vector<8x256xf32> to vector<8x64xf32>
    %314 = math.tanh %313 : vector<8x64xf32>
    %315 = vector.extract_strided_slice %300 {offsets = [0, 192], sizes = [8, 64], strides = [1, 1]} : vector<8x256xf32> to vector<8x64xf32>
    %316 = arith.negf %315 : vector<8x64xf32>
    %317 = math.exp %316 : vector<8x64xf32>
    %cst_58 = arith.constant 1.000000e+00 : f32
    %318 = vector.broadcast %cst_58 : f32 to vector<8x64xf32>
    %319 = arith.addf %318, %317 : vector<8x64xf32>
    %320 = arith.divf %318, %319 : vector<8x64xf32>
    %321 = arith.mulf %312, %266 : vector<8x64xf32>
    %322 = arith.mulf %306, %314 : vector<8x64xf32>
    %323 = arith.addf %321, %322 : vector<8x64xf32>
    %324 = math.tanh %323 : vector<8x64xf32>
    %325 = arith.mulf %320, %324 : vector<8x64xf32>
    %326 = tpu.concatenate %325, %297 in 1 : vector<8x64xf32>, vector<8x64xf32> -> vector<8x128xf32>
    %cst_59 = arith.constant dense<0.000000e+00> : vector<8x256xf32>
    %327 = tpu.matmul %326, %1, %cst_59 {dimension_numbers = #tpu.dot_dimension_numbers<[1], [0], [0], [1], [0, 0, 1, 1], [], []>} : vector<8x128xf32>, vector<128x256xf32>, vector<8x256xf32> -> vector<8x256xf32>
    %328 = vector.broadcast %2 : vector<1x256xf32> to vector<8x256xf32>
    %329 = arith.addf %327, %328 : vector<8x256xf32>
    %330 = vector.extract_strided_slice %329 {offsets = [0, 0], sizes = [8, 64], strides = [1, 1]} : vector<8x256xf32> to vector<8x64xf32>
    %331 = arith.negf %330 : vector<8x64xf32>
    %332 = math.exp %331 : vector<8x64xf32>
    %cst_60 = arith.constant 1.000000e+00 : f32
    %333 = vector.broadcast %cst_60 : f32 to vector<8x64xf32>
    %334 = arith.addf %333, %332 : vector<8x64xf32>
    %335 = arith.divf %333, %334 : vector<8x64xf32>
    %336 = vector.extract_strided_slice %329 {offsets = [0, 64], sizes = [8, 64], strides = [1, 1]} : vector<8x256xf32> to vector<8x64xf32>
    %337 = arith.negf %336 : vector<8x64xf32>
    %338 = math.exp %337 : vector<8x64xf32>
    %cst_61 = arith.constant 1.000000e+00 : f32
    %339 = vector.broadcast %cst_61 : f32 to vector<8x64xf32>
    %340 = arith.addf %339, %338 : vector<8x64xf32>
    %341 = arith.divf %339, %340 : vector<8x64xf32>
    %342 = vector.extract_strided_slice %329 {offsets = [0, 128], sizes = [8, 64], strides = [1, 1]} : vector<8x256xf32> to vector<8x64xf32>
    %343 = math.tanh %342 : vector<8x64xf32>
    %344 = vector.extract_strided_slice %329 {offsets = [0, 192], sizes = [8, 64], strides = [1, 1]} : vector<8x256xf32> to vector<8x64xf32>
    %345 = arith.negf %344 : vector<8x64xf32>
    %346 = math.exp %345 : vector<8x64xf32>
    %cst_62 = arith.constant 1.000000e+00 : f32
    %347 = vector.broadcast %cst_62 : f32 to vector<8x64xf32>
    %348 = arith.addf %347, %346 : vector<8x64xf32>
    %349 = arith.divf %347, %348 : vector<8x64xf32>
    %350 = arith.mulf %341, %295 : vector<8x64xf32>
    %351 = arith.mulf %335, %343 : vector<8x64xf32>
    %352 = arith.addf %350, %351 : vector<8x64xf32>
    %353 = math.tanh %352 : vector<8x64xf32>
    %354 = arith.mulf %349, %353 : vector<8x64xf32>
    %355 = vector.extract_strided_slice %8 {offsets = [48, 0], sizes = [8, 256], strides = [1, 1]} : vector<80x256xf32> to vector<8x256xf32>
    %cst_63 = arith.constant dense<0.000000e+00> : vector<8x256xf32>
    %356 = tpu.matmul %325, %0, %cst_63 {dimension_numbers = #tpu.dot_dimension_numbers<[1], [0], [0], [1], [0, 0, 1, 1], [], []>} : vector<8x64xf32>, vector<64x256xf32>, vector<8x256xf32> -> vector<8x256xf32>
    %357 = arith.addf %355, %356 : vector<8x256xf32>
    %358 = vector.extract_strided_slice %357 {offsets = [0, 0], sizes = [8, 64], strides = [1, 1]} : vector<8x256xf32> to vector<8x64xf32>
    %359 = arith.negf %358 : vector<8x64xf32>
    %360 = math.exp %359 : vector<8x64xf32>
    %cst_64 = arith.constant 1.000000e+00 : f32
    %361 = vector.broadcast %cst_64 : f32 to vector<8x64xf32>
    %362 = arith.addf %361, %360 : vector<8x64xf32>
    %363 = arith.divf %361, %362 : vector<8x64xf32>
    %364 = vector.extract_strided_slice %357 {offsets = [0, 64], sizes = [8, 64], strides = [1, 1]} : vector<8x256xf32> to vector<8x64xf32>
    %365 = arith.negf %364 : vector<8x64xf32>
    %366 = math.exp %365 : vector<8x64xf32>
    %cst_65 = arith.constant 1.000000e+00 : f32
    %367 = vector.broadcast %cst_65 : f32 to vector<8x64xf32>
    %368 = arith.addf %367, %366 : vector<8x64xf32>
    %369 = arith.divf %367, %368 : vector<8x64xf32>
    %370 = vector.extract_strided_slice %357 {offsets = [0, 128], sizes = [8, 64], strides = [1, 1]} : vector<8x256xf32> to vector<8x64xf32>
    %371 = math.tanh %370 : vector<8x64xf32>
    %372 = vector.extract_strided_slice %357 {offsets = [0, 192], sizes = [8, 64], strides = [1, 1]} : vector<8x256xf32> to vector<8x64xf32>
    %373 = arith.negf %372 : vector<8x64xf32>
    %374 = math.exp %373 : vector<8x64xf32>
    %cst_66 = arith.constant 1.000000e+00 : f32
    %375 = vector.broadcast %cst_66 : f32 to vector<8x64xf32>
    %376 = arith.addf %375, %374 : vector<8x64xf32>
    %377 = arith.divf %375, %376 : vector<8x64xf32>
    %378 = arith.mulf %369, %323 : vector<8x64xf32>
    %379 = arith.mulf %363, %371 : vector<8x64xf32>
    %380 = arith.addf %378, %379 : vector<8x64xf32>
    %381 = math.tanh %380 : vector<8x64xf32>
    %382 = arith.mulf %377, %381 : vector<8x64xf32>
    %383 = tpu.concatenate %382, %354 in 1 : vector<8x64xf32>, vector<8x64xf32> -> vector<8x128xf32>
    %cst_67 = arith.constant dense<0.000000e+00> : vector<8x256xf32>
    %384 = tpu.matmul %383, %1, %cst_67 {dimension_numbers = #tpu.dot_dimension_numbers<[1], [0], [0], [1], [0, 0, 1, 1], [], []>} : vector<8x128xf32>, vector<128x256xf32>, vector<8x256xf32> -> vector<8x256xf32>
    %385 = vector.broadcast %2 : vector<1x256xf32> to vector<8x256xf32>
    %386 = arith.addf %384, %385 : vector<8x256xf32>
    %387 = vector.extract_strided_slice %386 {offsets = [0, 0], sizes = [8, 64], strides = [1, 1]} : vector<8x256xf32> to vector<8x64xf32>
    %388 = arith.negf %387 : vector<8x64xf32>
    %389 = math.exp %388 : vector<8x64xf32>
    %cst_68 = arith.constant 1.000000e+00 : f32
    %390 = vector.broadcast %cst_68 : f32 to vector<8x64xf32>
    %391 = arith.addf %390, %389 : vector<8x64xf32>
    %392 = arith.divf %390, %391 : vector<8x64xf32>
    %393 = vector.extract_strided_slice %386 {offsets = [0, 64], sizes = [8, 64], strides = [1, 1]} : vector<8x256xf32> to vector<8x64xf32>
    %394 = arith.negf %393 : vector<8x64xf32>
    %395 = math.exp %394 : vector<8x64xf32>
    %cst_69 = arith.constant 1.000000e+00 : f32
    %396 = vector.broadcast %cst_69 : f32 to vector<8x64xf32>
    %397 = arith.addf %396, %395 : vector<8x64xf32>
    %398 = arith.divf %396, %397 : vector<8x64xf32>
    %399 = vector.extract_strided_slice %386 {offsets = [0, 128], sizes = [8, 64], strides = [1, 1]} : vector<8x256xf32> to vector<8x64xf32>
    %400 = math.tanh %399 : vector<8x64xf32>
    %401 = vector.extract_strided_slice %386 {offsets = [0, 192], sizes = [8, 64], strides = [1, 1]} : vector<8x256xf32> to vector<8x64xf32>
    %402 = arith.negf %401 : vector<8x64xf32>
    %403 = math.exp %402 : vector<8x64xf32>
    %cst_70 = arith.constant 1.000000e+00 : f32
    %404 = vector.broadcast %cst_70 : f32 to vector<8x64xf32>
    %405 = arith.addf %404, %403 : vector<8x64xf32>
    %406 = arith.divf %404, %405 : vector<8x64xf32>
    %407 = arith.mulf %398, %352 : vector<8x64xf32>
    %408 = arith.mulf %392, %400 : vector<8x64xf32>
    %409 = arith.addf %407, %408 : vector<8x64xf32>
    %410 = math.tanh %409 : vector<8x64xf32>
    %411 = arith.mulf %406, %410 : vector<8x64xf32>
    %412 = vector.extract_strided_slice %8 {offsets = [56, 0], sizes = [8, 256], strides = [1, 1]} : vector<80x256xf32> to vector<8x256xf32>
    %cst_71 = arith.constant dense<0.000000e+00> : vector<8x256xf32>
    %413 = tpu.matmul %382, %0, %cst_71 {dimension_numbers = #tpu.dot_dimension_numbers<[1], [0], [0], [1], [0, 0, 1, 1], [], []>} : vector<8x64xf32>, vector<64x256xf32>, vector<8x256xf32> -> vector<8x256xf32>
    %414 = arith.addf %412, %413 : vector<8x256xf32>
    %415 = vector.extract_strided_slice %414 {offsets = [0, 0], sizes = [8, 64], strides = [1, 1]} : vector<8x256xf32> to vector<8x64xf32>
    %416 = arith.negf %415 : vector<8x64xf32>
    %417 = math.exp %416 : vector<8x64xf32>
    %cst_72 = arith.constant 1.000000e+00 : f32
    %418 = vector.broadcast %cst_72 : f32 to vector<8x64xf32>
    %419 = arith.addf %418, %417 : vector<8x64xf32>
    %420 = arith.divf %418, %419 : vector<8x64xf32>
    %421 = vector.extract_strided_slice %414 {offsets = [0, 64], sizes = [8, 64], strides = [1, 1]} : vector<8x256xf32> to vector<8x64xf32>
    %422 = arith.negf %421 : vector<8x64xf32>
    %423 = math.exp %422 : vector<8x64xf32>
    %cst_73 = arith.constant 1.000000e+00 : f32
    %424 = vector.broadcast %cst_73 : f32 to vector<8x64xf32>
    %425 = arith.addf %424, %423 : vector<8x64xf32>
    %426 = arith.divf %424, %425 : vector<8x64xf32>
    %427 = vector.extract_strided_slice %414 {offsets = [0, 128], sizes = [8, 64], strides = [1, 1]} : vector<8x256xf32> to vector<8x64xf32>
    %428 = math.tanh %427 : vector<8x64xf32>
    %429 = vector.extract_strided_slice %414 {offsets = [0, 192], sizes = [8, 64], strides = [1, 1]} : vector<8x256xf32> to vector<8x64xf32>
    %430 = arith.negf %429 : vector<8x64xf32>
    %431 = math.exp %430 : vector<8x64xf32>
    %cst_74 = arith.constant 1.000000e+00 : f32
    %432 = vector.broadcast %cst_74 : f32 to vector<8x64xf32>
    %433 = arith.addf %432, %431 : vector<8x64xf32>
    %434 = arith.divf %432, %433 : vector<8x64xf32>
    %435 = arith.mulf %426, %380 : vector<8x64xf32>
    %436 = arith.mulf %420, %428 : vector<8x64xf32>
    %437 = arith.addf %435, %436 : vector<8x64xf32>
    %438 = math.tanh %437 : vector<8x64xf32>
    %439 = arith.mulf %434, %438 : vector<8x64xf32>
    %440 = tpu.concatenate %439, %411 in 1 : vector<8x64xf32>, vector<8x64xf32> -> vector<8x128xf32>
    %cst_75 = arith.constant dense<0.000000e+00> : vector<8x256xf32>
    %441 = tpu.matmul %440, %1, %cst_75 {dimension_numbers = #tpu.dot_dimension_numbers<[1], [0], [0], [1], [0, 0, 1, 1], [], []>} : vector<8x128xf32>, vector<128x256xf32>, vector<8x256xf32> -> vector<8x256xf32>
    %442 = vector.broadcast %2 : vector<1x256xf32> to vector<8x256xf32>
    %443 = arith.addf %441, %442 : vector<8x256xf32>
    %444 = vector.extract_strided_slice %443 {offsets = [0, 0], sizes = [8, 64], strides = [1, 1]} : vector<8x256xf32> to vector<8x64xf32>
    %445 = arith.negf %444 : vector<8x64xf32>
    %446 = math.exp %445 : vector<8x64xf32>
    %cst_76 = arith.constant 1.000000e+00 : f32
    %447 = vector.broadcast %cst_76 : f32 to vector<8x64xf32>
    %448 = arith.addf %447, %446 : vector<8x64xf32>
    %449 = arith.divf %447, %448 : vector<8x64xf32>
    %450 = vector.extract_strided_slice %443 {offsets = [0, 64], sizes = [8, 64], strides = [1, 1]} : vector<8x256xf32> to vector<8x64xf32>
    %451 = arith.negf %450 : vector<8x64xf32>
    %452 = math.exp %451 : vector<8x64xf32>
    %cst_77 = arith.constant 1.000000e+00 : f32
    %453 = vector.broadcast %cst_77 : f32 to vector<8x64xf32>
    %454 = arith.addf %453, %452 : vector<8x64xf32>
    %455 = arith.divf %453, %454 : vector<8x64xf32>
    %456 = vector.extract_strided_slice %443 {offsets = [0, 128], sizes = [8, 64], strides = [1, 1]} : vector<8x256xf32> to vector<8x64xf32>
    %457 = math.tanh %456 : vector<8x64xf32>
    %458 = vector.extract_strided_slice %443 {offsets = [0, 192], sizes = [8, 64], strides = [1, 1]} : vector<8x256xf32> to vector<8x64xf32>
    %459 = arith.negf %458 : vector<8x64xf32>
    %460 = math.exp %459 : vector<8x64xf32>
    %cst_78 = arith.constant 1.000000e+00 : f32
    %461 = vector.broadcast %cst_78 : f32 to vector<8x64xf32>
    %462 = arith.addf %461, %460 : vector<8x64xf32>
    %463 = arith.divf %461, %462 : vector<8x64xf32>
    %464 = arith.mulf %455, %409 : vector<8x64xf32>
    %465 = arith.mulf %449, %457 : vector<8x64xf32>
    %466 = arith.addf %464, %465 : vector<8x64xf32>
    %467 = math.tanh %466 : vector<8x64xf32>
    %468 = arith.mulf %463, %467 : vector<8x64xf32>
    %469 = vector.extract_strided_slice %8 {offsets = [64, 0], sizes = [8, 256], strides = [1, 1]} : vector<80x256xf32> to vector<8x256xf32>
    %cst_79 = arith.constant dense<0.000000e+00> : vector<8x256xf32>
    %470 = tpu.matmul %439, %0, %cst_79 {dimension_numbers = #tpu.dot_dimension_numbers<[1], [0], [0], [1], [0, 0, 1, 1], [], []>} : vector<8x64xf32>, vector<64x256xf32>, vector<8x256xf32> -> vector<8x256xf32>
    %471 = arith.addf %469, %470 : vector<8x256xf32>
    %472 = vector.extract_strided_slice %471 {offsets = [0, 0], sizes = [8, 64], strides = [1, 1]} : vector<8x256xf32> to vector<8x64xf32>
    %473 = arith.negf %472 : vector<8x64xf32>
    %474 = math.exp %473 : vector<8x64xf32>
    %cst_80 = arith.constant 1.000000e+00 : f32
    %475 = vector.broadcast %cst_80 : f32 to vector<8x64xf32>
    %476 = arith.addf %475, %474 : vector<8x64xf32>
    %477 = arith.divf %475, %476 : vector<8x64xf32>
    %478 = vector.extract_strided_slice %471 {offsets = [0, 64], sizes = [8, 64], strides = [1, 1]} : vector<8x256xf32> to vector<8x64xf32>
    %479 = arith.negf %478 : vector<8x64xf32>
    %480 = math.exp %479 : vector<8x64xf32>
    %cst_81 = arith.constant 1.000000e+00 : f32
    %481 = vector.broadcast %cst_81 : f32 to vector<8x64xf32>
    %482 = arith.addf %481, %480 : vector<8x64xf32>
    %483 = arith.divf %481, %482 : vector<8x64xf32>
    %484 = vector.extract_strided_slice %471 {offsets = [0, 128], sizes = [8, 64], strides = [1, 1]} : vector<8x256xf32> to vector<8x64xf32>
    %485 = math.tanh %484 : vector<8x64xf32>
    %486 = vector.extract_strided_slice %471 {offsets = [0, 192], sizes = [8, 64], strides = [1, 1]} : vector<8x256xf32> to vector<8x64xf32>
    %487 = arith.negf %486 : vector<8x64xf32>
    %488 = math.exp %487 : vector<8x64xf32>
    %cst_82 = arith.constant 1.000000e+00 : f32
    %489 = vector.broadcast %cst_82 : f32 to vector<8x64xf32>
    %490 = arith.addf %489, %488 : vector<8x64xf32>
    %491 = arith.divf %489, %490 : vector<8x64xf32>
    %492 = arith.mulf %483, %437 : vector<8x64xf32>
    %493 = arith.mulf %477, %485 : vector<8x64xf32>
    %494 = arith.addf %492, %493 : vector<8x64xf32>
    %495 = math.tanh %494 : vector<8x64xf32>
    %496 = arith.mulf %491, %495 : vector<8x64xf32>
    %497 = tpu.concatenate %496, %468 in 1 : vector<8x64xf32>, vector<8x64xf32> -> vector<8x128xf32>
    %cst_83 = arith.constant dense<0.000000e+00> : vector<8x256xf32>
    %498 = tpu.matmul %497, %1, %cst_83 {dimension_numbers = #tpu.dot_dimension_numbers<[1], [0], [0], [1], [0, 0, 1, 1], [], []>} : vector<8x128xf32>, vector<128x256xf32>, vector<8x256xf32> -> vector<8x256xf32>
    %499 = vector.broadcast %2 : vector<1x256xf32> to vector<8x256xf32>
    %500 = arith.addf %498, %499 : vector<8x256xf32>
    %501 = vector.extract_strided_slice %500 {offsets = [0, 0], sizes = [8, 64], strides = [1, 1]} : vector<8x256xf32> to vector<8x64xf32>
    %502 = arith.negf %501 : vector<8x64xf32>
    %503 = math.exp %502 : vector<8x64xf32>
    %cst_84 = arith.constant 1.000000e+00 : f32
    %504 = vector.broadcast %cst_84 : f32 to vector<8x64xf32>
    %505 = arith.addf %504, %503 : vector<8x64xf32>
    %506 = arith.divf %504, %505 : vector<8x64xf32>
    %507 = vector.extract_strided_slice %500 {offsets = [0, 64], sizes = [8, 64], strides = [1, 1]} : vector<8x256xf32> to vector<8x64xf32>
    %508 = arith.negf %507 : vector<8x64xf32>
    %509 = math.exp %508 : vector<8x64xf32>
    %cst_85 = arith.constant 1.000000e+00 : f32
    %510 = vector.broadcast %cst_85 : f32 to vector<8x64xf32>
    %511 = arith.addf %510, %509 : vector<8x64xf32>
    %512 = arith.divf %510, %511 : vector<8x64xf32>
    %513 = vector.extract_strided_slice %500 {offsets = [0, 128], sizes = [8, 64], strides = [1, 1]} : vector<8x256xf32> to vector<8x64xf32>
    %514 = math.tanh %513 : vector<8x64xf32>
    %515 = vector.extract_strided_slice %500 {offsets = [0, 192], sizes = [8, 64], strides = [1, 1]} : vector<8x256xf32> to vector<8x64xf32>
    %516 = arith.negf %515 : vector<8x64xf32>
    %517 = math.exp %516 : vector<8x64xf32>
    %cst_86 = arith.constant 1.000000e+00 : f32
    %518 = vector.broadcast %cst_86 : f32 to vector<8x64xf32>
    %519 = arith.addf %518, %517 : vector<8x64xf32>
    %520 = arith.divf %518, %519 : vector<8x64xf32>
    %521 = arith.mulf %512, %466 : vector<8x64xf32>
    %522 = arith.mulf %506, %514 : vector<8x64xf32>
    %523 = arith.addf %521, %522 : vector<8x64xf32>
    %524 = math.tanh %523 : vector<8x64xf32>
    %525 = arith.mulf %520, %524 : vector<8x64xf32>
    %526 = vector.extract_strided_slice %8 {offsets = [72, 0], sizes = [8, 256], strides = [1, 1]} : vector<80x256xf32> to vector<8x256xf32>
    %cst_87 = arith.constant dense<0.000000e+00> : vector<8x256xf32>
    %527 = tpu.matmul %496, %0, %cst_87 {dimension_numbers = #tpu.dot_dimension_numbers<[1], [0], [0], [1], [0, 0, 1, 1], [], []>} : vector<8x64xf32>, vector<64x256xf32>, vector<8x256xf32> -> vector<8x256xf32>
    %528 = arith.addf %526, %527 : vector<8x256xf32>
    %529 = vector.extract_strided_slice %528 {offsets = [0, 0], sizes = [8, 64], strides = [1, 1]} : vector<8x256xf32> to vector<8x64xf32>
    %530 = arith.negf %529 : vector<8x64xf32>
    %531 = math.exp %530 : vector<8x64xf32>
    %cst_88 = arith.constant 1.000000e+00 : f32
    %532 = vector.broadcast %cst_88 : f32 to vector<8x64xf32>
    %533 = arith.addf %532, %531 : vector<8x64xf32>
    %534 = arith.divf %532, %533 : vector<8x64xf32>
    %535 = vector.extract_strided_slice %528 {offsets = [0, 64], sizes = [8, 64], strides = [1, 1]} : vector<8x256xf32> to vector<8x64xf32>
    %536 = arith.negf %535 : vector<8x64xf32>
    %537 = math.exp %536 : vector<8x64xf32>
    %cst_89 = arith.constant 1.000000e+00 : f32
    %538 = vector.broadcast %cst_89 : f32 to vector<8x64xf32>
    %539 = arith.addf %538, %537 : vector<8x64xf32>
    %540 = arith.divf %538, %539 : vector<8x64xf32>
    %541 = vector.extract_strided_slice %528 {offsets = [0, 128], sizes = [8, 64], strides = [1, 1]} : vector<8x256xf32> to vector<8x64xf32>
    %542 = math.tanh %541 : vector<8x64xf32>
    %543 = vector.extract_strided_slice %528 {offsets = [0, 192], sizes = [8, 64], strides = [1, 1]} : vector<8x256xf32> to vector<8x64xf32>
    %544 = arith.negf %543 : vector<8x64xf32>
    %545 = math.exp %544 : vector<8x64xf32>
    %cst_90 = arith.constant 1.000000e+00 : f32
    %546 = vector.broadcast %cst_90 : f32 to vector<8x64xf32>
    %547 = arith.addf %546, %545 : vector<8x64xf32>
    %548 = arith.divf %546, %547 : vector<8x64xf32>
    %549 = arith.mulf %540, %494 : vector<8x64xf32>
    %550 = arith.mulf %534, %542 : vector<8x64xf32>
    %551 = arith.addf %549, %550 : vector<8x64xf32>
    %552 = math.tanh %551 : vector<8x64xf32>
    %553 = arith.mulf %548, %552 : vector<8x64xf32>
    %554 = tpu.concatenate %553, %525 in 1 : vector<8x64xf32>, vector<8x64xf32> -> vector<8x128xf32>
    %cst_91 = arith.constant dense<0.000000e+00> : vector<8x256xf32>
    %555 = tpu.matmul %554, %1, %cst_91 {dimension_numbers = #tpu.dot_dimension_numbers<[1], [0], [0], [1], [0, 0, 1, 1], [], []>} : vector<8x128xf32>, vector<128x256xf32>, vector<8x256xf32> -> vector<8x256xf32>
    %556 = vector.broadcast %2 : vector<1x256xf32> to vector<8x256xf32>
    %557 = arith.addf %555, %556 : vector<8x256xf32>
    %558 = vector.extract_strided_slice %557 {offsets = [0, 0], sizes = [8, 64], strides = [1, 1]} : vector<8x256xf32> to vector<8x64xf32>
    %559 = arith.negf %558 : vector<8x64xf32>
    %560 = math.exp %559 : vector<8x64xf32>
    %cst_92 = arith.constant 1.000000e+00 : f32
    %561 = vector.broadcast %cst_92 : f32 to vector<8x64xf32>
    %562 = arith.addf %561, %560 : vector<8x64xf32>
    %563 = arith.divf %561, %562 : vector<8x64xf32>
    %564 = vector.extract_strided_slice %557 {offsets = [0, 64], sizes = [8, 64], strides = [1, 1]} : vector<8x256xf32> to vector<8x64xf32>
    %565 = arith.negf %564 : vector<8x64xf32>
    %566 = math.exp %565 : vector<8x64xf32>
    %cst_93 = arith.constant 1.000000e+00 : f32
    %567 = vector.broadcast %cst_93 : f32 to vector<8x64xf32>
    %568 = arith.addf %567, %566 : vector<8x64xf32>
    %569 = arith.divf %567, %568 : vector<8x64xf32>
    %570 = vector.extract_strided_slice %557 {offsets = [0, 128], sizes = [8, 64], strides = [1, 1]} : vector<8x256xf32> to vector<8x64xf32>
    %571 = math.tanh %570 : vector<8x64xf32>
    %572 = vector.extract_strided_slice %557 {offsets = [0, 192], sizes = [8, 64], strides = [1, 1]} : vector<8x256xf32> to vector<8x64xf32>
    %573 = arith.negf %572 : vector<8x64xf32>
    %574 = math.exp %573 : vector<8x64xf32>
    %cst_94 = arith.constant 1.000000e+00 : f32
    %575 = vector.broadcast %cst_94 : f32 to vector<8x64xf32>
    %576 = arith.addf %575, %574 : vector<8x64xf32>
    %577 = arith.divf %575, %576 : vector<8x64xf32>
    %578 = arith.mulf %569, %523 : vector<8x64xf32>
    %579 = arith.mulf %563, %571 : vector<8x64xf32>
    %580 = arith.addf %578, %579 : vector<8x64xf32>
    %581 = math.tanh %580 : vector<8x64xf32>
    %582 = arith.mulf %577, %581 : vector<8x64xf32>
    %c0_95 = arith.constant 0 : index
    %c0_96 = arith.constant 0 : index
    %583 = vector.load %arg6[%c0_95, %c0_96] : memref<64x1xf32, #tpu.memory_space<vmem>>, vector<64x1xf32>
    %cst_97 = arith.constant dense<0.000000e+00> : vector<8x1xf32>
    %584 = tpu.matmul %582, %583, %cst_97 {dimension_numbers = #tpu.dot_dimension_numbers<[1], [0], [0], [1], [0, 0, 1, 1], [], []>} : vector<8x64xf32>, vector<64x1xf32>, vector<8x1xf32> -> vector<8x1xf32>
    %c0_98 = arith.constant 0 : index
    %585 = memref.load %arg7[%c0_98] : memref<1xf32, #tpu.memory_space<smem>>
    %586 = vector.broadcast %585 : f32 to vector<8x1xf32>
    %587 = arith.addf %584, %586 : vector<8x1xf32>
    %c0_99 = arith.constant 0 : index
    %c0_100 = arith.constant 0 : index
    %588 = vector.load %arg8[%c0_99, %c0_100] : memref<8x1xf32, #tpu.memory_space<vmem>>, vector<8x1xf32>
    tpu.vector_store %arg8[%c0_99, %c0_100], %587 {strides = array<i32>} : memref<8x1xf32, #tpu.memory_space<vmem>>, vector<8x1xf32>,
    return
  }
}

</mosaic_0001>

<llo_original>
// kernel: tpu_custom_call.1
$region0: #{tpu_custom_call.1}
  #allocation0 [shape = 'u32[]', space=smem, size = 0x4, offset = 0x4, fixed_abs, tag = 'smem constant byte address 0x4 - core index']
  #allocation1 [shape = 'u32[144,128]{1,0:T(1,128)}', space=vmem, size = 0x12000, scoped, tag = 'internal scratch']
  #allocation2 [shape = 'f32[1]{0:T(128)S(6)}', space=smem, size = 0x200, scoped, tag = 'scoped memory for tpu_custom_call.1']
  %s0 = inlined_call_operand.vmem [shape: f32[80,6], index: 0, kind: input, shape index: {}]
  %s1 = inlined_call_operand.vmem [shape: f32[6,256], index: 1, kind: input, shape index: {}]
  %s2 = inlined_call_operand.vmem [shape: f32[64,256], index: 2, kind: input, shape index: {}]
  %s3 = inlined_call_operand.vmem [shape: f32[1,256], index: 3, kind: input, shape index: {}]
  %s4 = inlined_call_operand.hbm [shape: f32[128,256], index: 4, kind: input, shape index: {}]
  %s5 = inlined_call_operand.vmem [shape: f32[1,256], index: 5, kind: input, shape index: {}]
  %s6 = inlined_call_operand.vmem [shape: f32[64,1], index: 6, kind: input, shape index: {}]
  %s7 = inlined_call_operand.<no memory space> [shape: f32[1], index: 7, kind: input, shape index: {}]
  %s8 = inlined_call_operand.vmem [shape: f32[8,1], index: 8, kind: output, shape index: {}]
  %s9 = sld [smem:[#allocation0]]
  $region46: #{tpu_custom_call.1} parent=0
    _
  %s11 = ssub.s32 1, %s9
  %s12 = scalar_select 0, %s11, %s9
  %13 = sst [smem:[#allocation2]] %s7
  $region1: #{tpu_custom_call.1} parent=0
    #allocation3 [shape = 'u8[131072]{0}', space=vmem, size = 0x20000, scoped, tag = 'input window, operand 4, single buffered']
    #allocation4 [shape = 's32[1]{0}', space=sflag, size = 0x4, scoped, tag = 'scoped memory for tpu_custom_call.1']
    %14 = vsyncpa [#allocation4], 0
    // Predicated region
    $region2: #{tpu_custom_call.1} parent=1 // pred_check
      _
    $region3: #{tpu_custom_call.1} parent=1 // pred_check_branch
      %16 = sbr.rel (0) target = $region5
    $region4: #{tpu_custom_call.1} parent=1 // pred_region
      _
    $region5: #{tpu_custom_call.1} parent=1 // pred_fallthru
      _
    // Predicated region
    $region6: #{tpu_custom_call.1} parent=1 // pred_check
      _
    $region7: #{tpu_custom_call.1} parent=1 // pred_check_branch
      %18 = sbr.rel (0) target = $region9
    $region8: #{tpu_custom_call.1} parent=1 // pred_region
      _
    $region9: #{tpu_custom_call.1} parent=1 // pred_fallthru
      _
    // Predicated region
    $region10: #{tpu_custom_call.1} parent=1 // pred_check
      _
    $region11: #{tpu_custom_call.1} parent=1 // pred_check_branch
      %20 = sbr.rel (0) target = $region13
    $region12: #{tpu_custom_call.1} parent=1 // pred_region
      _
    $region13: #{tpu_custom_call.1} parent=1 // pred_fallthru
      _
    // Predicated region
    $region14: #{tpu_custom_call.1} parent=1 // pred_check
      _
    $region15: #{tpu_custom_call.1} parent=1 // pred_check_branch
      %22 = sbr.rel (0) target = $region17
    $region16: #{tpu_custom_call.1} parent=1 // pred_region
      _
    $region17: #{tpu_custom_call.1} parent=1 // pred_fallthru
      _
    // Predicated region
    $region18: #{tpu_custom_call.1} parent=1 // pred_check
      _
    $region19: #{tpu_custom_call.1} parent=1 // pred_check_branch
      %24 = sbr.rel (0) target = $region21
    $region20: #{tpu_custom_call.1} parent=1 // pred_region
      %s26 = ssub.s32 4096, 4096
      %27 = vsyncadd [#allocation4], %s26
      %s28 = sshll.u32 [#allocation3], 4
      %s29 = int_to_ptr.vmem [resolvable:$true] %s28
      %34 = dma.hbm_to_vmem [thread:$0]  %s4, 4096, %s29, [#allocation4], 256, 256, 16
    $region21: #{tpu_custom_call.1} parent=1 // pred_fallthru
      _
    // Predicated region
    $region22: #{tpu_custom_call.1} parent=1 // pred_check
      _
    $region23: #{tpu_custom_call.1} parent=1 // pred_check_branch
      %36 = sbr.rel (0) target = $region25
    $region24: #{tpu_custom_call.1} parent=1 // pred_region
      _
    $region25: #{tpu_custom_call.1} parent=1 // pred_fallthru
      _
    // Predicated region
    $region26: #{tpu_custom_call.1} parent=1 // pred_check
      _
    $region27: #{tpu_custom_call.1} parent=1 // pred_check_branch
      %38 = sbr.rel (0) target = $region29
    $region28: #{tpu_custom_call.1} parent=1 // pred_region
      _
    $region29: #{tpu_custom_call.1} parent=1 // pred_fallthru
      _
    // Predicated region
    $region30: #{tpu_custom_call.1} parent=1 // pred_check
      _
    $region31: #{tpu_custom_call.1} parent=1 // pred_check_branch
      %40 = sbr.rel (0) target = $region33
    $region32: #{tpu_custom_call.1} parent=1 // pred_region
      _
    $region33: #{tpu_custom_call.1} parent=1 // pred_fallthru
      _
    // Predicated region
    $region34: #{tpu_custom_call.1} parent=1 // pred_check
      _
    $region35: #{tpu_custom_call.1} parent=1 // pred_check_branch
      %42 = sbr.rel (0) target = $region37
    $region36: #{tpu_custom_call.1} parent=1 // pred_region
      %43 = dma.done [#allocation4], 4096
    $region37: #{tpu_custom_call.1} parent=1 // pred_fallthru
      _
    %v44 = vld [vmem:[%s2] sm:$0xff]
    %v45 = vld [vmem:[%s2 + $0x8] sm:$0xff]
    %v46 = vld [vmem:[%s2 + $0x10] sm:$0xff]
    %v47 = vld [vmem:[%s2 + $0x18] sm:$0xff]
    %v48 = vld [vmem:[%s2 + $0x20] sm:$0xff]
    %v49 = vld [vmem:[%s2 + $0x28] sm:$0xff]
    %v50 = vld [vmem:[%s2 + $0x30] sm:$0xff]
    %v51 = vld [vmem:[%s2 + $0x38] sm:$0xff]
    %v52 = vld [vmem:[%s2 + $0x40] sm:$0xff]
    %v53 = vld [vmem:[%s2 + $0x48] sm:$0xff]
    %v54 = vld [vmem:[%s2 + $0x50] sm:$0xff]
    %v55 = vld [vmem:[%s2 + $0x58] sm:$0xff]
    %v56 = vld [vmem:[%s2 + $0x60] sm:$0xff]
    %v57 = vld [vmem:[%s2 + $0x68] sm:$0xff]
    %v58 = vld [vmem:[%s2 + $0x70] sm:$0xff]
    %v59 = vld [vmem:[%s2 + $0x78] sm:$0xff]
    %v60 = vld [vmem:[#allocation3] sm:$0xff]
    %v61 = vld [vmem:[#allocation3 + $0x8] sm:$0xff]
    %v62 = vld [vmem:[#allocation3 + $0x10] sm:$0xff]
    %v63 = vld [vmem:[#allocation3 + $0x18] sm:$0xff]
    %v64 = vld [vmem:[#allocation3 + $0x20] sm:$0xff]
    %v65 = vld [vmem:[#allocation3 + $0x28] sm:$0xff]
    %v66 = vld [vmem:[#allocation3 + $0x30] sm:$0xff]
    %v67 = vld [vmem:[#allocation3 + $0x38] sm:$0xff]
    %v68 = vld [vmem:[#allocation3 + $0x40] sm:$0xff]
    %v69 = vld [vmem:[#allocation3 + $0x48] sm:$0xff]
    %v70 = vld [vmem:[#allocation3 + $0x50] sm:$0xff]
    %v71 = vld [vmem:[#allocation3 + $0x58] sm:$0xff]
    %v72 = vld [vmem:[#allocation3 + $0x60] sm:$0xff]
    %v73 = vld [vmem:[#allocation3 + $0x68] sm:$0xff]
    %v74 = vld [vmem:[#allocation3 + $0x70] sm:$0xff]
    %v75 = vld [vmem:[#allocation3 + $0x78] sm:$0xff]
    %v76 = vld [vmem:[#allocation3 + $0x80] sm:$0xff]
    %v77 = vld [vmem:[#allocation3 + $0x88] sm:$0xff]
    %v78 = vld [vmem:[#allocation3 + $0x90] sm:$0xff]
    %v79 = vld [vmem:[#allocation3 + $0x98] sm:$0xff]
    %v80 = vld [vmem:[#allocation3 + $0xa0] sm:$0xff]
    %v81 = vld [vmem:[#allocation3 + $0xa8] sm:$0xff]
    %v82 = vld [vmem:[#allocation3 + $0xb0] sm:$0xff]
    %v83 = vld [vmem:[#allocation3 + $0xb8] sm:$0xff]
    %v84 = vld [vmem:[#allocation3 + $0xc0] sm:$0xff]
    %v85 = vld [vmem:[#allocation3 + $0xc8] sm:$0xff]
    %v86 = vld [vmem:[#allocation3 + $0xd0] sm:$0xff]
    %v87 = vld [vmem:[#allocation3 + $0xd8] sm:$0xff]
    %v88 = vld [vmem:[#allocation3 + $0xe0] sm:$0xff]
    %v89 = vld [vmem:[#allocation3 + $0xe8] sm:$0xff]
    %v90 = vld [vmem:[#allocation3 + $0xf0] sm:$0xff]
    %v91 = vld [vmem:[#allocation3 + $0xf8] sm:$0xff]
    %v92 = vld [vmem:[%s5] sm:$0x3]
    %v93 = vld [vmem:[%s0] sm:$0xff]
    %v94 = vld [vmem:[%s0 + $0x8] sm:$0xff]
    %v95 = vld [vmem:[%s0 + $0x10] sm:$0xff]
    %v96 = vld [vmem:[%s0 + $0x18] sm:$0xff]
    %v97 = vld [vmem:[%s0 + $0x20] sm:$0xff]
    %v98 = vld [vmem:[%s0 + $0x28] sm:$0xff]
    %v99 = vld [vmem:[%s0 + $0x30] sm:$0xff]
    %v100 = vld [vmem:[%s0 + $0x38] sm:$0xff]
    %v101 = vld [vmem:[%s0 + $0x40] sm:$0xff]
    %v102 = vld [vmem:[%s0 + $0x48] sm:$0xff]
    %v103 = vld [vmem:[%s1] sm:$0x3f]
    %v104 = vld [vmem:[%s1 + $0x8] sm:$0x3f]
    %v105 = vld [vmem:[%s3] sm:$0x3]
    %v107 = vlaneseq
    %v108 = vshrl.u32 %v107, 7
    %v109 = vsub.s32 0, %v108
    %v110 = vrot.slane %v105, %v109
    %v111 = vlaneseq
    %v112 = vshrl.u32 %v111, 7
    %v113 = vsub.s32 1, %v112
    %v114 = vrot.slane %v105, %v113
    %vm117 = vcmask 48128
    %v119 = vsel %vm117, %v93, 0
    %v122 = vsel %vm117, %v94, 0
    %v125 = vsel %vm117, %v95, 0
    %v128 = vsel %vm117, %v96, 0
    %v131 = vsel %vm117, %v97, 0
    %v134 = vsel %vm117, %v98, 0
    %v137 = vsel %vm117, %v99, 0
    %v140 = vsel %vm117, %v100, 0
    %v143 = vsel %vm117, %v101, 0
    %v146 = vsel %vm117, %v102, 0
    %vm148 = vcmask 1045504
    %v150 = vsel %vm148, %v103, 0
    %v153 = vsel %vm148, %v104, 0
    %155 = vmatprep.subr.mxu0 %v153
    %156 = vmatpush1.msra.mxu0 %v150
    %157 = vmatprep.subr.mxu0 0.0
    %158 = vmatpush1.msra.mxu0 0.0
    %159 = vmatprep.subr.mxu0 0.0
    %160 = vmatpush1.msra.mxu0 0.0
    %161 = vmatprep.subr.mxu0 0.0
    %162 = vmatpush1.msra.mxu0 0.0
    %163 = vmatprep.subr.mxu0 0.0
    %164 = vmatpush1.msra.mxu0 0.0
    %165 = vmatprep.subr.mxu0 0.0
    %166 = vmatpush1.msra.mxu0 0.0
    %167 = vmatprep.subr.mxu0 0.0
    %168 = vmatpush1.msra.mxu0 0.0
    %169 = vmatprep.subr.mxu0 0.0
    %170 = vmatpush1.msra.mxu0 0.0
    %171 = vmatprep.subr.mxu0 0.0
    %172 = vmatpush1.msra.mxu0 0.0
    %173 = vmatprep.subr.mxu0 0.0
    %174 = vmatpush1.msra.mxu0 0.0
    %175 = vmatprep.subr.mxu0 0.0
    %176 = vmatpush1.msra.mxu0 0.0
    %177 = vmatprep.subr.mxu0 0.0
    %178 = vmatpush1.msra.mxu0 0.0
    %179 = vmatprep.subr.mxu0 0.0
    %180 = vmatpush1.msra.mxu0 0.0
    %181 = vmatprep.subr.mxu0 0.0
    %182 = vmatpush1.msra.mxu0 0.0
    %183 = vmatprep.subr.mxu0 0.0
    %184 = vmatpush1.msra.mxu0 0.0
    %185 = vmatprep.subr.mxu0 0.0
    %186 = vmatpush1.msra.mxu0 0.0
    %187 = vmatprep.subr.mxu0 0.0
    %188 = vmatpush1.msra.mxu0 0.0
    %189 = vmatprep.subr.mxu0 0.0
    %190 = vmatpush1.msra.mxu0 0.0
    %191 = vmatprep.subr.mxu0 0.0
    %192 = vmatpush1.msra.mxu0 0.0
    %193 = vmatprep.subr.mxu0 0.0
    %194 = vmatpush1.msra.mxu0 0.0
    %195 = vmatprep.subr.mxu0 0.0
    %196 = vmatpush1.msra.mxu0 0.0
    %197 = vmatprep.subr.mxu0 0.0
    %198 = vmatpush1.msra.mxu0 0.0
    %199 = vmatprep.subr.mxu0 0.0
    %200 = vmatpush1.msra.mxu0 0.0
    %201 = vmatprep.subr.mxu0 0.0
    %202 = vmatpush1.msra.mxu0 0.0
    %203 = vmatprep.subr.mxu0 0.0
    %204 = vmatpush1.msra.mxu0 0.0
    %205 = vmatprep.subr.mxu0 0.0
    %206 = vmatpush1.msra.mxu0 0.0
    %207 = vmatprep.subr.mxu0 0.0
    %208 = vmatpush1.msra.mxu0 0.0
    %209 = vmatprep.subr.mxu0 0.0
    %210 = vmatpush1.msra.mxu0 0.0
    %211 = vmatprep.subr.mxu0 0.0
    %212 = vmatpush1.msra.mxu0 0.0
    %213 = vmatprep.subr.mxu0 0.0
    %214 = vmatpush1.msra.mxu0 0.0
    %215 = vmatprep.subr.mxu0 0.0
    %216 = vmatpush1.msra.mxu0 0.0
    %217 = vmatprep.subr.mxu0 0.0
    %218 = vmatpush1.msra.mxu0 0.0
    %219 = vmatprep.mubr.f32.mxu0 0.0
    %220 = vmatmul.mubr.f32.gmra.mrb[0].mxu0 %v119
    %v221 = vpop.f32.mrb[0].mxu0
    %v222 = vadd.f32 %v110, %v221
    %v223 = vpop.f32.mrb[0].mxu0
    %v224 = vadd.f32 %v114, %v223
    %225 = vmatprep.mubr.f32.mxu0 0.0
    %226 = vmatmul.mubr.f32.gmra.mrb[0].mxu0 %v122
    %v227 = vpop.f32.mrb[0].mxu0
    %v228 = vadd.f32 %v110, %v227
    %v229 = vpop.f32.mrb[0].mxu0
    %v230 = vadd.f32 %v114, %v229
    %231 = vmatprep.mubr.f32.mxu0 0.0
    %232 = vmatmul.mubr.f32.gmra.mrb[0].mxu0 %v125
    %v233 = vpop.f32.mrb[0].mxu0
    %v234 = vadd.f32 %v110, %v233
    %v235 = vpop.f32.mrb[0].mxu0
    %v236 = vadd.f32 %v114, %v235
    %237 = vmatprep.mubr.f32.mxu0 0.0
    %238 = vmatmul.mubr.f32.gmra.mrb[0].mxu0 %v128
    %v239 = vpop.f32.mrb[0].mxu0
    %v240 = vadd.f32 %v110, %v239
    %v241 = vpop.f32.mrb[0].mxu0
    %v242 = vadd.f32 %v114, %v241
    %243 = vmatprep.mubr.f32.mxu0 0.0
    %244 = vmatmul.mubr.f32.gmra.mrb[0].mxu0 %v131
    %v245 = vpop.f32.mrb[0].mxu0
    %v246 = vadd.f32 %v110, %v245
    %v247 = vpop.f32.mrb[0].mxu0
    %v248 = vadd.f32 %v114, %v247
    %249 = vmatprep.mubr.f32.mxu0 0.0
    %250 = vmatmul.mubr.f32.gmra.mrb[0].mxu0 %v134
    %v251 = vpop.f32.mrb[0].mxu0
    %v252 = vadd.f32 %v110, %v251
    %v253 = vpop.f32.mrb[0].mxu0
    %v254 = vadd.f32 %v114, %v253
    %255 = vmatprep.mubr.f32.mxu0 0.0
    %256 = vmatmul.mubr.f32.gmra.mrb[0].mxu0 %v137
    %v257 = vpop.f32.mrb[0].mxu0
    %v258 = vadd.f32 %v110, %v257
    %v259 = vpop.f32.mrb[0].mxu0
    %v260 = vadd.f32 %v114, %v259
    %261 = vmatprep.mubr.f32.mxu0 0.0
    %262 = vmatmul.mubr.f32.gmra.mrb[0].mxu0 %v140
    %v263 = vpop.f32.mrb[0].mxu0
    %v264 = vadd.f32 %v110, %v263
    %v265 = vpop.f32.mrb[0].mxu0
    %v266 = vadd.f32 %v114, %v265
    %267 = vmatprep.mubr.f32.mxu0 0.0
    %268 = vmatmul.mubr.f32.gmra.mrb[0].mxu0 %v143
    %v269 = vpop.f32.mrb[0].mxu0
    %v270 = vadd.f32 %v110, %v269
    %v271 = vpop.f32.mrb[0].mxu0
    %v272 = vadd.f32 %v114, %v271
    %273 = vmatprep.mubr.f32.mxu0 0.0
    %274 = vmatmul.mubr.f32.gmra.mrb[0].mxu0 %v146
    %v275 = vpop.f32.mrb[0].mxu0
    %v276 = vadd.f32 %v110, %v275
    %v277 = vpop.f32.mrb[0].mxu0
    %v278 = vadd.f32 %v114, %v277
    %279 = vdwg.mxu0
    %vm280 = vcmask 523264
    %v282 = vsel %vm280, 0.0, 0
    %284 = vmatprep.subr.mxu0 %v45
    %285 = vmatpush1.msra.mxu0 %v44
    %286 = vmatprep.subr.mxu0 %v47
    %287 = vmatpush1.msra.mxu0 %v46
    %288 = vmatprep.subr.mxu0 %v49
    %289 = vmatpush1.msra.mxu0 %v48
    %290 = vmatprep.subr.mxu0 %v51
    %291 = vmatpush1.msra.mxu0 %v50
    %292 = vmatprep.subr.mxu0 %v53
    %293 = vmatpush1.msra.mxu0 %v52
    %294 = vmatprep.subr.mxu0 %v55
    %295 = vmatpush1.msra.mxu0 %v54
    %296 = vmatprep.subr.mxu0 %v57
    %297 = vmatpush1.msra.mxu0 %v56
    %298 = vmatprep.subr.mxu0 %v59
    %299 = vmatpush1.msra.mxu0 %v58
    %300 = vmatprep.subr.mxu0 0.0
    %301 = vmatpush1.msra.mxu0 0.0
    %302 = vmatprep.subr.mxu0 0.0
    %303 = vmatpush1.msra.mxu0 0.0
    %304 = vmatprep.subr.mxu0 0.0
    %305 = vmatpush1.msra.mxu0 0.0
    %306 = vmatprep.subr.mxu0 0.0
    %307 = vmatpush1.msra.mxu0 0.0
    %308 = vmatprep.subr.mxu0 0.0
    %309 = vmatpush1.msra.mxu0 0.0
    %310 = vmatprep.subr.mxu0 0.0
    %311 = vmatpush1.msra.mxu0 0.0
    %312 = vmatprep.subr.mxu0 0.0
    %313 = vmatpush1.msra.mxu0 0.0
    %314 = vmatprep.subr.mxu0 0.0
    %315 = vmatpush1.msra.mxu0 0.0
    %316 = vmatprep.subr.mxu0 0.0
    %317 = vmatpush1.msra.mxu0 0.0
    %318 = vmatprep.subr.mxu0 0.0
    %319 = vmatpush1.msra.mxu0 0.0
    %320 = vmatprep.subr.mxu0 0.0
    %321 = vmatpush1.msra.mxu0 0.0
    %322 = vmatprep.subr.mxu0 0.0
    %323 = vmatpush1.msra.mxu0 0.0
    %324 = vmatprep.subr.mxu0 0.0
    %325 = vmatpush1.msra.mxu0 0.0
    %326 = vmatprep.subr.mxu0 0.0
    %327 = vmatpush1.msra.mxu0 0.0
    %328 = vmatprep.subr.mxu0 0.0
    %329 = vmatpush1.msra.mxu0 0.0
    %330 = vmatprep.subr.mxu0 0.0
    %331 = vmatpush1.msra.mxu0 0.0
    %332 = vmatprep.subr.mxu0 0.0
    %333 = vmatpush1.msra.mxu0 0.0
    %334 = vmatprep.subr.mxu0 0.0
    %335 = vmatpush1.msra.mxu0 0.0
    %336 = vmatprep.subr.mxu0 0.0
    %337 = vmatpush1.msra.mxu0 0.0
    %338 = vmatprep.subr.mxu0 0.0
    %339 = vmatpush1.msra.mxu0 0.0
    %340 = vmatprep.subr.mxu0 0.0
    %341 = vmatpush1.msra.mxu0 0.0
    %342 = vmatprep.subr.mxu0 0.0
    %343 = vmatpush1.msra.mxu0 0.0
    %344 = vmatprep.subr.mxu0 0.0
    %345 = vmatpush1.msra.mxu0 0.0
    %346 = vmatprep.subr.mxu0 0.0
    %347 = vmatpush1.msra.mxu0 0.0
    %348 = vmatprep.mubr.f32.mxu0 0.0
    %349 = vmatmul.mubr.f32.gmra.mrb[0].mxu0 %v282
    %v350 = vpop.f32.mrb[0].mxu0
    %v351 = vadd.f32 0.0, %v350
    %v352 = vpop.f32.mrb[0].mxu0
    %v353 = vadd.f32 0.0, %v352
    %354 = vdwg.mxu0
    %v355 = vadd.f32 %v222, %v351
    %v356 = vadd.f32 %v224, %v353
    %v357 = vxor.u32 %v355, 2147483648
    %v358 = vmul.f32 %v357, 1.442695
    %v359 = vpow.pop %v358
    %v360 = vadd.f32 %v359, 1.0
    %v361 = vrcp.pop %v360
    %v362 = vmul.f32 1.0, %v361
    %v363 = vtanh.pop %v356
    %v364 = vxor.u32 %v356, 2147483648
    %v365 = vmul.f32 %v364, 1.442695
    %v366 = vpow.pop %v365
    %v367 = vadd.f32 %v366, 1.0
    %v368 = vrcp.pop %v367
    %v369 = vmul.f32 1.0, %v368
    %v370 = vmul.f32 %v362, 0.0
    %v371 = vmul.f32 %v362, %v363
    %373 = vrot.lane.b32.xlu0 %v371, 64
    %v374 = vpop.permute.xlu0 %373
    %v376 = vadd.f32 %v370, %v374
    %v377 = vtanh.pop %v376
    %v378 = vmul.f32 %v369, %v377
    %380 = vrot.lane.b32.xlu0 %v378, 64
    %v381 = vpop.permute.xlu0 %380
    %v383 = vsel %vm280, %v381, 0.0
    %v385 = vlaneseq
    %v386 = vshrl.u32 %v385, 7
    %v387 = vsub.s32 0, %v386
    %v388 = vrot.slane %v92, %v387
    %v389 = vlaneseq
    %v390 = vshrl.u32 %v389, 7
    %v391 = vsub.s32 1, %v390
    %v392 = vrot.slane %v92, %v391
    %395 = vmatprep.subr.mxu0 %v61
    %396 = vmatpush1.msra.mxu0 %v60
    %397 = vmatprep.subr.mxu0 %v63
    %398 = vmatpush1.msra.mxu0 %v62
    %399 = vmatprep.subr.mxu0 %v65
    %400 = vmatpush1.msra.mxu0 %v64
    %401 = vmatprep.subr.mxu0 %v67
    %402 = vmatpush1.msra.mxu0 %v66
    %403 = vmatprep.subr.mxu0 %v69
    %404 = vmatpush1.msra.mxu0 %v68
    %405 = vmatprep.subr.mxu0 %v71
    %406 = vmatpush1.msra.mxu0 %v70
    %407 = vmatprep.subr.mxu0 %v73
    %408 = vmatpush1.msra.mxu0 %v72
    %409 = vmatprep.subr.mxu0 %v75
    %410 = vmatpush1.msra.mxu0 %v74
    %411 = vmatprep.subr.mxu0 %v77
    %412 = vmatpush1.msra.mxu0 %v76
    %413 = vmatprep.subr.mxu0 %v79
    %414 = vmatpush1.msra.mxu0 %v78
    %415 = vmatprep.subr.mxu0 %v81
    %416 = vmatpush1.msra.mxu0 %v80
    %417 = vmatprep.subr.mxu0 %v83
    %418 = vmatpush1.msra.mxu0 %v82
    %419 = vmatprep.subr.mxu0 %v85
    %420 = vmatpush1.msra.mxu0 %v84
    %421 = vmatprep.subr.mxu0 %v87
    %422 = vmatpush1.msra.mxu0 %v86
    %423 = vmatprep.subr.mxu0 %v89
    %424 = vmatpush1.msra.mxu0 %v88
    %425 = vmatprep.subr.mxu0 %v91
    %426 = vmatpush1.msra.mxu0 %v90
    %427 = vmatprep.subr.mxu0 0.0
    %428 = vmatpush1.msra.mxu0 0.0
    %429 = vmatprep.subr.mxu0 0.0
    %430 = vmatpush1.msra.mxu0 0.0
    %431 = vmatprep.subr.mxu0 0.0
    %432 = vmatpush1.msra.mxu0 0.0
    %433 = vmatprep.subr.mxu0 0.0
    %434 = vmatpush1.msra.mxu0 0.0
    %435 = vmatprep.subr.mxu0 0.0
    %436 = vmatpush1.msra.mxu0 0.0
    %437 = vmatprep.subr.mxu0 0.0
    %438 = vmatpush1.msra.mxu0 0.0
    %439 = vmatprep.subr.mxu0 0.0
    %440 = vmatpush1.msra.mxu0 0.0
    %441 = vmatprep.subr.mxu0 0.0
    %442 = vmatpush1.msra.mxu0 0.0
    %443 = vmatprep.subr.mxu0 0.0
    %444 = vmatpush1.msra.mxu0 0.0
    %445 = vmatprep.subr.mxu0 0.0
    %446 = vmatpush1.msra.mxu0 0.0
    %447 = vmatprep.subr.mxu0 0.0
    %448 = vmatpush1.msra.mxu0 0.0
    %449 = vmatprep.subr.mxu0 0.0
    %450 = vmatpush1.msra.mxu0 0.0
    %451 = vmatprep.subr.mxu0 0.0
    %452 = vmatpush1.msra.mxu0 0.0
    %453 = vmatprep.subr.mxu0 0.0
    %454 = vmatpush1.msra.mxu0 0.0
    %455 = vmatprep.subr.mxu0 0.0
    %456 = vmatpush1.msra.mxu0 0.0
    %457 = vmatprep.subr.mxu0 0.0
    %458 = vmatpush1.msra.mxu0 0.0
    %459 = vmatprep.mubr.f32.mxu0 0.0
    %460 = vmatmul.mubr.f32.gmra.mrb[0].mxu0 %v383
    %v461 = vpop.f32.mrb[0].mxu0
    %v462 = vadd.f32 %v388, %v461
    %v463 = vpop.f32.mrb[0].mxu0
    %v464 = vadd.f32 %v392, %v463
    %465 = vdwg.mxu0
    %v466 = vxor.u32 %v462, 2147483648
    %v467 = vmul.f32 %v466, 1.442695
    %v468 = vpow.pop %v467
    %v469 = vadd.f32 %v468, 1.0
    %v470 = vrcp.pop %v469
    %v471 = vmul.f32 1.0, %v470
    %v472 = vtanh.pop %v464
    %v473 = vxor.u32 %v464, 2147483648
    %v474 = vmul.f32 %v473, 1.442695
    %v475 = vpow.pop %v474
    %v476 = vadd.f32 %v475, 1.0
    %v477 = vrcp.pop %v476
    %v478 = vmul.f32 1.0, %v477
    %v479 = vmul.f32 %v471, 0.0
    %v480 = vmul.f32 %v471, %v472
    %482 = vrot.lane.b32.xlu0 %v480, 64
    %v483 = vpop.permute.xlu0 %482
    %v485 = vadd.f32 %v479, %v483
    %v486 = vtanh.pop %v485
    %v487 = vmul.f32 %v478, %v486
    %v488 = vsel %vm280, %v381, 0
    %490 = vmatprep.subr.mxu0 %v45
    %491 = vmatpush1.msra.mxu0 %v44
    %492 = vmatprep.subr.mxu0 %v47
    %493 = vmatpush1.msra.mxu0 %v46
    %494 = vmatprep.subr.mxu0 %v49
    %495 = vmatpush1.msra.mxu0 %v48
    %496 = vmatprep.subr.mxu0 %v51
    %497 = vmatpush1.msra.mxu0 %v50
    %498 = vmatprep.subr.mxu0 %v53
    %499 = vmatpush1.msra.mxu0 %v52
    %500 = vmatprep.subr.mxu0 %v55
    %501 = vmatpush1.msra.mxu0 %v54
    %502 = vmatprep.subr.mxu0 %v57
    %503 = vmatpush1.msra.mxu0 %v56
    %504 = vmatprep.subr.mxu0 %v59
    %505 = vmatpush1.msra.mxu0 %v58
    %506 = vmatprep.subr.mxu0 0.0
    %507 = vmatpush1.msra.mxu0 0.0
    %508 = vmatprep.subr.mxu0 0.0
    %509 = vmatpush1.msra.mxu0 0.0
    %510 = vmatprep.subr.mxu0 0.0
    %511 = vmatpush1.msra.mxu0 0.0
    %512 = vmatprep.subr.mxu0 0.0
    %513 = vmatpush1.msra.mxu0 0.0
    %514 = vmatprep.subr.mxu0 0.0
    %515 = vmatpush1.msra.mxu0 0.0
    %516 = vmatprep.subr.mxu0 0.0
    %517 = vmatpush1.msra.mxu0 0.0
    %518 = vmatprep.subr.mxu0 0.0
    %519 = vmatpush1.msra.mxu0 0.0
    %520 = vmatprep.subr.mxu0 0.0
    %521 = vmatpush1.msra.mxu0 0.0
    %522 = vmatprep.subr.mxu0 0.0
    %523 = vmatpush1.msra.mxu0 0.0
    %524 = vmatprep.subr.mxu0 0.0
    %525 = vmatpush1.msra.mxu0 0.0
    %526 = vmatprep.subr.mxu0 0.0
    %527 = vmatpush1.msra.mxu0 0.0
    %528 = vmatprep.subr.mxu0 0.0
    %529 = vmatpush1.msra.mxu0 0.0
    %530 = vmatprep.subr.mxu0 0.0
    %531 = vmatpush1.msra.mxu0 0.0
    %532 = vmatprep.subr.mxu0 0.0
    %533 = vmatpush1.msra.mxu0 0.0
    %534 = vmatprep.subr.mxu0 0.0
    %535 = vmatpush1.msra.mxu0 0.0
    %536 = vmatprep.subr.mxu0 0.0
    %537 = vmatpush1.msra.mxu0 0.0
    %538 = vmatprep.subr.mxu0 0.0
    %539 = vmatpush1.msra.mxu0 0.0
    %540 = vmatprep.subr.mxu0 0.0
    %541 = vmatpush1.msra.mxu0 0.0
    %542 = vmatprep.subr.mxu0 0.0
    %543 = vmatpush1.msra.mxu0 0.0
    %544 = vmatprep.subr.mxu0 0.0
    %545 = vmatpush1.msra.mxu0 0.0
    %546 = vmatprep.subr.mxu0 0.0
    %547 = vmatpush1.msra.mxu0 0.0
    %548 = vmatprep.subr.mxu0 0.0
    %549 = vmatpush1.msra.mxu0 0.0
    %550 = vmatprep.subr.mxu0 0.0
    %551 = vmatpush1.msra.mxu0 0.0
    %552 = vmatprep.subr.mxu0 0.0
    %553 = vmatpush1.msra.mxu0 0.0
    %554 = vmatprep.mubr.f32.mxu0 0.0
    %555 = vmatmul.mubr.f32.gmra.mrb[0].mxu0 %v488
    %v556 = vpop.f32.mrb[0].mxu0
    %v557 = vadd.f32 0.0, %v556
    %v558 = vpop.f32.mrb[0].mxu0
    %v559 = vadd.f32 0.0, %v558
    %560 = vdwg.mxu0
    %v561 = vadd.f32 %v228, %v557
    %v562 = vadd.f32 %v230, %v559
    %v563 = vxor.u32 %v561, 2147483648
    %v564 = vmul.f32 %v563, 1.442695
    %v565 = vpow.pop %v564
    %v566 = vadd.f32 %v565, 1.0
    %v567 = vrcp.pop %v566
    %v568 = vmul.f32 1.0, %v567
    %v569 = vtanh.pop %v562
    %v570 = vxor.u32 %v562, 2147483648
    %v571 = vmul.f32 %v570, 1.442695
    %v572 = vpow.pop %v571
    %v573 = vadd.f32 %v572, 1.0
    %v574 = vrcp.pop %v573
    %v575 = vmul.f32 1.0, %v574
    %v576 = vmul.f32 %v568, %v376
    %v577 = vmul.f32 %v568, %v569
    %579 = vrot.lane.b32.xlu0 %v577, 64
    %v580 = vpop.permute.xlu0 %579
    %v582 = vadd.f32 %v576, %v580
    %v583 = vtanh.pop %v582
    %v584 = vmul.f32 %v575, %v583
    %586 = vrot.lane.b32.xlu0 %v584, 64
    %v587 = vpop.permute.xlu0 %586
    %v589 = vsel %vm280, %v587, %v487
    %590 = vmatprep.subr.mxu0 %v61
    %591 = vmatpush1.msra.mxu0 %v60
    %592 = vmatprep.subr.mxu0 %v63
    %593 = vmatpush1.msra.mxu0 %v62
    %594 = vmatprep.subr.mxu0 %v65
    %595 = vmatpush1.msra.mxu0 %v64
    %596 = vmatprep.subr.mxu0 %v67
    %597 = vmatpush1.msra.mxu0 %v66
    %598 = vmatprep.subr.mxu0 %v69
    %599 = vmatpush1.msra.mxu0 %v68
    %600 = vmatprep.subr.mxu0 %v71
    %601 = vmatpush1.msra.mxu0 %v70
    %602 = vmatprep.subr.mxu0 %v73
    %603 = vmatpush1.msra.mxu0 %v72
    %604 = vmatprep.subr.mxu0 %v75
    %605 = vmatpush1.msra.mxu0 %v74
    %606 = vmatprep.subr.mxu0 %v77
    %607 = vmatpush1.msra.mxu0 %v76
    %608 = vmatprep.subr.mxu0 %v79
    %609 = vmatpush1.msra.mxu0 %v78
    %610 = vmatprep.subr.mxu0 %v81
    %611 = vmatpush1.msra.mxu0 %v80
    %612 = vmatprep.subr.mxu0 %v83
    %613 = vmatpush1.msra.mxu0 %v82
    %614 = vmatprep.subr.mxu0 %v85
    %615 = vmatpush1.msra.mxu0 %v84
    %616 = vmatprep.subr.mxu0 %v87
    %617 = vmatpush1.msra.mxu0 %v86
    %618 = vmatprep.subr.mxu0 %v89
    %619 = vmatpush1.msra.mxu0 %v88
    %620 = vmatprep.subr.mxu0 %v91
    %621 = vmatpush1.msra.mxu0 %v90
    %622 = vmatprep.subr.mxu0 0.0
    %623 = vmatpush1.msra.mxu0 0.0
    %624 = vmatprep.subr.mxu0 0.0
    %625 = vmatpush1.msra.mxu0 0.0
    %626 = vmatprep.subr.mxu0 0.0
    %627 = vmatpush1.msra.mxu0 0.0
    %628 = vmatprep.subr.mxu0 0.0
    %629 = vmatpush1.msra.mxu0 0.0
    %630 = vmatprep.subr.mxu0 0.0
    %631 = vmatpush1.msra.mxu0 0.0
    %632 = vmatprep.subr.mxu0 0.0
    %633 = vmatpush1.msra.mxu0 0.0
    %634 = vmatprep.subr.mxu0 0.0
    %635 = vmatpush1.msra.mxu0 0.0
    %636 = vmatprep.subr.mxu0 0.0
    %637 = vmatpush1.msra.mxu0 0.0
    %638 = vmatprep.subr.mxu0 0.0
    %639 = vmatpush1.msra.mxu0 0.0
    %640 = vmatprep.subr.mxu0 0.0
    %641 = vmatpush1.msra.mxu0 0.0
    %642 = vmatprep.subr.mxu0 0.0
    %643 = vmatpush1.msra.mxu0 0.0
    %644 = vmatprep.subr.mxu0 0.0
    %645 = vmatpush1.msra.mxu0 0.0
    %646 = vmatprep.subr.mxu0 0.0
    %647 = vmatpush1.msra.mxu0 0.0
    %648 = vmatprep.subr.mxu0 0.0
    %649 = vmatpush1.msra.mxu0 0.0
    %650 = vmatprep.subr.mxu0 0.0
    %651 = vmatpush1.msra.mxu0 0.0
    %652 = vmatprep.subr.mxu0 0.0
    %653 = vmatpush1.msra.mxu0 0.0
    %654 = vmatprep.mubr.f32.mxu0 0.0
    %655 = vmatmul.mubr.f32.gmra.mrb[0].mxu0 %v589
    %v656 = vpop.f32.mrb[0].mxu0
    %v657 = vadd.f32 %v388, %v656
    %v658 = vpop.f32.mrb[0].mxu0
    %v659 = vadd.f32 %v392, %v658
    %660 = vdwg.mxu0
    %v661 = vxor.u32 %v657, 2147483648
    %v662 = vmul.f32 %v661, 1.442695
    %v663 = vpow.pop %v662
    %v664 = vadd.f32 %v663, 1.0
    %v665 = vrcp.pop %v664
    %v666 = vmul.f32 1.0, %v665
    %v667 = vtanh.pop %v659
    %v668 = vxor.u32 %v659, 2147483648
    %v669 = vmul.f32 %v668, 1.442695
    %v670 = vpow.pop %v669
    %v671 = vadd.f32 %v670, 1.0
    %v672 = vrcp.pop %v671
    %v673 = vmul.f32 1.0, %v672
    %v674 = vmul.f32 %v666, %v485
    %v675 = vmul.f32 %v666, %v667
    %677 = vrot.lane.b32.xlu0 %v675, 64
    %v678 = vpop.permute.xlu0 %677
    %v680 = vadd.f32 %v674, %v678
    %v681 = vtanh.pop %v680
    %v682 = vmul.f32 %v673, %v681
    %v683 = vsel %vm280, %v587, 0
    %685 = vmatprep.subr.mxu0 %v45
    %686 = vmatpush1.msra.mxu0 %v44
    %687 = vmatprep.subr.mxu0 %v47
    %688 = vmatpush1.msra.mxu0 %v46
    %689 = vmatprep.subr.mxu0 %v49
    %690 = vmatpush1.msra.mxu0 %v48
    %691 = vmatprep.subr.mxu0 %v51
    %692 = vmatpush1.msra.mxu0 %v50
    %693 = vmatprep.subr.mxu0 %v53
    %694 = vmatpush1.msra.mxu0 %v52
    %695 = vmatprep.subr.mxu0 %v55
    %696 = vmatpush1.msra.mxu0 %v54
    %697 = vmatprep.subr.mxu0 %v57
    %698 = vmatpush1.msra.mxu0 %v56
    %699 = vmatprep.subr.mxu0 %v59
    %700 = vmatpush1.msra.mxu0 %v58
    %701 = vmatprep.subr.mxu0 0.0
    %702 = vmatpush1.msra.mxu0 0.0
    %703 = vmatprep.subr.mxu0 0.0
    %704 = vmatpush1.msra.mxu0 0.0
    %705 = vmatprep.subr.mxu0 0.0
    %706 = vmatpush1.msra.mxu0 0.0
    %707 = vmatprep.subr.mxu0 0.0
    %708 = vmatpush1.msra.mxu0 0.0
    %709 = vmatprep.subr.mxu0 0.0
    %710 = vmatpush1.msra.mxu0 0.0
    %711 = vmatprep.subr.mxu0 0.0
    %712 = vmatpush1.msra.mxu0 0.0
    %713 = vmatprep.subr.mxu0 0.0
    %714 = vmatpush1.msra.mxu0 0.0
    %715 = vmatprep.subr.mxu0 0.0
    %716 = vmatpush1.msra.mxu0 0.0
    %717 = vmatprep.subr.mxu0 0.0
    %718 = vmatpush1.msra.mxu0 0.0
    %719 = vmatprep.subr.mxu0 0.0
    %720 = vmatpush1.msra.mxu0 0.0
    %721 = vmatprep.subr.mxu0 0.0
    %722 = vmatpush1.msra.mxu0 0.0
    %723 = vmatprep.subr.mxu0 0.0
    %724 = vmatpush1.msra.mxu0 0.0
    %725 = vmatprep.subr.mxu0 0.0
    %726 = vmatpush1.msra.mxu0 0.0
    %727 = vmatprep.subr.mxu0 0.0
    %728 = vmatpush1.msra.mxu0 0.0
    %729 = vmatprep.subr.mxu0 0.0
    %730 = vmatpush1.msra.mxu0 0.0
    %731 = vmatprep.subr.mxu0 0.0
    %732 = vmatpush1.msra.mxu0 0.0
    %733 = vmatprep.subr.mxu0 0.0
    %734 = vmatpush1.msra.mxu0 0.0
    %735 = vmatprep.subr.mxu0 0.0
    %736 = vmatpush1.msra.mxu0 0.0
    %737 = vmatprep.subr.mxu0 0.0
    %738 = vmatpush1.msra.mxu0 0.0
    %739 = vmatprep.subr.mxu0 0.0
    %740 = vmatpush1.msra.mxu0 0.0
    %741 = vmatprep.subr.mxu0 0.0
    %742 = vmatpush1.msra.mxu0 0.0
    %743 = vmatprep.subr.mxu0 0.0
    %744 = vmatpush1.msra.mxu0 0.0
    %745 = vmatprep.subr.mxu0 0.0
    %746 = vmatpush1.msra.mxu0 0.0
    %747 = vmatprep.subr.mxu0 0.0
    %748 = vmatpush1.msra.mxu0 0.0
    %749 = vmatprep.mubr.f32.mxu0 0.0
    %750 = vmatmul.mubr.f32.gmra.mrb[0].mxu0 %v683
    %v751 = vpop.f32.mrb[0].mxu0
    %v752 = vadd.f32 0.0, %v751
    %v753 = vpop.f32.mrb[0].mxu0
    %v754 = vadd.f32 0.0, %v753
    %755 = vdwg.mxu0
    %v756 = vadd.f32 %v234, %v752
    %v757 = vadd.f32 %v236, %v754
    %v758 = vxor.u32 %v756, 2147483648
    %v759 = vmul.f32 %v758, 1.442695
    %v760 = vpow.pop %v759
    %v761 = vadd.f32 %v760, 1.0
    %v762 = vrcp.pop %v761
    %v763 = vmul.f32 1.0, %v762
    %v764 = vtanh.pop %v757
    %v765 = vxor.u32 %v757, 2147483648
    %v766 = vmul.f32 %v765, 1.442695
    %v767 = vpow.pop %v766
    %v768 = vadd.f32 %v767, 1.0
    %v769 = vrcp.pop %v768
    %v770 = vmul.f32 1.0, %v769
    %v771 = vmul.f32 %v763, %v582
    %v772 = vmul.f32 %v763, %v764
    %774 = vrot.lane.b32.xlu0 %v772, 64
    %v775 = vpop.permute.xlu0 %774
    %v777 = vadd.f32 %v771, %v775
    %v778 = vtanh.pop %v777
    %v779 = vmul.f32 %v770, %v778
    %781 = vrot.lane.b32.xlu0 %v779, 64
    %v782 = vpop.permute.xlu0 %781
    %v784 = vsel %vm280, %v782, %v682
    %785 = vmatprep.subr.mxu0 %v61
    %786 = vmatpush1.msra.mxu0 %v60
    %787 = vmatprep.subr.mxu0 %v63
    %788 = vmatpush1.msra.mxu0 %v62
    %789 = vmatprep.subr.mxu0 %v65
    %790 = vmatpush1.msra.mxu0 %v64
    %791 = vmatprep.subr.mxu0 %v67
    %792 = vmatpush1.msra.mxu0 %v66
    %793 = vmatprep.subr.mxu0 %v69
    %794 = vmatpush1.msra.mxu0 %v68
    %795 = vmatprep.subr.mxu0 %v71
    %796 = vmatpush1.msra.mxu0 %v70
    %797 = vmatprep.subr.mxu0 %v73
    %798 = vmatpush1.msra.mxu0 %v72
    %799 = vmatprep.subr.mxu0 %v75
    %800 = vmatpush1.msra.mxu0 %v74
    %801 = vmatprep.subr.mxu0 %v77
    %802 = vmatpush1.msra.mxu0 %v76
    %803 = vmatprep.subr.mxu0 %v79
    %804 = vmatpush1.msra.mxu0 %v78
    %805 = vmatprep.subr.mxu0 %v81
    %806 = vmatpush1.msra.mxu0 %v80
    %807 = vmatprep.subr.mxu0 %v83
    %808 = vmatpush1.msra.mxu0 %v82
    %809 = vmatprep.subr.mxu0 %v85
    %810 = vmatpush1.msra.mxu0 %v84
    %811 = vmatprep.subr.mxu0 %v87
    %812 = vmatpush1.msra.mxu0 %v86
    %813 = vmatprep.subr.mxu0 %v89
    %814 = vmatpush1.msra.mxu0 %v88
    %815 = vmatprep.subr.mxu0 %v91
    %816 = vmatpush1.msra.mxu0 %v90
    %817 = vmatprep.subr.mxu0 0.0
    %818 = vmatpush1.msra.mxu0 0.0
    %819 = vmatprep.subr.mxu0 0.0
    %820 = vmatpush1.msra.mxu0 0.0
    %821 = vmatprep.subr.mxu0 0.0
    %822 = vmatpush1.msra.mxu0 0.0
    %823 = vmatprep.subr.mxu0 0.0
    %824 = vmatpush1.msra.mxu0 0.0
    %825 = vmatprep.subr.mxu0 0.0
    %826 = vmatpush1.msra.mxu0 0.0
    %827 = vmatprep.subr.mxu0 0.0
    %828 = vmatpush1.msra.mxu0 0.0
    %829 = vmatprep.subr.mxu0 0.0
    %830 = vmatpush1.msra.mxu0 0.0
    %831 = vmatprep.subr.mxu0 0.0
    %832 = vmatpush1.msra.mxu0 0.0
    %833 = vmatprep.subr.mxu0 0.0
    %834 = vmatpush1.msra.mxu0 0.0
    %835 = vmatprep.subr.mxu0 0.0
    %836 = vmatpush1.msra.mxu0 0.0
    %837 = vmatprep.subr.mxu0 0.0
    %838 = vmatpush1.msra.mxu0 0.0
    %839 = vmatprep.subr.mxu0 0.0
    %840 = vmatpush1.msra.mxu0 0.0
    %841 = vmatprep.subr.mxu0 0.0
    %842 = vmatpush1.msra.mxu0 0.0
    %843 = vmatprep.subr.mxu0 0.0
    %844 = vmatpush1.msra.mxu0 0.0
    %845 = vmatprep.subr.mxu0 0.0
    %846 = vmatpush1.msra.mxu0 0.0
    %847 = vmatprep.subr.mxu0 0.0
    %848 = vmatpush1.msra.mxu0 0.0
    %849 = vmatprep.mubr.f32.mxu0 0.0
    %850 = vmatmul.mubr.f32.gmra.mrb[0].mxu0 %v784
    %v851 = vpop.f32.mrb[0].mxu0
    %v852 = vadd.f32 %v388, %v851
    %v853 = vpop.f32.mrb[0].mxu0
    %v854 = vadd.f32 %v392, %v853
    %855 = vdwg.mxu0
    %v856 = vxor.u32 %v852, 2147483648
    %v857 = vmul.f32 %v856, 1.442695
    %v858 = vpow.pop %v857
    %v859 = vadd.f32 %v858, 1.0
    %v860 = vrcp.pop %v859
    %v861 = vmul.f32 1.0, %v860
    %v862 = vtanh.pop %v854
    %v863 = vxor.u32 %v854, 2147483648
    %v864 = vmul.f32 %v863, 1.442695
    %v865 = vpow.pop %v864
    %v866 = vadd.f32 %v865, 1.0
    %v867 = vrcp.pop %v866
    %v868 = vmul.f32 1.0, %v867
    %v869 = vmul.f32 %v861, %v680
    %v870 = vmul.f32 %v861, %v862
    %872 = vrot.lane.b32.xlu0 %v870, 64
    %v873 = vpop.permute.xlu0 %872
    %v875 = vadd.f32 %v869, %v873
    %v876 = vtanh.pop %v875
    %v877 = vmul.f32 %v868, %v876
    %v878 = vsel %vm280, %v782, 0
    %880 = vmatprep.subr.mxu0 %v45
    %881 = vmatpush1.msra.mxu0 %v44
    %882 = vmatprep.subr.mxu0 %v47
    %883 = vmatpush1.msra.mxu0 %v46
    %884 = vmatprep.subr.mxu0 %v49
    %885 = vmatpush1.msra.mxu0 %v48
    %886 = vmatprep.subr.mxu0 %v51
    %887 = vmatpush1.msra.mxu0 %v50
    %888 = vmatprep.subr.mxu0 %v53
    %889 = vmatpush1.msra.mxu0 %v52
    %890 = vmatprep.subr.mxu0 %v55
    %891 = vmatpush1.msra.mxu0 %v54
    %892 = vmatprep.subr.mxu0 %v57
    %893 = vmatpush1.msra.mxu0 %v56
    %894 = vmatprep.subr.mxu0 %v59
    %895 = vmatpush1.msra.mxu0 %v58
    %896 = vmatprep.subr.mxu0 0.0
    %897 = vmatpush1.msra.mxu0 0.0
    %898 = vmatprep.subr.mxu0 0.0
    %899 = vmatpush1.msra.mxu0 0.0
    %900 = vmatprep.subr.mxu0 0.0
    %901 = vmatpush1.msra.mxu0 0.0
    %902 = vmatprep.subr.mxu0 0.0
    %903 = vmatpush1.msra.mxu0 0.0
    %904 = vmatprep.subr.mxu0 0.0
    %905 = vmatpush1.msra.mxu0 0.0
    %906 = vmatprep.subr.mxu0 0.0
    %907 = vmatpush1.msra.mxu0 0.0
    %908 = vmatprep.subr.mxu0 0.0
    %909 = vmatpush1.msra.mxu0 0.0
    %910 = vmatprep.subr.mxu0 0.0
    %911 = vmatpush1.msra.mxu0 0.0
    %912 = vmatprep.subr.mxu0 0.0
    %913 = vmatpush1.msra.mxu0 0.0
    %914 = vmatprep.subr.mxu0 0.0
    %915 = vmatpush1.msra.mxu0 0.0
    %916 = vmatprep.subr.mxu0 0.0
    %917 = vmatpush1.msra.mxu0 0.0
    %918 = vmatprep.subr.mxu0 0.0
    %919 = vmatpush1.msra.mxu0 0.0
    %920 = vmatprep.subr.mxu0 0.0
    %921 = vmatpush1.msra.mxu0 0.0
    %922 = vmatprep.subr.mxu0 0.0
    %923 = vmatpush1.msra.mxu0 0.0
    %924 = vmatprep.subr.mxu0 0.0
    %925 = vmatpush1.msra.mxu0 0.0
    %926 = vmatprep.subr.mxu0 0.0
    %927 = vmatpush1.msra.mxu0 0.0
    %928 = vmatprep.subr.mxu0 0.0
    %929 = vmatpush1.msra.mxu0 0.0
    %930 = vmatprep.subr.mxu0 0.0
    %931 = vmatpush1.msra.mxu0 0.0
    %932 = vmatprep.subr.mxu0 0.0
    %933 = vmatpush1.msra.mxu0 0.0
    %934 = vmatprep.subr.mxu0 0.0
    %935 = vmatpush1.msra.mxu0 0.0
    %936 = vmatprep.subr.mxu0 0.0
    %937 = vmatpush1.msra.mxu0 0.0
    %938 = vmatprep.subr.mxu0 0.0
    %939 = vmatpush1.msra.mxu0 0.0
    %940 = vmatprep.subr.mxu0 0.0
    %941 = vmatpush1.msra.mxu0 0.0
    %942 = vmatprep.subr.mxu0 0.0
    %943 = vmatpush1.msra.mxu0 0.0
    %944 = vmatprep.mubr.f32.mxu0 0.0
    %945 = vmatmul.mubr.f32.gmra.mrb[0].mxu0 %v878
    %v946 = vpop.f32.mrb[0].mxu0
    %v947 = vadd.f32 0.0, %v946
    %v948 = vpop.f32.mrb[0].mxu0
    %v949 = vadd.f32 0.0, %v948
    %950 = vdwg.mxu0
    %v951 = vadd.f32 %v240, %v947
    %v952 = vadd.f32 %v242, %v949
    %v953 = vxor.u32 %v951, 2147483648
    %v954 = vmul.f32 %v953, 1.442695
    %v955 = vpow.pop %v954
    %v956 = vadd.f32 %v955, 1.0
    %v957 = vrcp.pop %v956
    %v958 = vmul.f32 1.0, %v957
    %v959 = vtanh.pop %v952
    %v960 = vxor.u32 %v952, 2147483648
    %v961 = vmul.f32 %v960, 1.442695
    %v962 = vpow.pop %v961
    %v963 = vadd.f32 %v962, 1.0
    %v964 = vrcp.pop %v963
    %v965 = vmul.f32 1.0, %v964
    %v966 = vmul.f32 %v958, %v777
    %v967 = vmul.f32 %v958, %v959
    %969 = vrot.lane.b32.xlu0 %v967, 64
    %v970 = vpop.permute.xlu0 %969
    %v972 = vadd.f32 %v966, %v970
    %v973 = vtanh.pop %v972
    %v974 = vmul.f32 %v965, %v973
    %976 = vrot.lane.b32.xlu0 %v974, 64
    %v977 = vpop.permute.xlu0 %976
    %v979 = vsel %vm280, %v977, %v877
    %980 = vmatprep.subr.mxu0 %v61
    %981 = vmatpush1.msra.mxu0 %v60
    %982 = vmatprep.subr.mxu0 %v63
    %983 = vmatpush1.msra.mxu0 %v62
    %984 = vmatprep.subr.mxu0 %v65
    %985 = vmatpush1.msra.mxu0 %v64
    %986 = vmatprep.subr.mxu0 %v67
    %987 = vmatpush1.msra.mxu0 %v66
    %988 = vmatprep.subr.mxu0 %v69
    %989 = vmatpush1.msra.mxu0 %v68
    %990 = vmatprep.subr.mxu0 %v71
    %991 = vmatpush1.msra.mxu0 %v70
    %992 = vmatprep.subr.mxu0 %v73
    %993 = vmatpush1.msra.mxu0 %v72
    %994 = vmatprep.subr.mxu0 %v75
    %995 = vmatpush1.msra.mxu0 %v74
    %996 = vmatprep.subr.mxu0 %v77
    %997 = vmatpush1.msra.mxu0 %v76
    %998 = vmatprep.subr.mxu0 %v79
    %999 = vmatpush1.msra.mxu0 %v78
    %1000 = vmatprep.subr.mxu0 %v81
    %1001 = vmatpush1.msra.mxu0 %v80
    %1002 = vmatprep.subr.mxu0 %v83
    %1003 = vmatpush1.msra.mxu0 %v82
    %1004 = vmatprep.subr.mxu0 %v85
    %1005 = vmatpush1.msra.mxu0 %v84
    %1006 = vmatprep.subr.mxu0 %v87
    %1007 = vmatpush1.msra.mxu0 %v86
    %1008 = vmatprep.subr.mxu0 %v89
    %1009 = vmatpush1.msra.mxu0 %v88
    %1010 = vmatprep.subr.mxu0 %v91
    %1011 = vmatpush1.msra.mxu0 %v90
    %1012 = vmatprep.subr.mxu0 0.0
    %1013 = vmatpush1.msra.mxu0 0.0
    %1014 = vmatprep.subr.mxu0 0.0
    %1015 = vmatpush1.msra.mxu0 0.0
    %1016 = vmatprep.subr.mxu0 0.0
    %1017 = vmatpush1.msra.mxu0 0.0
    %1018 = vmatprep.subr.mxu0 0.0
    %1019 = vmatpush1.msra.mxu0 0.0
    %1020 = vmatprep.subr.mxu0 0.0
    %1021 = vmatpush1.msra.mxu0 0.0
    %1022 = vmatprep.subr.mxu0 0.0
    %1023 = vmatpush1.msra.mxu0 0.0
    %1024 = vmatprep.subr.mxu0 0.0
    %1025 = vmatpush1.msra.mxu0 0.0
    %1026 = vmatprep.subr.mxu0 0.0
    %1027 = vmatpush1.msra.mxu0 0.0
    %1028 = vmatprep.subr.mxu0 0.0
    %1029 = vmatpush1.msra.mxu0 0.0
    %1030 = vmatprep.subr.mxu0 0.0
    %1031 = vmatpush1.msra.mxu0 0.0
    %1032 = vmatprep.subr.mxu0 0.0
    %1033 = vmatpush1.msra.mxu0 0.0
    %1034 = vmatprep.subr.mxu0 0.0
    %1035 = vmatpush1.msra.mxu0 0.0
    %1036 = vmatprep.subr.mxu0 0.0
    %1037 = vmatpush1.msra.mxu0 0.0
    %1038 = vmatprep.subr.mxu0 0.0
    %1039 = vmatpush1.msra.mxu0 0.0
    %1040 = vmatprep.subr.mxu0 0.0
    %1041 = vmatpush1.msra.mxu0 0.0
    %1042 = vmatprep.subr.mxu0 0.0
    %1043 = vmatpush1.msra.mxu0 0.0
    %1044 = vmatprep.mubr.f32.mxu0 0.0
    %1045 = vmatmul.mubr.f32.gmra.mrb[0].mxu0 %v979
    %v1046 = vpop.f32.mrb[0].mxu0
    %v1047 = vadd.f32 %v388, %v1046
    %v1048 = vpop.f32.mrb[0].mxu0
    %v1049 = vadd.f32 %v392, %v1048
    %1050 = vdwg.mxu0
    %v1051 = vxor.u32 %v1047, 2147483648
    %v1052 = vmul.f32 %v1051, 1.442695
    %v1053 = vpow.pop %v1052
    %v1054 = vadd.f32 %v1053, 1.0
    %v1055 = vrcp.pop %v1054
    %v1056 = vmul.f32 1.0, %v1055
    %v1057 = vtanh.pop %v1049
    %v1058 = vxor.u32 %v1049, 2147483648
    %v1059 = vmul.f32 %v1058, 1.442695
    %v1060 = vpow.pop %v1059
    %v1061 = vadd.f32 %v1060, 1.0
    %v1062 = vrcp.pop %v1061
    %v1063 = vmul.f32 1.0, %v1062
    %v1064 = vmul.f32 %v1056, %v875
    %v1065 = vmul.f32 %v1056, %v1057
    %1067 = vrot.lane.b32.xlu0 %v1065, 64
    %v1068 = vpop.permute.xlu0 %1067
    %v1070 = vadd.f32 %v1064, %v1068
    %v1071 = vtanh.pop %v1070
    %v1072 = vmul.f32 %v1063, %v1071
    %v1073 = vsel %vm280, %v977, 0
    %1075 = vmatprep.subr.mxu0 %v45
    %1076 = vmatpush1.msra.mxu0 %v44
    %1077 = vmatprep.subr.mxu0 %v47
    %1078 = vmatpush1.msra.mxu0 %v46
    %1079 = vmatprep.subr.mxu0 %v49
    %1080 = vmatpush1.msra.mxu0 %v48
    %1081 = vmatprep.subr.mxu0 %v51
    %1082 = vmatpush1.msra.mxu0 %v50
    %1083 = vmatprep.subr.mxu0 %v53
    %1084 = vmatpush1.msra.mxu0 %v52
    %1085 = vmatprep.subr.mxu0 %v55
    %1086 = vmatpush1.msra.mxu0 %v54
    %1087 = vmatprep.subr.mxu0 %v57
    %1088 = vmatpush1.msra.mxu0 %v56
    %1089 = vmatprep.subr.mxu0 %v59
    %1090 = vmatpush1.msra.mxu0 %v58
    %1091 = vmatprep.subr.mxu0 0.0
    %1092 = vmatpush1.msra.mxu0 0.0
    %1093 = vmatprep.subr.mxu0 0.0
    %1094 = vmatpush1.msra.mxu0 0.0
    %1095 = vmatprep.subr.mxu0 0.0
    %1096 = vmatpush1.msra.mxu0 0.0
    %1097 = vmatprep.subr.mxu0 0.0
    %1098 = vmatpush1.msra.mxu0 0.0
    %1099 = vmatprep.subr.mxu0 0.0
    %1100 = vmatpush1.msra.mxu0 0.0
    %1101 = vmatprep.subr.mxu0 0.0
    %1102 = vmatpush1.msra.mxu0 0.0
    %1103 = vmatprep.subr.mxu0 0.0
    %1104 = vmatpush1.msra.mxu0 0.0
    %1105 = vmatprep.subr.mxu0 0.0
    %1106 = vmatpush1.msra.mxu0 0.0
    %1107 = vmatprep.subr.mxu0 0.0
    %1108 = vmatpush1.msra.mxu0 0.0
    %1109 = vmatprep.subr.mxu0 0.0
    %1110 = vmatpush1.msra.mxu0 0.0
    %1111 = vmatprep.subr.mxu0 0.0
    %1112 = vmatpush1.msra.mxu0 0.0
    %1113 = vmatprep.subr.mxu0 0.0
    %1114 = vmatpush1.msra.mxu0 0.0
    %1115 = vmatprep.subr.mxu0 0.0
    %1116 = vmatpush1.msra.mxu0 0.0
    %1117 = vmatprep.subr.mxu0 0.0
    %1118 = vmatpush1.msra.mxu0 0.0
    %1119 = vmatprep.subr.mxu0 0.0
    %1120 = vmatpush1.msra.mxu0 0.0
    %1121 = vmatprep.subr.mxu0 0.0
    %1122 = vmatpush1.msra.mxu0 0.0
    %1123 = vmatprep.subr.mxu0 0.0
    %1124 = vmatpush1.msra.mxu0 0.0
    %1125 = vmatprep.subr.mxu0 0.0
    %1126 = vmatpush1.msra.mxu0 0.0
    %1127 = vmatprep.subr.mxu0 0.0
    %1128 = vmatpush1.msra.mxu0 0.0
    %1129 = vmatprep.subr.mxu0 0.0
    %1130 = vmatpush1.msra.mxu0 0.0
    %1131 = vmatprep.subr.mxu0 0.0
    %1132 = vmatpush1.msra.mxu0 0.0
    %1133 = vmatprep.subr.mxu0 0.0
    %1134 = vmatpush1.msra.mxu0 0.0
    %1135 = vmatprep.subr.mxu0 0.0
    %1136 = vmatpush1.msra.mxu0 0.0
    %1137 = vmatprep.subr.mxu0 0.0
    %1138 = vmatpush1.msra.mxu0 0.0
    %1139 = vmatprep.mubr.f32.mxu0 0.0
    %1140 = vmatmul.mubr.f32.gmra.mrb[0].mxu0 %v1073
    %v1141 = vpop.f32.mrb[0].mxu0
    %v1142 = vadd.f32 0.0, %v1141
    %v1143 = vpop.f32.mrb[0].mxu0
    %v1144 = vadd.f32 0.0, %v1143
    %1145 = vdwg.mxu0
    %v1146 = vadd.f32 %v246, %v1142
    %v1147 = vadd.f32 %v248, %v1144
    %v1148 = vxor.u32 %v1146, 2147483648
    %v1149 = vmul.f32 %v1148, 1.442695
    %v1150 = vpow.pop %v1149
    %v1151 = vadd.f32 %v1150, 1.0
    %v1152 = vrcp.pop %v1151
    %v1153 = vmul.f32 1.0, %v1152
    %v1154 = vtanh.pop %v1147
    %v1155 = vxor.u32 %v1147, 2147483648
    %v1156 = vmul.f32 %v1155, 1.442695
    %v1157 = vpow.pop %v1156
    %v1158 = vadd.f32 %v1157, 1.0
    %v1159 = vrcp.pop %v1158
    %v1160 = vmul.f32 1.0, %v1159
    %v1161 = vmul.f32 %v1153, %v972
    %v1162 = vmul.f32 %v1153, %v1154
    %1164 = vrot.lane.b32.xlu0 %v1162, 64
    %v1165 = vpop.permute.xlu0 %1164
    %v1167 = vadd.f32 %v1161, %v1165
    %v1168 = vtanh.pop %v1167
    %v1169 = vmul.f32 %v1160, %v1168
    %1171 = vrot.lane.b32.xlu0 %v1169, 64
    %v1172 = vpop.permute.xlu0 %1171
    %v1174 = vsel %vm280, %v1172, %v1072
    %1175 = vmatprep.subr.mxu0 %v61
    %1176 = vmatpush1.msra.mxu0 %v60
    %1177 = vmatprep.subr.mxu0 %v63
    %1178 = vmatpush1.msra.mxu0 %v62
    %1179 = vmatprep.subr.mxu0 %v65
    %1180 = vmatpush1.msra.mxu0 %v64
    %1181 = vmatprep.subr.mxu0 %v67
    %1182 = vmatpush1.msra.mxu0 %v66
    %1183 = vmatprep.subr.mxu0 %v69
    %1184 = vmatpush1.msra.mxu0 %v68
    %1185 = vmatprep.subr.mxu0 %v71
    %1186 = vmatpush1.msra.mxu0 %v70
    %1187 = vmatprep.subr.mxu0 %v73
    %1188 = vmatpush1.msra.mxu0 %v72
    %1189 = vmatprep.subr.mxu0 %v75
    %1190 = vmatpush1.msra.mxu0 %v74
    %1191 = vmatprep.subr.mxu0 %v77
    %1192 = vmatpush1.msra.mxu0 %v76
    %1193 = vmatprep.subr.mxu0 %v79
    %1194 = vmatpush1.msra.mxu0 %v78
    %1195 = vmatprep.subr.mxu0 %v81
    %1196 = vmatpush1.msra.mxu0 %v80
    %1197 = vmatprep.subr.mxu0 %v83
    %1198 = vmatpush1.msra.mxu0 %v82
    %1199 = vmatprep.subr.mxu0 %v85
    %1200 = vmatpush1.msra.mxu0 %v84
    %1201 = vmatprep.subr.mxu0 %v87
    %1202 = vmatpush1.msra.mxu0 %v86
    %1203 = vmatprep.subr.mxu0 %v89
    %1204 = vmatpush1.msra.mxu0 %v88
    %1205 = vmatprep.subr.mxu0 %v91
    %1206 = vmatpush1.msra.mxu0 %v90
    %1207 = vmatprep.subr.mxu0 0.0
    %1208 = vmatpush1.msra.mxu0 0.0
    %1209 = vmatprep.subr.mxu0 0.0
    %1210 = vmatpush1.msra.mxu0 0.0
    %1211 = vmatprep.subr.mxu0 0.0
    %1212 = vmatpush1.msra.mxu0 0.0
    %1213 = vmatprep.subr.mxu0 0.0
    %1214 = vmatpush1.msra.mxu0 0.0
    %1215 = vmatprep.subr.mxu0 0.0
    %1216 = vmatpush1.msra.mxu0 0.0
    %1217 = vmatprep.subr.mxu0 0.0
    %1218 = vmatpush1.msra.mxu0 0.0
    %1219 = vmatprep.subr.mxu0 0.0
    %1220 = vmatpush1.msra.mxu0 0.0
    %1221 = vmatprep.subr.mxu0 0.0
    %1222 = vmatpush1.msra.mxu0 0.0
    %1223 = vmatprep.subr.mxu0 0.0
    %1224 = vmatpush1.msra.mxu0 0.0
    %1225 = vmatprep.subr.mxu0 0.0
    %1226 = vmatpush1.msra.mxu0 0.0
    %1227 = vmatprep.subr.mxu0 0.0
    %1228 = vmatpush1.msra.mxu0 0.0
    %1229 = vmatprep.subr.mxu0 0.0
    %1230 = vmatpush1.msra.mxu0 0.0
    %1231 = vmatprep.subr.mxu0 0.0
    %1232 = vmatpush1.msra.mxu0 0.0
    %1233 = vmatprep.subr.mxu0 0.0
    %1234 = vmatpush1.msra.mxu0 0.0
    %1235 = vmatprep.subr.mxu0 0.0
    %1236 = vmatpush1.msra.mxu0 0.0
    %1237 = vmatprep.subr.mxu0 0.0
    %1238 = vmatpush1.msra.mxu0 0.0
    %1239 = vmatprep.mubr.f32.mxu0 0.0
    %1240 = vmatmul.mubr.f32.gmra.mrb[0].mxu0 %v1174
    %v1241 = vpop.f32.mrb[0].mxu0
    %v1242 = vadd.f32 %v388, %v1241
    %v1243 = vpop.f32.mrb[0].mxu0
    %v1244 = vadd.f32 %v392, %v1243
    %1245 = vdwg.mxu0
    %v1246 = vxor.u32 %v1242, 2147483648
    %v1247 = vmul.f32 %v1246, 1.442695
    %v1248 = vpow.pop %v1247
    %v1249 = vadd.f32 %v1248, 1.0
    %v1250 = vrcp.pop %v1249
    %v1251 = vmul.f32 1.0, %v1250
    %v1252 = vtanh.pop %v1244
    %v1253 = vxor.u32 %v1244, 2147483648
    %v1254 = vmul.f32 %v1253, 1.442695
    %v1255 = vpow.pop %v1254
    %v1256 = vadd.f32 %v1255, 1.0
    %v1257 = vrcp.pop %v1256
    %v1258 = vmul.f32 1.0, %v1257
    %v1259 = vmul.f32 %v1251, %v1070
    %v1260 = vmul.f32 %v1251, %v1252
    %1262 = vrot.lane.b32.xlu0 %v1260, 64
    %v1263 = vpop.permute.xlu0 %1262
    %v1265 = vadd.f32 %v1259, %v1263
    %v1266 = vtanh.pop %v1265
    %v1267 = vmul.f32 %v1258, %v1266
    %v1268 = vsel %vm280, %v1172, 0
    %1270 = vmatprep.subr.mxu0 %v45
    %1271 = vmatpush1.msra.mxu0 %v44
    %1272 = vmatprep.subr.mxu0 %v47
    %1273 = vmatpush1.msra.mxu0 %v46
    %1274 = vmatprep.subr.mxu0 %v49
    %1275 = vmatpush1.msra.mxu0 %v48
    %1276 = vmatprep.subr.mxu0 %v51
    %1277 = vmatpush1.msra.mxu0 %v50
    %1278 = vmatprep.subr.mxu0 %v53
    %1279 = vmatpush1.msra.mxu0 %v52
    %1280 = vmatprep.subr.mxu0 %v55
    %1281 = vmatpush1.msra.mxu0 %v54
    %1282 = vmatprep.subr.mxu0 %v57
    %1283 = vmatpush1.msra.mxu0 %v56
    %1284 = vmatprep.subr.mxu0 %v59
    %1285 = vmatpush1.msra.mxu0 %v58
    %1286 = vmatprep.subr.mxu0 0.0
    %1287 = vmatpush1.msra.mxu0 0.0
    %1288 = vmatprep.subr.mxu0 0.0
    %1289 = vmatpush1.msra.mxu0 0.0
    %1290 = vmatprep.subr.mxu0 0.0
    %1291 = vmatpush1.msra.mxu0 0.0
    %1292 = vmatprep.subr.mxu0 0.0
    %1293 = vmatpush1.msra.mxu0 0.0
    %1294 = vmatprep.subr.mxu0 0.0
    %1295 = vmatpush1.msra.mxu0 0.0
    %1296 = vmatprep.subr.mxu0 0.0
    %1297 = vmatpush1.msra.mxu0 0.0
    %1298 = vmatprep.subr.mxu0 0.0
    %1299 = vmatpush1.msra.mxu0 0.0
    %1300 = vmatprep.subr.mxu0 0.0
    %1301 = vmatpush1.msra.mxu0 0.0
    %1302 = vmatprep.subr.mxu0 0.0
    %1303 = vmatpush1.msra.mxu0 0.0
    %1304 = vmatprep.subr.mxu0 0.0
    %1305 = vmatpush1.msra.mxu0 0.0
    %1306 = vmatprep.subr.mxu0 0.0
    %1307 = vmatpush1.msra.mxu0 0.0
    %1308 = vmatprep.subr.mxu0 0.0
    %1309 = vmatpush1.msra.mxu0 0.0
    %1310 = vmatprep.subr.mxu0 0.0
    %1311 = vmatpush1.msra.mxu0 0.0
    %1312 = vmatprep.subr.mxu0 0.0
    %1313 = vmatpush1.msra.mxu0 0.0
    %1314 = vmatprep.subr.mxu0 0.0
    %1315 = vmatpush1.msra.mxu0 0.0
    %1316 = vmatprep.subr.mxu0 0.0
    %1317 = vmatpush1.msra.mxu0 0.0
    %1318 = vmatprep.subr.mxu0 0.0
    %1319 = vmatpush1.msra.mxu0 0.0
    %1320 = vmatprep.subr.mxu0 0.0
    %1321 = vmatpush1.msra.mxu0 0.0
    %1322 = vmatprep.subr.mxu0 0.0
    %1323 = vmatpush1.msra.mxu0 0.0
    %1324 = vmatprep.subr.mxu0 0.0
    %1325 = vmatpush1.msra.mxu0 0.0
    %1326 = vmatprep.subr.mxu0 0.0
    %1327 = vmatpush1.msra.mxu0 0.0
    %1328 = vmatprep.subr.mxu0 0.0
    %1329 = vmatpush1.msra.mxu0 0.0
    %1330 = vmatprep.subr.mxu0 0.0
    %1331 = vmatpush1.msra.mxu0 0.0
    %1332 = vmatprep.subr.mxu0 0.0
    %1333 = vmatpush1.msra.mxu0 0.0
    %1334 = vmatprep.mubr.f32.mxu0 0.0
    %1335 = vmatmul.mubr.f32.gmra.mrb[0].mxu0 %v1268
    %v1336 = vpop.f32.mrb[0].mxu0
    %v1337 = vadd.f32 0.0, %v1336
    %v1338 = vpop.f32.mrb[0].mxu0
    %v1339 = vadd.f32 0.0, %v1338
    %1340 = vdwg.mxu0
    %v1341 = vadd.f32 %v252, %v1337
    %v1342 = vadd.f32 %v254, %v1339
    %v1343 = vxor.u32 %v1341, 2147483648
    %v1344 = vmul.f32 %v1343, 1.442695
    %v1345 = vpow.pop %v1344
    %v1346 = vadd.f32 %v1345, 1.0
    %v1347 = vrcp.pop %v1346
    %v1348 = vmul.f32 1.0, %v1347
    %v1349 = vtanh.pop %v1342
    %v1350 = vxor.u32 %v1342, 2147483648
    %v1351 = vmul.f32 %v1350, 1.442695
    %v1352 = vpow.pop %v1351
    %v1353 = vadd.f32 %v1352, 1.0
    %v1354 = vrcp.pop %v1353
    %v1355 = vmul.f32 1.0, %v1354
    %v1356 = vmul.f32 %v1348, %v1167
    %v1357 = vmul.f32 %v1348, %v1349
    %1359 = vrot.lane.b32.xlu0 %v1357, 64
    %v1360 = vpop.permute.xlu0 %1359
    %v1362 = vadd.f32 %v1356, %v1360
    %v1363 = vtanh.pop %v1362
    %v1364 = vmul.f32 %v1355, %v1363
    %1366 = vrot.lane.b32.xlu0 %v1364, 64
    %v1367 = vpop.permute.xlu0 %1366
    %v1369 = vsel %vm280, %v1367, %v1267
    %1370 = vmatprep.subr.mxu0 %v61
    %1371 = vmatpush1.msra.mxu0 %v60
    %1372 = vmatprep.subr.mxu0 %v63
    %1373 = vmatpush1.msra.mxu0 %v62
    %1374 = vmatprep.subr.mxu0 %v65
    %1375 = vmatpush1.msra.mxu0 %v64
    %1376 = vmatprep.subr.mxu0 %v67
    %1377 = vmatpush1.msra.mxu0 %v66
    %1378 = vmatprep.subr.mxu0 %v69
    %1379 = vmatpush1.msra.mxu0 %v68
    %1380 = vmatprep.subr.mxu0 %v71
    %1381 = vmatpush1.msra.mxu0 %v70
    %1382 = vmatprep.subr.mxu0 %v73
    %1383 = vmatpush1.msra.mxu0 %v72
    %1384 = vmatprep.subr.mxu0 %v75
    %1385 = vmatpush1.msra.mxu0 %v74
    %1386 = vmatprep.subr.mxu0 %v77
    %1387 = vmatpush1.msra.mxu0 %v76
    %1388 = vmatprep.subr.mxu0 %v79
    %1389 = vmatpush1.msra.mxu0 %v78
    %1390 = vmatprep.subr.mxu0 %v81
    %1391 = vmatpush1.msra.mxu0 %v80
    %1392 = vmatprep.subr.mxu0 %v83
    %1393 = vmatpush1.msra.mxu0 %v82
    %1394 = vmatprep.subr.mxu0 %v85
    %1395 = vmatpush1.msra.mxu0 %v84
    %1396 = vmatprep.subr.mxu0 %v87
    %1397 = vmatpush1.msra.mxu0 %v86
    %1398 = vmatprep.subr.mxu0 %v89
    %1399 = vmatpush1.msra.mxu0 %v88
    %1400 = vmatprep.subr.mxu0 %v91
    %1401 = vmatpush1.msra.mxu0 %v90
    %1402 = vmatprep.subr.mxu0 0.0
    %1403 = vmatpush1.msra.mxu0 0.0
    %1404 = vmatprep.subr.mxu0 0.0
    %1405 = vmatpush1.msra.mxu0 0.0
    %1406 = vmatprep.subr.mxu0 0.0
    %1407 = vmatpush1.msra.mxu0 0.0
    %1408 = vmatprep.subr.mxu0 0.0
    %1409 = vmatpush1.msra.mxu0 0.0
    %1410 = vmatprep.subr.mxu0 0.0
    %1411 = vmatpush1.msra.mxu0 0.0
    %1412 = vmatprep.subr.mxu0 0.0
    %1413 = vmatpush1.msra.mxu0 0.0
    %1414 = vmatprep.subr.mxu0 0.0
    %1415 = vmatpush1.msra.mxu0 0.0
    %1416 = vmatprep.subr.mxu0 0.0
    %1417 = vmatpush1.msra.mxu0 0.0
    %1418 = vmatprep.subr.mxu0 0.0
    %1419 = vmatpush1.msra.mxu0 0.0
    %1420 = vmatprep.subr.mxu0 0.0
    %1421 = vmatpush1.msra.mxu0 0.0
    %1422 = vmatprep.subr.mxu0 0.0
    %1423 = vmatpush1.msra.mxu0 0.0
    %1424 = vmatprep.subr.mxu0 0.0
    %1425 = vmatpush1.msra.mxu0 0.0
    %1426 = vmatprep.subr.mxu0 0.0
    %1427 = vmatpush1.msra.mxu0 0.0
    %1428 = vmatprep.subr.mxu0 0.0
    %1429 = vmatpush1.msra.mxu0 0.0
    %1430 = vmatprep.subr.mxu0 0.0
    %1431 = vmatpush1.msra.mxu0 0.0
    %1432 = vmatprep.subr.mxu0 0.0
    %1433 = vmatpush1.msra.mxu0 0.0
    %1434 = vmatprep.mubr.f32.mxu0 0.0
    %1435 = vmatmul.mubr.f32.gmra.mrb[0].mxu0 %v1369
    %v1436 = vpop.f32.mrb[0].mxu0
    %v1437 = vadd.f32 %v388, %v1436
    %v1438 = vpop.f32.mrb[0].mxu0
    %v1439 = vadd.f32 %v392, %v1438
    %1440 = vdwg.mxu0
    %v1441 = vxor.u32 %v1437, 2147483648
    %v1442 = vmul.f32 %v1441, 1.442695
    %v1443 = vpow.pop %v1442
    %v1444 = vadd.f32 %v1443, 1.0
    %v1445 = vrcp.pop %v1444
    %v1446 = vmul.f32 1.0, %v1445
    %v1447 = vtanh.pop %v1439
    %v1448 = vxor.u32 %v1439, 2147483648
    %v1449 = vmul.f32 %v1448, 1.442695
    %v1450 = vpow.pop %v1449
    %v1451 = vadd.f32 %v1450, 1.0
    %v1452 = vrcp.pop %v1451
    %v1453 = vmul.f32 1.0, %v1452
    %v1454 = vmul.f32 %v1446, %v1265
    %v1455 = vmul.f32 %v1446, %v1447
    %1457 = vrot.lane.b32.xlu0 %v1455, 64
    %v1458 = vpop.permute.xlu0 %1457
    %v1460 = vadd.f32 %v1454, %v1458
    %v1461 = vtanh.pop %v1460
    %v1462 = vmul.f32 %v1453, %v1461
    %v1463 = vsel %vm280, %v1367, 0
    %1465 = vmatprep.subr.mxu0 %v45
    %1466 = vmatpush1.msra.mxu0 %v44
    %1467 = vmatprep.subr.mxu0 %v47
    %1468 = vmatpush1.msra.mxu0 %v46
    %1469 = vmatprep.subr.mxu0 %v49
    %1470 = vmatpush1.msra.mxu0 %v48
    %1471 = vmatprep.subr.mxu0 %v51
    %1472 = vmatpush1.msra.mxu0 %v50
    %1473 = vmatprep.subr.mxu0 %v53
    %1474 = vmatpush1.msra.mxu0 %v52
    %1475 = vmatprep.subr.mxu0 %v55
    %1476 = vmatpush1.msra.mxu0 %v54
    %1477 = vmatprep.subr.mxu0 %v57
    %1478 = vmatpush1.msra.mxu0 %v56
    %1479 = vmatprep.subr.mxu0 %v59
    %1480 = vmatpush1.msra.mxu0 %v58
    %1481 = vmatprep.subr.mxu0 0.0
    %1482 = vmatpush1.msra.mxu0 0.0
    %1483 = vmatprep.subr.mxu0 0.0
    %1484 = vmatpush1.msra.mxu0 0.0
    %1485 = vmatprep.subr.mxu0 0.0
    %1486 = vmatpush1.msra.mxu0 0.0
    %1487 = vmatprep.subr.mxu0 0.0
    %1488 = vmatpush1.msra.mxu0 0.0
    %1489 = vmatprep.subr.mxu0 0.0
    %1490 = vmatpush1.msra.mxu0 0.0
    %1491 = vmatprep.subr.mxu0 0.0
    %1492 = vmatpush1.msra.mxu0 0.0
    %1493 = vmatprep.subr.mxu0 0.0
    %1494 = vmatpush1.msra.mxu0 0.0
    %1495 = vmatprep.subr.mxu0 0.0
    %1496 = vmatpush1.msra.mxu0 0.0
    %1497 = vmatprep.subr.mxu0 0.0
    %1498 = vmatpush1.msra.mxu0 0.0
    %1499 = vmatprep.subr.mxu0 0.0
    %1500 = vmatpush1.msra.mxu0 0.0
    %1501 = vmatprep.subr.mxu0 0.0
    %1502 = vmatpush1.msra.mxu0 0.0
    %1503 = vmatprep.subr.mxu0 0.0
    %1504 = vmatpush1.msra.mxu0 0.0
    %1505 = vmatprep.subr.mxu0 0.0
    %1506 = vmatpush1.msra.mxu0 0.0
    %1507 = vmatprep.subr.mxu0 0.0
    %1508 = vmatpush1.msra.mxu0 0.0
    %1509 = vmatprep.subr.mxu0 0.0
    %1510 = vmatpush1.msra.mxu0 0.0
    %1511 = vmatprep.subr.mxu0 0.0
    %1512 = vmatpush1.msra.mxu0 0.0
    %1513 = vmatprep.subr.mxu0 0.0
    %1514 = vmatpush1.msra.mxu0 0.0
    %1515 = vmatprep.subr.mxu0 0.0
    %1516 = vmatpush1.msra.mxu0 0.0
    %1517 = vmatprep.subr.mxu0 0.0
    %1518 = vmatpush1.msra.mxu0 0.0
    %1519 = vmatprep.subr.mxu0 0.0
    %1520 = vmatpush1.msra.mxu0 0.0
    %1521 = vmatprep.subr.mxu0 0.0
    %1522 = vmatpush1.msra.mxu0 0.0
    %1523 = vmatprep.subr.mxu0 0.0
    %1524 = vmatpush1.msra.mxu0 0.0
    %1525 = vmatprep.subr.mxu0 0.0
    %1526 = vmatpush1.msra.mxu0 0.0
    %1527 = vmatprep.subr.mxu0 0.0
    %1528 = vmatpush1.msra.mxu0 0.0
    %1529 = vmatprep.mubr.f32.mxu0 0.0
    %1530 = vmatmul.mubr.f32.gmra.mrb[0].mxu0 %v1463
    %v1531 = vpop.f32.mrb[0].mxu0
    %v1532 = vadd.f32 0.0, %v1531
    %v1533 = vpop.f32.mrb[0].mxu0
    %v1534 = vadd.f32 0.0, %v1533
    %1535 = vdwg.mxu0
    %v1536 = vadd.f32 %v258, %v1532
    %v1537 = vadd.f32 %v260, %v1534
    %v1538 = vxor.u32 %v1536, 2147483648
    %v1539 = vmul.f32 %v1538, 1.442695
    %v1540 = vpow.pop %v1539
    %v1541 = vadd.f32 %v1540, 1.0
    %v1542 = vrcp.pop %v1541
    %v1543 = vmul.f32 1.0, %v1542
    %v1544 = vtanh.pop %v1537
    %v1545 = vxor.u32 %v1537, 2147483648
    %v1546 = vmul.f32 %v1545, 1.442695
    %v1547 = vpow.pop %v1546
    %v1548 = vadd.f32 %v1547, 1.0
    %v1549 = vrcp.pop %v1548
    %v1550 = vmul.f32 1.0, %v1549
    %v1551 = vmul.f32 %v1543, %v1362
    %v1552 = vmul.f32 %v1543, %v1544
    %1554 = vrot.lane.b32.xlu0 %v1552, 64
    %v1555 = vpop.permute.xlu0 %1554
    %v1557 = vadd.f32 %v1551, %v1555
    %v1558 = vtanh.pop %v1557
    %v1559 = vmul.f32 %v1550, %v1558
    %1561 = vrot.lane.b32.xlu0 %v1559, 64
    %v1562 = vpop.permute.xlu0 %1561
    %v1564 = vsel %vm280, %v1562, %v1462
    %1565 = vmatprep.subr.mxu0 %v61
    %1566 = vmatpush1.msra.mxu0 %v60
    %1567 = vmatprep.subr.mxu0 %v63
    %1568 = vmatpush1.msra.mxu0 %v62
    %1569 = vmatprep.subr.mxu0 %v65
    %1570 = vmatpush1.msra.mxu0 %v64
    %1571 = vmatprep.subr.mxu0 %v67
    %1572 = vmatpush1.msra.mxu0 %v66
    %1573 = vmatprep.subr.mxu0 %v69
    %1574 = vmatpush1.msra.mxu0 %v68
    %1575 = vmatprep.subr.mxu0 %v71
    %1576 = vmatpush1.msra.mxu0 %v70
    %1577 = vmatprep.subr.mxu0 %v73
    %1578 = vmatpush1.msra.mxu0 %v72
    %1579 = vmatprep.subr.mxu0 %v75
    %1580 = vmatpush1.msra.mxu0 %v74
    %1581 = vmatprep.subr.mxu0 %v77
    %1582 = vmatpush1.msra.mxu0 %v76
    %1583 = vmatprep.subr.mxu0 %v79
    %1584 = vmatpush1.msra.mxu0 %v78
    %1585 = vmatprep.subr.mxu0 %v81
    %1586 = vmatpush1.msra.mxu0 %v80
    %1587 = vmatprep.subr.mxu0 %v83
    %1588 = vmatpush1.msra.mxu0 %v82
    %1589 = vmatprep.subr.mxu0 %v85
    %1590 = vmatpush1.msra.mxu0 %v84
    %1591 = vmatprep.subr.mxu0 %v87
    %1592 = vmatpush1.msra.mxu0 %v86
    %1593 = vmatprep.subr.mxu0 %v89
    %1594 = vmatpush1.msra.mxu0 %v88
    %1595 = vmatprep.subr.mxu0 %v91
    %1596 = vmatpush1.msra.mxu0 %v90
    %1597 = vmatprep.subr.mxu0 0.0
    %1598 = vmatpush1.msra.mxu0 0.0
    %1599 = vmatprep.subr.mxu0 0.0
    %1600 = vmatpush1.msra.mxu0 0.0
    %1601 = vmatprep.subr.mxu0 0.0
    %1602 = vmatpush1.msra.mxu0 0.0
    %1603 = vmatprep.subr.mxu0 0.0
    %1604 = vmatpush1.msra.mxu0 0.0
    %1605 = vmatprep.subr.mxu0 0.0
    %1606 = vmatpush1.msra.mxu0 0.0
    %1607 = vmatprep.subr.mxu0 0.0
    %1608 = vmatpush1.msra.mxu0 0.0
    %1609 = vmatprep.subr.mxu0 0.0
    %1610 = vmatpush1.msra.mxu0 0.0
    %1611 = vmatprep.subr.mxu0 0.0
    %1612 = vmatpush1.msra.mxu0 0.0
    %1613 = vmatprep.subr.mxu0 0.0
    %1614 = vmatpush1.msra.mxu0 0.0
    %1615 = vmatprep.subr.mxu0 0.0
    %1616 = vmatpush1.msra.mxu0 0.0
    %1617 = vmatprep.subr.mxu0 0.0
    %1618 = vmatpush1.msra.mxu0 0.0
    %1619 = vmatprep.subr.mxu0 0.0
    %1620 = vmatpush1.msra.mxu0 0.0
    %1621 = vmatprep.subr.mxu0 0.0
    %1622 = vmatpush1.msra.mxu0 0.0
    %1623 = vmatprep.subr.mxu0 0.0
    %1624 = vmatpush1.msra.mxu0 0.0
    %1625 = vmatprep.subr.mxu0 0.0
    %1626 = vmatpush1.msra.mxu0 0.0
    %1627 = vmatprep.subr.mxu0 0.0
    %1628 = vmatpush1.msra.mxu0 0.0
    %1629 = vmatprep.mubr.f32.mxu0 0.0
    %1630 = vmatmul.mubr.f32.gmra.mrb[0].mxu0 %v1564
    %v1631 = vpop.f32.mrb[0].mxu0
    %v1632 = vadd.f32 %v388, %v1631
    %v1633 = vpop.f32.mrb[0].mxu0
    %v1634 = vadd.f32 %v392, %v1633
    %1635 = vdwg.mxu0
    %v1636 = vxor.u32 %v1632, 2147483648
    %v1637 = vmul.f32 %v1636, 1.442695
    %v1638 = vpow.pop %v1637
    %v1639 = vadd.f32 %v1638, 1.0
    %v1640 = vrcp.pop %v1639
    %v1641 = vmul.f32 1.0, %v1640
    %v1642 = vtanh.pop %v1634
    %v1643 = vxor.u32 %v1634, 2147483648
    %v1644 = vmul.f32 %v1643, 1.442695
    %v1645 = vpow.pop %v1644
    %v1646 = vadd.f32 %v1645, 1.0
    %v1647 = vrcp.pop %v1646
    %v1648 = vmul.f32 1.0, %v1647
    %v1649 = vmul.f32 %v1641, %v1460
    %v1650 = vmul.f32 %v1641, %v1642
    %1652 = vrot.lane.b32.xlu0 %v1650, 64
    %v1653 = vpop.permute.xlu0 %1652
    %v1655 = vadd.f32 %v1649, %v1653
    %v1656 = vtanh.pop %v1655
    %v1657 = vmul.f32 %v1648, %v1656
    %v1658 = vsel %vm280, %v1562, 0
    %1660 = vmatprep.subr.mxu0 %v45
    %1661 = vmatpush1.msra.mxu0 %v44
    %1662 = vmatprep.subr.mxu0 %v47
    %1663 = vmatpush1.msra.mxu0 %v46
    %1664 = vmatprep.subr.mxu0 %v49
    %1665 = vmatpush1.msra.mxu0 %v48
    %1666 = vmatprep.subr.mxu0 %v51
    %1667 = vmatpush1.msra.mxu0 %v50
    %1668 = vmatprep.subr.mxu0 %v53
    %1669 = vmatpush1.msra.mxu0 %v52
    %1670 = vmatprep.subr.mxu0 %v55
    %1671 = vmatpush1.msra.mxu0 %v54
    %1672 = vmatprep.subr.mxu0 %v57
    %1673 = vmatpush1.msra.mxu0 %v56
    %1674 = vmatprep.subr.mxu0 %v59
    %1675 = vmatpush1.msra.mxu0 %v58
    %1676 = vmatprep.subr.mxu0 0.0
    %1677 = vmatpush1.msra.mxu0 0.0
    %1678 = vmatprep.subr.mxu0 0.0
    %1679 = vmatpush1.msra.mxu0 0.0
    %1680 = vmatprep.subr.mxu0 0.0
    %1681 = vmatpush1.msra.mxu0 0.0
    %1682 = vmatprep.subr.mxu0 0.0
    %1683 = vmatpush1.msra.mxu0 0.0
    %1684 = vmatprep.subr.mxu0 0.0
    %1685 = vmatpush1.msra.mxu0 0.0
    %1686 = vmatprep.subr.mxu0 0.0
    %1687 = vmatpush1.msra.mxu0 0.0
    %1688 = vmatprep.subr.mxu0 0.0
    %1689 = vmatpush1.msra.mxu0 0.0
    %1690 = vmatprep.subr.mxu0 0.0
    %1691 = vmatpush1.msra.mxu0 0.0
    %1692 = vmatprep.subr.mxu0 0.0
    %1693 = vmatpush1.msra.mxu0 0.0
    %1694 = vmatprep.subr.mxu0 0.0
    %1695 = vmatpush1.msra.mxu0 0.0
    %1696 = vmatprep.subr.mxu0 0.0
    %1697 = vmatpush1.msra.mxu0 0.0
    %1698 = vmatprep.subr.mxu0 0.0
    %1699 = vmatpush1.msra.mxu0 0.0
    %1700 = vmatprep.subr.mxu0 0.0
    %1701 = vmatpush1.msra.mxu0 0.0
    %1702 = vmatprep.subr.mxu0 0.0
    %1703 = vmatpush1.msra.mxu0 0.0
    %1704 = vmatprep.subr.mxu0 0.0
    %1705 = vmatpush1.msra.mxu0 0.0
    %1706 = vmatprep.subr.mxu0 0.0
    %1707 = vmatpush1.msra.mxu0 0.0
    %1708 = vmatprep.subr.mxu0 0.0
    %1709 = vmatpush1.msra.mxu0 0.0
    %1710 = vmatprep.subr.mxu0 0.0
    %1711 = vmatpush1.msra.mxu0 0.0
    %1712 = vmatprep.subr.mxu0 0.0
    %1713 = vmatpush1.msra.mxu0 0.0
    %1714 = vmatprep.subr.mxu0 0.0
    %1715 = vmatpush1.msra.mxu0 0.0
    %1716 = vmatprep.subr.mxu0 0.0
    %1717 = vmatpush1.msra.mxu0 0.0
    %1718 = vmatprep.subr.mxu0 0.0
    %1719 = vmatpush1.msra.mxu0 0.0
    %1720 = vmatprep.subr.mxu0 0.0
    %1721 = vmatpush1.msra.mxu0 0.0
    %1722 = vmatprep.subr.mxu0 0.0
    %1723 = vmatpush1.msra.mxu0 0.0
    %1724 = vmatprep.mubr.f32.mxu0 0.0
    %1725 = vmatmul.mubr.f32.gmra.mrb[0].mxu0 %v1658
    %v1726 = vpop.f32.mrb[0].mxu0
    %v1727 = vadd.f32 0.0, %v1726
    %v1728 = vpop.f32.mrb[0].mxu0
    %v1729 = vadd.f32 0.0, %v1728
    %1730 = vdwg.mxu0
    %v1731 = vadd.f32 %v264, %v1727
    %v1732 = vadd.f32 %v266, %v1729
    %v1733 = vxor.u32 %v1731, 2147483648
    %v1734 = vmul.f32 %v1733, 1.442695
    %v1735 = vpow.pop %v1734
    %v1736 = vadd.f32 %v1735, 1.0
    %v1737 = vrcp.pop %v1736
    %v1738 = vmul.f32 1.0, %v1737
    %v1739 = vtanh.pop %v1732
    %v1740 = vxor.u32 %v1732, 2147483648
    %v1741 = vmul.f32 %v1740, 1.442695
    %v1742 = vpow.pop %v1741
    %v1743 = vadd.f32 %v1742, 1.0
    %v1744 = vrcp.pop %v1743
    %v1745 = vmul.f32 1.0, %v1744
    %v1746 = vmul.f32 %v1738, %v1557
    %v1747 = vmul.f32 %v1738, %v1739
    %1749 = vrot.lane.b32.xlu0 %v1747, 64
    %v1750 = vpop.permute.xlu0 %1749
    %v1752 = vadd.f32 %v1746, %v1750
    %v1753 = vtanh.pop %v1752
    %v1754 = vmul.f32 %v1745, %v1753
    %1756 = vrot.lane.b32.xlu0 %v1754, 64
    %v1757 = vpop.permute.xlu0 %1756
    %v1759 = vsel %vm280, %v1757, %v1657
    %1760 = vmatprep.subr.mxu0 %v61
    %1761 = vmatpush1.msra.mxu0 %v60
    %1762 = vmatprep.subr.mxu0 %v63
    %1763 = vmatpush1.msra.mxu0 %v62
    %1764 = vmatprep.subr.mxu0 %v65
    %1765 = vmatpush1.msra.mxu0 %v64
    %1766 = vmatprep.subr.mxu0 %v67
    %1767 = vmatpush1.msra.mxu0 %v66
    %1768 = vmatprep.subr.mxu0 %v69
    %1769 = vmatpush1.msra.mxu0 %v68
    %1770 = vmatprep.subr.mxu0 %v71
    %1771 = vmatpush1.msra.mxu0 %v70
    %1772 = vmatprep.subr.mxu0 %v73
    %1773 = vmatpush1.msra.mxu0 %v72
    %1774 = vmatprep.subr.mxu0 %v75
    %1775 = vmatpush1.msra.mxu0 %v74
    %1776 = vmatprep.subr.mxu0 %v77
    %1777 = vmatpush1.msra.mxu0 %v76
    %1778 = vmatprep.subr.mxu0 %v79
    %1779 = vmatpush1.msra.mxu0 %v78
    %1780 = vmatprep.subr.mxu0 %v81
    %1781 = vmatpush1.msra.mxu0 %v80
    %1782 = vmatprep.subr.mxu0 %v83
    %1783 = vmatpush1.msra.mxu0 %v82
    %1784 = vmatprep.subr.mxu0 %v85
    %1785 = vmatpush1.msra.mxu0 %v84
    %1786 = vmatprep.subr.mxu0 %v87
    %1787 = vmatpush1.msra.mxu0 %v86
    %1788 = vmatprep.subr.mxu0 %v89
    %1789 = vmatpush1.msra.mxu0 %v88
    %1790 = vmatprep.subr.mxu0 %v91
    %1791 = vmatpush1.msra.mxu0 %v90
    %1792 = vmatprep.subr.mxu0 0.0
    %1793 = vmatpush1.msra.mxu0 0.0
    %1794 = vmatprep.subr.mxu0 0.0
    %1795 = vmatpush1.msra.mxu0 0.0
    %1796 = vmatprep.subr.mxu0 0.0
    %1797 = vmatpush1.msra.mxu0 0.0
    %1798 = vmatprep.subr.mxu0 0.0
    %1799 = vmatpush1.msra.mxu0 0.0
    %1800 = vmatprep.subr.mxu0 0.0
    %1801 = vmatpush1.msra.mxu0 0.0
    %1802 = vmatprep.subr.mxu0 0.0
    %1803 = vmatpush1.msra.mxu0 0.0
    %1804 = vmatprep.subr.mxu0 0.0
    %1805 = vmatpush1.msra.mxu0 0.0
    %1806 = vmatprep.subr.mxu0 0.0
    %1807 = vmatpush1.msra.mxu0 0.0
    %1808 = vmatprep.subr.mxu0 0.0
    %1809 = vmatpush1.msra.mxu0 0.0
    %1810 = vmatprep.subr.mxu0 0.0
    %1811 = vmatpush1.msra.mxu0 0.0
    %1812 = vmatprep.subr.mxu0 0.0
    %1813 = vmatpush1.msra.mxu0 0.0
    %1814 = vmatprep.subr.mxu0 0.0
    %1815 = vmatpush1.msra.mxu0 0.0
    %1816 = vmatprep.subr.mxu0 0.0
    %1817 = vmatpush1.msra.mxu0 0.0
    %1818 = vmatprep.subr.mxu0 0.0
    %1819 = vmatpush1.msra.mxu0 0.0
    %1820 = vmatprep.subr.mxu0 0.0
    %1821 = vmatpush1.msra.mxu0 0.0
    %1822 = vmatprep.subr.mxu0 0.0
    %1823 = vmatpush1.msra.mxu0 0.0
    %1824 = vmatprep.mubr.f32.mxu0 0.0
    %1825 = vmatmul.mubr.f32.gmra.mrb[0].mxu0 %v1759
    %v1826 = vpop.f32.mrb[0].mxu0
    %v1827 = vadd.f32 %v388, %v1826
    %v1828 = vpop.f32.mrb[0].mxu0
    %v1829 = vadd.f32 %v392, %v1828
    %1830 = vdwg.mxu0
    %v1831 = vxor.u32 %v1827, 2147483648
    %v1832 = vmul.f32 %v1831, 1.442695
    %v1833 = vpow.pop %v1832
    %v1834 = vadd.f32 %v1833, 1.0
    %v1835 = vrcp.pop %v1834
    %v1836 = vmul.f32 1.0, %v1835
    %v1837 = vtanh.pop %v1829
    %v1838 = vxor.u32 %v1829, 2147483648
    %v1839 = vmul.f32 %v1838, 1.442695
    %v1840 = vpow.pop %v1839
    %v1841 = vadd.f32 %v1840, 1.0
    %v1842 = vrcp.pop %v1841
    %v1843 = vmul.f32 1.0, %v1842
    %v1844 = vmul.f32 %v1836, %v1655
    %v1845 = vmul.f32 %v1836, %v1837
    %1847 = vrot.lane.b32.xlu0 %v1845, 64
    %v1848 = vpop.permute.xlu0 %1847
    %v1850 = vadd.f32 %v1844, %v1848
    %v1851 = vtanh.pop %v1850
    %v1852 = vmul.f32 %v1843, %v1851
    %v1853 = vsel %vm280, %v1757, 0
    %1855 = vmatprep.subr.mxu0 %v45
    %1856 = vmatpush1.msra.mxu0 %v44
    %1857 = vmatprep.subr.mxu0 %v47
    %1858 = vmatpush1.msra.mxu0 %v46
    %1859 = vmatprep.subr.mxu0 %v49
    %1860 = vmatpush1.msra.mxu0 %v48
    %1861 = vmatprep.subr.mxu0 %v51
    %1862 = vmatpush1.msra.mxu0 %v50
    %1863 = vmatprep.subr.mxu0 %v53
    %1864 = vmatpush1.msra.mxu0 %v52
    %1865 = vmatprep.subr.mxu0 %v55
    %1866 = vmatpush1.msra.mxu0 %v54
    %1867 = vmatprep.subr.mxu0 %v57
    %1868 = vmatpush1.msra.mxu0 %v56
    %1869 = vmatprep.subr.mxu0 %v59
    %1870 = vmatpush1.msra.mxu0 %v58
    %1871 = vmatprep.subr.mxu0 0.0
    %1872 = vmatpush1.msra.mxu0 0.0
    %1873 = vmatprep.subr.mxu0 0.0
    %1874 = vmatpush1.msra.mxu0 0.0
    %1875 = vmatprep.subr.mxu0 0.0
    %1876 = vmatpush1.msra.mxu0 0.0
    %1877 = vmatprep.subr.mxu0 0.0
    %1878 = vmatpush1.msra.mxu0 0.0
    %1879 = vmatprep.subr.mxu0 0.0
    %1880 = vmatpush1.msra.mxu0 0.0
    %1881 = vmatprep.subr.mxu0 0.0
    %1882 = vmatpush1.msra.mxu0 0.0
    %1883 = vmatprep.subr.mxu0 0.0
    %1884 = vmatpush1.msra.mxu0 0.0
    %1885 = vmatprep.subr.mxu0 0.0
    %1886 = vmatpush1.msra.mxu0 0.0
    %1887 = vmatprep.subr.mxu0 0.0
    %1888 = vmatpush1.msra.mxu0 0.0
    %1889 = vmatprep.subr.mxu0 0.0
    %1890 = vmatpush1.msra.mxu0 0.0
    %1891 = vmatprep.subr.mxu0 0.0
    %1892 = vmatpush1.msra.mxu0 0.0
    %1893 = vmatprep.subr.mxu0 0.0
    %1894 = vmatpush1.msra.mxu0 0.0
    %1895 = vmatprep.subr.mxu0 0.0
    %1896 = vmatpush1.msra.mxu0 0.0
    %1897 = vmatprep.subr.mxu0 0.0
    %1898 = vmatpush1.msra.mxu0 0.0
    %1899 = vmatprep.subr.mxu0 0.0
    %1900 = vmatpush1.msra.mxu0 0.0
    %1901 = vmatprep.subr.mxu0 0.0
    %1902 = vmatpush1.msra.mxu0 0.0
    %1903 = vmatprep.subr.mxu0 0.0
    %1904 = vmatpush1.msra.mxu0 0.0
    %1905 = vmatprep.subr.mxu0 0.0
    %1906 = vmatpush1.msra.mxu0 0.0
    %1907 = vmatprep.subr.mxu0 0.0
    %1908 = vmatpush1.msra.mxu0 0.0
    %1909 = vmatprep.subr.mxu0 0.0
    %1910 = vmatpush1.msra.mxu0 0.0
    %1911 = vmatprep.subr.mxu0 0.0
    %1912 = vmatpush1.msra.mxu0 0.0
    %1913 = vmatprep.subr.mxu0 0.0
    %1914 = vmatpush1.msra.mxu0 0.0
    %1915 = vmatprep.subr.mxu0 0.0
    %1916 = vmatpush1.msra.mxu0 0.0
    %1917 = vmatprep.subr.mxu0 0.0
    %1918 = vmatpush1.msra.mxu0 0.0
    %1919 = vmatprep.mubr.f32.mxu0 0.0
    %1920 = vmatmul.mubr.f32.gmra.mrb[0].mxu0 %v1853
    %v1921 = vpop.f32.mrb[0].mxu0
    %v1922 = vadd.f32 0.0, %v1921
    %v1923 = vpop.f32.mrb[0].mxu0
    %v1924 = vadd.f32 0.0, %v1923
    %1925 = vdwg.mxu0
    %v1926 = vadd.f32 %v270, %v1922
    %v1927 = vadd.f32 %v272, %v1924
    %v1928 = vxor.u32 %v1926, 2147483648
    %v1929 = vmul.f32 %v1928, 1.442695
    %v1930 = vpow.pop %v1929
    %v1931 = vadd.f32 %v1930, 1.0
    %v1932 = vrcp.pop %v1931
    %v1933 = vmul.f32 1.0, %v1932
    %v1934 = vtanh.pop %v1927
    %v1935 = vxor.u32 %v1927, 2147483648
    %v1936 = vmul.f32 %v1935, 1.442695
    %v1937 = vpow.pop %v1936
    %v1938 = vadd.f32 %v1937, 1.0
    %v1939 = vrcp.pop %v1938
    %v1940 = vmul.f32 1.0, %v1939
    %v1941 = vmul.f32 %v1933, %v1752
    %v1942 = vmul.f32 %v1933, %v1934
    %1944 = vrot.lane.b32.xlu0 %v1942, 64
    %v1945 = vpop.permute.xlu0 %1944
    %v1947 = vadd.f32 %v1941, %v1945
    %v1948 = vtanh.pop %v1947
    %v1949 = vmul.f32 %v1940, %v1948
    %1951 = vrot.lane.b32.xlu0 %v1949, 64
    %v1952 = vpop.permute.xlu0 %1951
    %v1954 = vsel %vm280, %v1952, %v1852
    %1955 = vmatprep.subr.mxu0 %v61
    %1956 = vmatpush1.msra.mxu0 %v60
    %1957 = vmatprep.subr.mxu0 %v63
    %1958 = vmatpush1.msra.mxu0 %v62
    %1959 = vmatprep.subr.mxu0 %v65
    %1960 = vmatpush1.msra.mxu0 %v64
    %1961 = vmatprep.subr.mxu0 %v67
    %1962 = vmatpush1.msra.mxu0 %v66
    %1963 = vmatprep.subr.mxu0 %v69
    %1964 = vmatpush1.msra.mxu0 %v68
    %1965 = vmatprep.subr.mxu0 %v71
    %1966 = vmatpush1.msra.mxu0 %v70
    %1967 = vmatprep.subr.mxu0 %v73
    %1968 = vmatpush1.msra.mxu0 %v72
    %1969 = vmatprep.subr.mxu0 %v75
    %1970 = vmatpush1.msra.mxu0 %v74
    %1971 = vmatprep.subr.mxu0 %v77
    %1972 = vmatpush1.msra.mxu0 %v76
    %1973 = vmatprep.subr.mxu0 %v79
    %1974 = vmatpush1.msra.mxu0 %v78
    %1975 = vmatprep.subr.mxu0 %v81
    %1976 = vmatpush1.msra.mxu0 %v80
    %1977 = vmatprep.subr.mxu0 %v83
    %1978 = vmatpush1.msra.mxu0 %v82
    %1979 = vmatprep.subr.mxu0 %v85
    %1980 = vmatpush1.msra.mxu0 %v84
    %1981 = vmatprep.subr.mxu0 %v87
    %1982 = vmatpush1.msra.mxu0 %v86
    %1983 = vmatprep.subr.mxu0 %v89
    %1984 = vmatpush1.msra.mxu0 %v88
    %1985 = vmatprep.subr.mxu0 %v91
    %1986 = vmatpush1.msra.mxu0 %v90
    %1987 = vmatprep.subr.mxu0 0.0
    %1988 = vmatpush1.msra.mxu0 0.0
    %1989 = vmatprep.subr.mxu0 0.0
    %1990 = vmatpush1.msra.mxu0 0.0
    %1991 = vmatprep.subr.mxu0 0.0
    %1992 = vmatpush1.msra.mxu0 0.0
    %1993 = vmatprep.subr.mxu0 0.0
    %1994 = vmatpush1.msra.mxu0 0.0
    %1995 = vmatprep.subr.mxu0 0.0
    %1996 = vmatpush1.msra.mxu0 0.0
    %1997 = vmatprep.subr.mxu0 0.0
    %1998 = vmatpush1.msra.mxu0 0.0
    %1999 = vmatprep.subr.mxu0 0.0
    %2000 = vmatpush1.msra.mxu0 0.0
    %2001 = vmatprep.subr.mxu0 0.0
    %2002 = vmatpush1.msra.mxu0 0.0
    %2003 = vmatprep.subr.mxu0 0.0
    %2004 = vmatpush1.msra.mxu0 0.0
    %2005 = vmatprep.subr.mxu0 0.0
    %2006 = vmatpush1.msra.mxu0 0.0
    %2007 = vmatprep.subr.mxu0 0.0
    %2008 = vmatpush1.msra.mxu0 0.0
    %2009 = vmatprep.subr.mxu0 0.0
    %2010 = vmatpush1.msra.mxu0 0.0
    %2011 = vmatprep.subr.mxu0 0.0
    %2012 = vmatpush1.msra.mxu0 0.0
    %2013 = vmatprep.subr.mxu0 0.0
    %2014 = vmatpush1.msra.mxu0 0.0
    %2015 = vmatprep.subr.mxu0 0.0
    %2016 = vmatpush1.msra.mxu0 0.0
    %2017 = vmatprep.subr.mxu0 0.0
    %2018 = vmatpush1.msra.mxu0 0.0
    %2019 = vmatprep.mubr.f32.mxu0 0.0
    %2020 = vmatmul.mubr.f32.gmra.mrb[0].mxu0 %v1954
    %v2021 = vpop.f32.mrb[0].mxu0
    %v2022 = vadd.f32 %v388, %v2021
    %v2023 = vpop.f32.mrb[0].mxu0
    %v2024 = vadd.f32 %v392, %v2023
    %2025 = vdwg.mxu0
    %v2026 = vxor.u32 %v2022, 2147483648
    %v2027 = vmul.f32 %v2026, 1.442695
    %v2028 = vpow.pop %v2027
    %v2029 = vadd.f32 %v2028, 1.0
    %v2030 = vrcp.pop %v2029
    %v2031 = vmul.f32 1.0, %v2030
    %v2032 = vtanh.pop %v2024
    %v2033 = vxor.u32 %v2024, 2147483648
    %v2034 = vmul.f32 %v2033, 1.442695
    %v2035 = vpow.pop %v2034
    %v2036 = vadd.f32 %v2035, 1.0
    %v2037 = vrcp.pop %v2036
    %v2038 = vmul.f32 1.0, %v2037
    %v2039 = vmul.f32 %v2031, %v1850
    %v2040 = vmul.f32 %v2031, %v2032
    %2042 = vrot.lane.b32.xlu0 %v2040, 64
    %v2043 = vpop.permute.xlu0 %2042
    %v2045 = vadd.f32 %v2039, %v2043
    %v2046 = vtanh.pop %v2045
    %v2047 = vmul.f32 %v2038, %v2046
    %v2048 = vsel %vm280, %v1952, 0
    %2050 = vmatprep.subr.mxu0 %v45
    %2051 = vmatpush1.msra.mxu0 %v44
    %2052 = vmatprep.subr.mxu0 %v47
    %2053 = vmatpush1.msra.mxu0 %v46
    %2054 = vmatprep.subr.mxu0 %v49
    %2055 = vmatpush1.msra.mxu0 %v48
    %2056 = vmatprep.subr.mxu0 %v51
    %2057 = vmatpush1.msra.mxu0 %v50
    %2058 = vmatprep.subr.mxu0 %v53
    %2059 = vmatpush1.msra.mxu0 %v52
    %2060 = vmatprep.subr.mxu0 %v55
    %2061 = vmatpush1.msra.mxu0 %v54
    %2062 = vmatprep.subr.mxu0 %v57
    %2063 = vmatpush1.msra.mxu0 %v56
    %2064 = vmatprep.subr.mxu0 %v59
    %2065 = vmatpush1.msra.mxu0 %v58
    %2066 = vmatprep.subr.mxu0 0.0
    %2067 = vmatpush1.msra.mxu0 0.0
    %2068 = vmatprep.subr.mxu0 0.0
    %2069 = vmatpush1.msra.mxu0 0.0
    %2070 = vmatprep.subr.mxu0 0.0
    %2071 = vmatpush1.msra.mxu0 0.0
    %2072 = vmatprep.subr.mxu0 0.0
    %2073 = vmatpush1.msra.mxu0 0.0
    %2074 = vmatprep.subr.mxu0 0.0
    %2075 = vmatpush1.msra.mxu0 0.0
    %2076 = vmatprep.subr.mxu0 0.0
    %2077 = vmatpush1.msra.mxu0 0.0
    %2078 = vmatprep.subr.mxu0 0.0
    %2079 = vmatpush1.msra.mxu0 0.0
    %2080 = vmatprep.subr.mxu0 0.0
    %2081 = vmatpush1.msra.mxu0 0.0
    %2082 = vmatprep.subr.mxu0 0.0
    %2083 = vmatpush1.msra.mxu0 0.0
    %2084 = vmatprep.subr.mxu0 0.0
    %2085 = vmatpush1.msra.mxu0 0.0
    %2086 = vmatprep.subr.mxu0 0.0
    %2087 = vmatpush1.msra.mxu0 0.0
    %2088 = vmatprep.subr.mxu0 0.0
    %2089 = vmatpush1.msra.mxu0 0.0
    %2090 = vmatprep.subr.mxu0 0.0
    %2091 = vmatpush1.msra.mxu0 0.0
    %2092 = vmatprep.subr.mxu0 0.0
    %2093 = vmatpush1.msra.mxu0 0.0
    %2094 = vmatprep.subr.mxu0 0.0
    %2095 = vmatpush1.msra.mxu0 0.0
    %2096 = vmatprep.subr.mxu0 0.0
    %2097 = vmatpush1.msra.mxu0 0.0
    %2098 = vmatprep.subr.mxu0 0.0
    %2099 = vmatpush1.msra.mxu0 0.0
    %2100 = vmatprep.subr.mxu0 0.0
    %2101 = vmatpush1.msra.mxu0 0.0
    %2102 = vmatprep.subr.mxu0 0.0
    %2103 = vmatpush1.msra.mxu0 0.0
    %2104 = vmatprep.subr.mxu0 0.0
    %2105 = vmatpush1.msra.mxu0 0.0
    %2106 = vmatprep.subr.mxu0 0.0
    %2107 = vmatpush1.msra.mxu0 0.0
    %2108 = vmatprep.subr.mxu0 0.0
    %2109 = vmatpush1.msra.mxu0 0.0
    %2110 = vmatprep.subr.mxu0 0.0
    %2111 = vmatpush1.msra.mxu0 0.0
    %2112 = vmatprep.subr.mxu0 0.0
    %2113 = vmatpush1.msra.mxu0 0.0
    %2114 = vmatprep.mubr.f32.mxu0 0.0
    %2115 = vmatmul.mubr.f32.gmra.mrb[0].mxu0 %v2048
    %v2116 = vpop.f32.mrb[0].mxu0
    %v2117 = vadd.f32 0.0, %v2116
    %v2118 = vpop.f32.mrb[0].mxu0
    %v2119 = vadd.f32 0.0, %v2118
    %2120 = vdwg.mxu0
    %v2121 = vadd.f32 %v276, %v2117
    %v2122 = vadd.f32 %v278, %v2119
    %v2123 = vxor.u32 %v2121, 2147483648
    %v2124 = vmul.f32 %v2123, 1.442695
    %v2125 = vpow.pop %v2124
    %v2126 = vadd.f32 %v2125, 1.0
    %v2127 = vrcp.pop %v2126
    %v2128 = vmul.f32 1.0, %v2127
    %v2129 = vtanh.pop %v2122
    %v2130 = vxor.u32 %v2122, 2147483648
    %v2131 = vmul.f32 %v2130, 1.442695
    %v2132 = vpow.pop %v2131
    %v2133 = vadd.f32 %v2132, 1.0
    %v2134 = vrcp.pop %v2133
    %v2135 = vmul.f32 1.0, %v2134
    %v2136 = vmul.f32 %v2128, %v1947
    %v2137 = vmul.f32 %v2128, %v2129
    %2139 = vrot.lane.b32.xlu0 %v2137, 64
    %v2140 = vpop.permute.xlu0 %2139
    %v2142 = vadd.f32 %v2136, %v2140
    %v2143 = vtanh.pop %v2142
    %v2144 = vmul.f32 %v2135, %v2143
    %2146 = vrot.lane.b32.xlu0 %v2144, 64
    %v2147 = vpop.permute.xlu0 %2146
    %v2149 = vsel %vm280, %v2147, %v2047
    %2150 = vmatprep.subr.mxu0 %v61
    %2151 = vmatpush1.msra.mxu0 %v60
    %2152 = vmatprep.subr.mxu0 %v63
    %2153 = vmatpush1.msra.mxu0 %v62
    %2154 = vmatprep.subr.mxu0 %v65
    %2155 = vmatpush1.msra.mxu0 %v64
    %2156 = vmatprep.subr.mxu0 %v67
    %2157 = vmatpush1.msra.mxu0 %v66
    %2158 = vmatprep.subr.mxu0 %v69
    %2159 = vmatpush1.msra.mxu0 %v68
    %2160 = vmatprep.subr.mxu0 %v71
    %2161 = vmatpush1.msra.mxu0 %v70
    %2162 = vmatprep.subr.mxu0 %v73
    %2163 = vmatpush1.msra.mxu0 %v72
    %2164 = vmatprep.subr.mxu0 %v75
    %2165 = vmatpush1.msra.mxu0 %v74
    %2166 = vmatprep.subr.mxu0 %v77
    %2167 = vmatpush1.msra.mxu0 %v76
    %2168 = vmatprep.subr.mxu0 %v79
    %2169 = vmatpush1.msra.mxu0 %v78
    %2170 = vmatprep.subr.mxu0 %v81
    %2171 = vmatpush1.msra.mxu0 %v80
    %2172 = vmatprep.subr.mxu0 %v83
    %2173 = vmatpush1.msra.mxu0 %v82
    %2174 = vmatprep.subr.mxu0 %v85
    %2175 = vmatpush1.msra.mxu0 %v84
    %2176 = vmatprep.subr.mxu0 %v87
    %2177 = vmatpush1.msra.mxu0 %v86
    %2178 = vmatprep.subr.mxu0 %v89
    %2179 = vmatpush1.msra.mxu0 %v88
    %2180 = vmatprep.subr.mxu0 %v91
    %2181 = vmatpush1.msra.mxu0 %v90
    %2182 = vmatprep.subr.mxu0 0.0
    %2183 = vmatpush1.msra.mxu0 0.0
    %2184 = vmatprep.subr.mxu0 0.0
    %2185 = vmatpush1.msra.mxu0 0.0
    %2186 = vmatprep.subr.mxu0 0.0
    %2187 = vmatpush1.msra.mxu0 0.0
    %2188 = vmatprep.subr.mxu0 0.0
    %2189 = vmatpush1.msra.mxu0 0.0
    %2190 = vmatprep.subr.mxu0 0.0
    %2191 = vmatpush1.msra.mxu0 0.0
    %2192 = vmatprep.subr.mxu0 0.0
    %2193 = vmatpush1.msra.mxu0 0.0
    %2194 = vmatprep.subr.mxu0 0.0
    %2195 = vmatpush1.msra.mxu0 0.0
    %2196 = vmatprep.subr.mxu0 0.0
    %2197 = vmatpush1.msra.mxu0 0.0
    %2198 = vmatprep.subr.mxu0 0.0
    %2199 = vmatpush1.msra.mxu0 0.0
    %2200 = vmatprep.subr.mxu0 0.0
    %2201 = vmatpush1.msra.mxu0 0.0
    %2202 = vmatprep.subr.mxu0 0.0
    %2203 = vmatpush1.msra.mxu0 0.0
    %2204 = vmatprep.subr.mxu0 0.0
    %2205 = vmatpush1.msra.mxu0 0.0
    %2206 = vmatprep.subr.mxu0 0.0
    %2207 = vmatpush1.msra.mxu0 0.0
    %2208 = vmatprep.subr.mxu0 0.0
    %2209 = vmatpush1.msra.mxu0 0.0
    %2210 = vmatprep.subr.mxu0 0.0
    %2211 = vmatpush1.msra.mxu0 0.0
    %2212 = vmatprep.subr.mxu0 0.0
    %2213 = vmatpush1.msra.mxu0 0.0
    %2214 = vmatprep.mubr.f32.mxu0 0.0
    %2215 = vmatmul.mubr.f32.gmra.mrb[0].mxu0 %v2149
    %v2216 = vpop.f32.mrb[0].mxu0
    %v2217 = vadd.f32 %v388, %v2216
    %v2218 = vpop.f32.mrb[0].mxu0
    %v2219 = vadd.f32 %v392, %v2218
    %2220 = vdwg.mxu0
    %v2221 = vxor.u32 %v2217, 2147483648
    %v2222 = vmul.f32 %v2221, 1.442695
    %v2223 = vpow.pop %v2222
    %v2224 = vadd.f32 %v2223, 1.0
    %v2225 = vrcp.pop %v2224
    %v2226 = vmul.f32 1.0, %v2225
    %v2227 = vtanh.pop %v2219
    %v2228 = vxor.u32 %v2219, 2147483648
    %v2229 = vmul.f32 %v2228, 1.442695
    %v2230 = vpow.pop %v2229
    %v2231 = vadd.f32 %v2230, 1.0
    %v2232 = vrcp.pop %v2231
    %v2233 = vmul.f32 1.0, %v2232
    %v2234 = vmul.f32 %v2226, %v2045
    %v2235 = vmul.f32 %v2226, %v2227
    %2237 = vrot.lane.b32.xlu0 %v2235, 64
    %v2238 = vpop.permute.xlu0 %2237
    %v2240 = vadd.f32 %v2234, %v2238
    %v2241 = vtanh.pop %v2240
    %v2242 = vmul.f32 %v2233, %v2241
    %v2243 = vld [vmem:[%s6] sm:$0xff]
    %v2244 = vld [vmem:[%s6 + $0x8] sm:$0xff]
    %v2245 = vld [vmem:[%s6 + $0x10] sm:$0xff]
    %v2246 = vld [vmem:[%s6 + $0x18] sm:$0xff]
    %v2247 = vld [vmem:[%s6 + $0x20] sm:$0xff]
    %v2248 = vld [vmem:[%s6 + $0x28] sm:$0xff]
    %v2249 = vld [vmem:[%s6 + $0x30] sm:$0xff]
    %v2250 = vld [vmem:[%s6 + $0x38] sm:$0xff]
    %s2251 = sld [smem:[#allocation2]]
    %v2252 = vstv %s2251
    %2254 = vrot.lane.b32.xlu0 %v2242, 64
    %v2255 = vpop.permute.xlu0 %2254
    %v2256 = vsel %vm280, %v2255, 0
    %2258 = vmatprep.subr.mxu0 0.0
    %2259 = vmatpush1.msra.mxu0 %v2243
    %2260 = vmatprep.subr.mxu0 0.0
    %2261 = vmatpush1.msra.mxu0 %v2244
    %2262 = vmatprep.subr.mxu0 0.0
    %2263 = vmatpush1.msra.mxu0 %v2245
    %2264 = vmatprep.subr.mxu0 0.0
    %2265 = vmatpush1.msra.mxu0 %v2246
    %2266 = vmatprep.subr.mxu0 0.0
    %2267 = vmatpush1.msra.mxu0 %v2247
    %2268 = vmatprep.subr.mxu0 0.0
    %2269 = vmatpush1.msra.mxu0 %v2248
    %2270 = vmatprep.subr.mxu0 0.0
    %2271 = vmatpush1.msra.mxu0 %v2249
    %2272 = vmatprep.subr.mxu0 0.0
    %2273 = vmatpush1.msra.mxu0 %v2250
    %2274 = vmatprep.subr.mxu0 0.0
    %2275 = vmatpush1.msra.mxu0 0.0
    %2276 = vmatprep.subr.mxu0 0.0
    %2277 = vmatpush1.msra.mxu0 0.0
    %2278 = vmatprep.subr.mxu0 0.0
    %2279 = vmatpush1.msra.mxu0 0.0
    %2280 = vmatprep.subr.mxu0 0.0
    %2281 = vmatpush1.msra.mxu0 0.0
    %2282 = vmatprep.subr.mxu0 0.0
    %2283 = vmatpush1.msra.mxu0 0.0
    %2284 = vmatprep.subr.mxu0 0.0
    %2285 = vmatpush1.msra.mxu0 0.0
    %2286 = vmatprep.subr.mxu0 0.0
    %2287 = vmatpush1.msra.mxu0 0.0
    %2288 = vmatprep.subr.mxu0 0.0
    %2289 = vmatpush1.msra.mxu0 0.0
    %2290 = vmatprep.subr.mxu0 0.0
    %2291 = vmatpush1.msra.mxu0 0.0
    %2292 = vmatprep.subr.mxu0 0.0
    %2293 = vmatpush1.msra.mxu0 0.0
    %2294 = vmatprep.subr.mxu0 0.0
    %2295 = vmatpush1.msra.mxu0 0.0
    %2296 = vmatprep.subr.mxu0 0.0
    %2297 = vmatpush1.msra.mxu0 0.0
    %2298 = vmatprep.subr.mxu0 0.0
    %2299 = vmatpush1.msra.mxu0 0.0
    %2300 = vmatprep.subr.mxu0 0.0
    %2301 = vmatpush1.msra.mxu0 0.0
    %2302 = vmatprep.subr.mxu0 0.0
    %2303 = vmatpush1.msra.mxu0 0.0
    %2304 = vmatprep.subr.mxu0 0.0
    %2305 = vmatpush1.msra.mxu0 0.0
    %2306 = vmatprep.subr.mxu0 0.0
    %2307 = vmatpush1.msra.mxu0 0.0
    %2308 = vmatprep.subr.mxu0 0.0
    %2309 = vmatpush1.msra.mxu0 0.0
    %2310 = vmatprep.subr.mxu0 0.0
    %2311 = vmatpush1.msra.mxu0 0.0
    %2312 = vmatprep.subr.mxu0 0.0
    %2313 = vmatpush1.msra.mxu0 0.0
    %2314 = vmatprep.subr.mxu0 0.0
    %2315 = vmatpush1.msra.mxu0 0.0
    %2316 = vmatprep.subr.mxu0 0.0
    %2317 = vmatpush1.msra.mxu0 0.0
    %2318 = vmatprep.subr.mxu0 0.0
    %2319 = vmatpush1.msra.mxu0 0.0
    %2320 = vmatprep.subr.mxu0 0.0
    %2321 = vmatpush1.msra.mxu0 0.0
    %2322 = vmatprep.mubr.f32.mxu0 0.0
    %2323 = vmatmul.mubr.f32.gmra.mrb[0].mxu0 %v2256
    %v2324 = vpop.f32.mrb[0].mxu0
    %v2325 = vadd.f32 %v2252, %v2324
    %v2326 = vpop.f32.mrb[0].mxu0
    %2327 = vdwg.mxu0
    %vm2328 = vcmask 7168
    %2329 = vst.msk [vmem:[%s8] sm:$0xff] %vm2328, %v2325
    // Predicated region
    $region38: #{tpu_custom_call.1} parent=1 // pred_check
      _
    $region39: #{tpu_custom_call.1} parent=1 // pred_check_branch
      %2331 = sbr.rel (0) target = $region41
    $region40: #{tpu_custom_call.1} parent=1 // pred_region
      _
    $region41: #{tpu_custom_call.1} parent=1 // pred_fallthru
      _
    // Predicated region
    $region42: #{tpu_custom_call.1} parent=1 // pred_check
      _
    $region43: #{tpu_custom_call.1} parent=1 // pred_check_branch
      %2333 = sbr.rel (0) target = $region45
    $region44: #{tpu_custom_call.1} parent=1 // pred_region
      _
    $region45: #{tpu_custom_call.1} parent=1 // pred_fallthru
      _
    %2334 = vsyncpa [#allocation4], 1

</llo_original>
